<compile_context>
chip_gen: v7x
topology: tpu7x:2x2x1
jax: 0.10.0
libtpu: 0.0.40
codegen_flags: <defaults>
</compile_context>

<pallas_src>
import math

import jax
import jax.numpy as jnp
from jax import lax
from jax.experimental import pallas as pl
from jax.experimental.pallas import tpu as pltpu

# ------------------------- synthetic hparams / sizes -------------------------
D_MODEL = 32          # hparams.d_model
D_WORD = 32           # hparams.d_word_vec
VW = 96               # hparams.target_word_vocab_size
VR = 32               # hparams.target_rule_vocab_size
VOCAB = VW + VR       # 128
B = 2                 # batch
T_Y = 8               # y_max_len
L_X = 8               # max_x_len
PAD_ID = 0
ATTN_NEG = -1e9       # stands in for `-hparams.inf` used by DotProdAttn masking


# --------------------------------- kernel ------------------------------------
def _make_kernel(T, Bn, D, KTABP):
    """Static T (time), Bn (batch), D (d_model), KTABP (padded state-table rows)."""
    S = 2 * Bn                       # stacked rows: [word b0..bB-1, rule b0..bB-1]

    def kernel(
        # tensor inputs (VMEM, full blocks)
        eg_ref,      # [T, 2B, 4D]     emb @ W_ih_emb + b_ih + b_hh (both halves)
        psel_ref,    # [T, 2B, KTABP]  one-hot parent selector into the state table
        wm_ref,      # [T, 2B, D]      word-update mask (1.0 on rule rows)
        kT_ref,      # [D, B*Lx]       attention keys, flattened, pre-scaled 1/sqrt(D)
        bias_ref,    # [2B, B*Lx]      additive attention mask (-1e9 on blocked cols)
        vals_ref,    # [B*Lx, 2D]      attention values, batch-flattened
        hc0_ref,     # [2, 2B, D]      dec_init h (slot 0) and c (slot 1), stacked
        wg_ref,      # [4D, 4D]        stacked gate weight rows: [parent; feed; hidden]
        wctx_ref,    # [3D, D]         ctx_to_readout^T  (rows 0:D hidden, D:3D ctx)
        wro_ref,     # [D, V]          readout^T (full, unmasked)
        # output
        out_ref,     # [KTABP, V]      readout of every table row (lane-dense)
        # scratch
        h_tab,       # [KTABP, D]      h table: slot 0 zeros, slot t+1 = stacked h_t
        ctx_tab,     # [KTABP, 2D]     ctx table (same row layout)
    ):
        # ---- init state tables ----
        h_tab[...] = jnp.zeros_like(h_tab)
        ctx_tab[...] = jnp.zeros_like(ctx_tab)

        # small loop-invariant loads (a few vregs; big weights stay ref-indexed)
        kT = kT_ref[...]
        bias = bias_ref[...]
        vals = vals_ref[...]

        # recurrent state carried in registers across the unrolled loop
        h_prev = hc0_ref[0]                                    # [2B, D]
        c_prev = hc0_ref[1]                                    # [2B, D]
        ctx_prev = jnp.zeros((S, 2 * D), jnp.float32)          # input feed

        # fully unrolled time loop (T is static and small)
        for t in range(T):
            # parent_feed gather: one-hot matmul against the flat state table
            parent = jnp.dot(psel_ref[t], h_tab[...],
                             preferred_element_type=jnp.float32)      # [2B, D]

            # single fused LSTM-gate matmul for both word & rule halves
            x_cat = jnp.concatenate([parent, ctx_prev, h_prev], axis=1)   # [2B, 4D]
            gates = eg_ref[t] + jnp.dot(x_cat, wg_ref[...],
                                        preferred_element_type=jnp.float32)
            sig = jax.nn.sigmoid(gates)                       # one EUP pass [2B,4D]
            i_g = sig[:, 0:D]
            f_g = sig[:, D:2 * D]
            o_g = sig[:, 3 * D:4 * D]
            g_g = jnp.tanh(gates[:, 2 * D:3 * D])
            c_new = f_g * c_prev + i_g * g_g
            h_new = o_g * jnp.tanh(c_new)

            # word-update mask blend (rule rows have wm == 1.0)
            wm = wm_ref[t]
            wm1 = 1.0 - wm
            h_fin = h_new * wm + h_prev * wm1
            c_fin = c_new * wm + c_prev * wm1

            # fused DotProdAttn over batch-flattened memory (additive mask bias)
            scores = jnp.dot(h_fin, kT, preferred_element_type=jnp.float32) + bias
            p = jnp.exp(scores)
            p = p * pl.reciprocal(jnp.sum(p, axis=-1, keepdims=True), approx=True)
            ctx = jnp.dot(p, vals, preferred_element_type=jnp.float32)   # [2B, 2D]

            # write state tables (full stacked rows; consumed by later steps and
            # the batched epilogue -- no sublane slicing of h_fin)
            row0 = (t + 1) * S
            h_tab[row0:row0 + S, :] = h_fin
            ctx_tab[row0:row0 + S, :] = ctx

            h_prev = h_fin
            c_prev = c_fin
            ctx_prev = ctx

        # ---- epilogue: batched pre-readout + single full readout matmul ----
        wctx = wctx_ref[...]
        pre = jnp.tanh(
            jnp.dot(h_tab[...], wctx[:D, :], preferred_element_type=jnp.float32)
            + jnp.dot(ctx_tab[...], wctx[D:, :], preferred_element_type=jnp.float32))
        out_ref[...] = jnp.dot(pre, wro_ref[...], preferred_element_type=jnp.float32)

    return kernel


# --------------------------------- wrapper -----------------------------------
def _full_spec(arr):
    nd = arr.ndim
    shape = arr.shape
    return pl.BlockSpec(shape, lambda *args, _nd=nd: (0,) * _nd)


@jax.jit
def tree_decoder_forward(params, x_enc, x_enc_k, dec_h0, dec_c0, x_mask,
                         y_train, score_mask):
    Bn, T, _ = y_train.shape
    Lx = x_enc_k.shape[1]
    D, E, V = D_MODEL, D_WORD, VOCAB
    S = 2 * Bn
    KTAB = (T + 1) * S
    KTABP = ((KTAB + 7) // 8) * 8                          # pad table rows to 8
    hp = lax.Precision.HIGHEST

    # ---------- weight prep (pre-transposed / pre-stacked, plain JAX) --------
    w_ih_t = params['w_ih'].T                              # [E+3D, 4D]
    we = w_ih_t[:E]                                        # embedding slice
    # stacked gate weight rows must match x_cat lanes: [parent | feed | hidden]
    wg = jnp.concatenate([w_ih_t[E:E + D],                 # parent-state slice
                          w_ih_t[E + D:],                  # input-feed slice (2D)
                          params['w_hh'].T], axis=0)       # hidden slice -> [4D, 4D]
    bias_g = params['b_ih'] + params['b_hh']
    wctx_t = params['w_ctx'].T                             # [3D, D]
    wro_t = params['w_readout'].T                          # [D, V]

    # embedding gate contribution precomputed outside the kernel (one matmul)
    trg_emb = jnp.take(params['emb'], y_train[:, :, 0], axis=0).astype(jnp.float32)
    eg = jnp.einsum('bte,eg->btg', trg_emb, we, precision=hp) + bias_g[None, None, :]
    eg = jnp.transpose(eg, (1, 0, 2))                      # [T, B, 4D]
    eg_st = jnp.concatenate([eg, eg], axis=1)              # [T, 2B, 4D]

    # one-hot parent selectors into the flat state table (index-clamped)
    pidx = jnp.clip(y_train[:, :, 1].astype(jnp.int32), 0, T)          # [B, T]
    cols = pidx * S + (Bn + jnp.arange(Bn)[:, None])                   # rule rows
    cols2 = jnp.concatenate([cols, cols], axis=0)                      # [2B, T]
    psel = (jnp.arange(KTABP)[None, None, :] ==
            jnp.transpose(cols2)[:, :, None]).astype(jnp.float32)      # [T, 2B, KTABP]

    # word-update mask as float [T, 2B, D] (rule half always 1.0)
    wmask = jnp.transpose(y_train[:, :, 2]).astype(jnp.float32)        # [T, B]
    wm_st = jnp.concatenate([wmask, jnp.ones_like(wmask)], axis=1)     # [T, 2B]
    wm = jnp.broadcast_to(wm_st[:, :, None], (T, S, D)).astype(jnp.float32)

    # batch-flattened attention memory: pre-scaled keys + additive mask bias
    kT = (jnp.transpose(x_enc_k.reshape(Bn * Lx, D))
          * jnp.float32(1.0 / math.sqrt(D)))                           # [D, B*Lx]
    vals_flat = x_enc.reshape(Bn * Lx, 2 * D)                          # [B*Lx, 2D]
    row_b = jnp.arange(S) % Bn
    col_b = jnp.arange(Bn * Lx) // Lx
    blocked = ((row_b[:, None] != col_b[None, :]) |
               (x_mask.reshape(-1)[None, :] > 0))
    attn_bias = jnp.where(blocked, ATTN_NEG, 0.0).astype(jnp.float32)  # [2B, B*Lx]

    hc0 = jnp.stack([jnp.concatenate([dec_h0, dec_h0], axis=0),
                     jnp.concatenate([dec_c0, dec_c0], axis=0)], axis=0)  # [2, 2B, D]

    tensor_inputs = [eg_st, psel, wm, kT, attn_bias, vals_flat, hc0,
                     wg, wctx_t, wro_t]

    kernel = _make_kernel(T, Bn, D, KTABP)

    grid_spec = pltpu.PrefetchScalarGridSpec(
        num_scalar_prefetch=0,
        grid=(1,),
        in_specs=[_full_spec(a) for a in tensor_inputs],
        out_specs=pl.BlockSpec((KTABP, V), lambda *_: (0, 0)),
        scratch_shapes=[
            pltpu.VMEM((KTABP, D), jnp.float32),          # h table (parent + readout)
            pltpu.VMEM((KTABP, 2 * D), jnp.float32),      # ctx table
        ],
    )

    out_flat = pl.pallas_call(
        kernel,
        out_shape=jax.ShapeDtypeStruct((KTABP, V), jnp.float32),
        grid_spec=grid_spec,
        compiler_params=pltpu.CompilerParams(dimension_semantics=("arbitrary",)),
    )(*tensor_inputs)

    # rows 0:S are the initial-zero slot; rows S : S + T*S hold steps 0..T-1
    out_k = out_flat[S:S + T * S].reshape(T, S, V)
    word_part = out_k[:, :Bn, :VW]                         # word rows -> word cols
    rule_part = out_k[:, Bn:, VW:]                         # rule rows -> rule cols
    logits = jnp.transpose(jnp.concatenate([word_part, rule_part], axis=-1),
                           (1, 0, 2))                      # [B, T, V]

    # final word/rule -inf vocab masking (masked_fill_ in the PyTorch forward)
    wvm = (jnp.arange(V) < VW).astype(jnp.float32)
    sm = score_mask.astype(jnp.float32)[:, :, None]
    mask_t = wvm[None, None, :] * (1.0 - sm) + (1.0 - wvm)[None, None, :] * sm
    return jnp.where(mask_t > 0, -jnp.inf, logits)


# ------------------------- pure-JAX reference (check) ------------------------
def tree_decoder_reference(params, x_enc, x_enc_k, dec_h0, dec_c0, x_mask,
                           y_train, score_mask):
    Bn, T, _ = y_train.shape
    D = D_MODEL
    hp = lax.Precision.HIGHEST
    w_ih, w_hh = params['w_ih'], params['w_hh']
    b = params['b_ih'] + params['b_hh']
    w_ctx, w_ro = params['w_ctx'], params['w_readout']

    def lstm(x, h, c):
        g = jnp.dot(x, w_ih.T, precision=hp) + jnp.dot(h, w_hh.T, precision=hp) + b
        i = jax.nn.sigmoid(g[:, :D]); f = jax.nn.sigmoid(g[:, D:2 * D])
        gg = jnp.tanh(g[:, 2 * D:3 * D]); o = jax.nn.sigmoid(g[:, 3 * D:])
        c2 = f * c + i * gg
        return o * jnp.tanh(c2), c2

    def attn(q):
        s = jnp.einsum('bd,bld->bl', q, x_enc_k, precision=hp) / math.sqrt(D)
        s = jnp.where(x_mask > 0, ATTN_NEG, s)
        p = jax.nn.softmax(s, axis=-1)
        return jnp.einsum('bl,blv->bv', p, x_enc, precision=hp)

    trg_emb = params['emb'][y_train[:, :, 0]]
    rule_h = word_h = dec_h0
    rule_c = word_c = dec_c0
    rule_feed = word_feed = jnp.zeros((Bn, 2 * D), jnp.float32)
    all_state = [jnp.zeros((Bn, D), jnp.float32)]
    rule_pres, word_pres = [], []
    for t in range(T):
        y_emb = trg_emb[:, t, :]
        stacked = jnp.stack(all_state, axis=1)
        parent = jnp.take_along_axis(stacked, y_train[:, t, 1][:, None, None], axis=1)[:, 0, :]
        wm = y_train[:, t, 2].astype(jnp.float32)[:, None]
        wh, wc = lstm(jnp.concatenate([y_emb, parent, word_feed], 1), word_h, word_c)
        wh = wh * wm + word_h * (1 - wm)
        wc = wc * wm + word_c * (1 - wm)
        rh, rc = lstm(jnp.concatenate([y_emb, parent, rule_feed], 1), rule_h, rule_c)
        rule_ctx, word_ctx = attn(rh), attn(wh)
        rule_pres.append(jnp.tanh(jnp.dot(jnp.concatenate([rh, rule_ctx], 1), w_ctx.T, precision=hp)))
        word_pres.append(jnp.tanh(jnp.dot(jnp.concatenate([wh, word_ctx], 1), w_ctx.T, precision=hp)))
        rule_feed, word_feed = rule_ctx, word_ctx
        rule_h, rule_c, word_h, word_c = rh, rc, wh, wc
        all_state.append(rh)
    rule_ro = jnp.dot(jnp.stack(rule_pres), w_ro.T, precision=hp)[:, :, VW:]
    word_ro = jnp.dot(jnp.stack(word_pres), w_ro.T, precision=hp)[:, :, :VW]
    logits = jnp.concatenate([word_ro, rule_ro], axis=2).transpose(1, 0, 2)
    wvm = (jnp.arange(VOCAB) < VW).astype(jnp.float32)
    sm = score_mask.astype(jnp.float32)[:, :, None]
    mask_t = wvm * (1 - sm) + (1 - wvm) * sm
    return jnp.where(mask_t > 0, -jnp.inf, logits)


# ---------------------------- deterministic params ---------------------------
def init_params(key):
    ks = jax.random.split(key, 8)

    def u(k, shape, scale):
        return jax.random.uniform(k, shape, jnp.float32, -1.0, 1.0) * scale

    inp = D_WORD + 3 * D_MODEL
    s = 1.0 / math.sqrt(D_MODEL)
    emb = u(ks[0], (VOCAB, D_WORD), 0.1).at[PAD_ID].set(0.0)   # padding_idx
    return dict(
        emb=emb,
        w_ih=u(ks[1], (4 * D_MODEL, inp), s),
        w_hh=u(ks[2], (4 * D_MODEL, D_MODEL), s),
        b_ih=u(ks[3], (4 * D_MODEL,), s),
        b_hh=u(ks[4], (4 * D_MODEL,), s),
        w_ctx=u(ks[5], (D_MODEL, 3 * D_MODEL), 0.1),           # ctx_to_readout (no bias)
        w_readout=u(ks[6], (VOCAB, D_MODEL), 0.1),             # readout (no bias)
    )


if __name__ == "__main__":
    key = jax.random.PRNGKey(0)
    kp, *ks = jax.random.split(key, 10)
    params = init_params(kp)

    x_enc = jax.random.normal(ks[0], (B, L_X, 2 * D_MODEL), jnp.float32)
    x_enc_k = jax.random.normal(ks[1], (B, L_X, D_MODEL), jnp.float32)
    h0 = jax.random.normal(ks[2], (B, D_MODEL), jnp.float32) * 0.1
    c0 = jax.random.normal(ks[3], (B, D_MODEL), jnp.float32) * 0.1
    x_mask = jnp.zeros((B, L_X), jnp.int32).at[1, L_X - 2:].set(1)   # pad mask

    tok = jax.random.randint(ks[4], (B, T_Y), 1, VOCAB)
    parent = jnp.minimum(jax.random.randint(ks[5], (B, T_Y), 0, T_Y),
                         jnp.arange(T_Y)[None, :])                    # parent idx <= t
    wmask = jax.random.randint(ks[6], (B, T_Y), 0, 2)
    y_train = jnp.stack([tok, parent, wmask], axis=2).astype(jnp.int32)  # [B, T, 3]
    score_mask = jax.random.randint(ks[7], (B, T_Y), 0, 2)

    out = tree_decoder_forward(params, x_enc, x_enc_k, h0, c0, x_mask, y_train, score_mask)
    out = jax.block_until_ready(out)

    ref = tree_decoder_reference(params, x_enc, x_enc_k, h0, c0, x_mask, y_train, score_mask)
    finite = jnp.isfinite(ref)
    assert out.shape == (B, T_Y, VOCAB)
    assert bool(jnp.all(jnp.isfinite(out) == finite)), "-inf mask pattern mismatch"
    max_diff = float(jnp.max(jnp.abs(jnp.where(finite, out - ref, 0.0))))
    assert max_diff < 1e-2, f"max diff vs reference: {max_diff}"

    print("KERNEL_OK")
</pallas_src>

<mosaic_0001>
module attributes {stable_mosaic.version = 11 : i64} {
  func.func @kernel(%arg0: i32, %arg1: memref<8x4x128xf32, #tpu.memory_space<vmem>>, %arg2: memref<8x4x40xf32, #tpu.memory_space<vmem>>, %arg3: memref<8x4x32xf32, #tpu.memory_space<vmem>>, %arg4: memref<32x16xf32, #tpu.memory_space<vmem>>, %arg5: memref<4x16xf32, #tpu.memory_space<vmem>>, %arg6: memref<16x64xf32, #tpu.memory_space<vmem>>, %arg7: memref<2x4x32xf32, #tpu.memory_space<vmem>>, %arg8: memref<128x128xf32, #tpu.memory_space<vmem>>, %arg9: memref<96x32xf32, #tpu.memory_space<vmem>>, %arg10: memref<32x128xf32, #tpu.memory_space<vmem>>, %arg11: memref<40x128xf32, #tpu.memory_space<vmem>>, %arg12: memref<40x32xf32, #tpu.memory_space<vmem>>, %arg13: memref<40x64xf32, #tpu.memory_space<vmem>>) attributes {dimension_semantics = [#tpu.dimension_semantics<arbitrary>], iteration_bounds = array<i64: 1>, scalar_prefetch = 0 : i64, scratch_operands = 2 : i64, tpu.core_type = #tpu.core_type<tc>, window_params = [{pipeline_mode = #tpu.pipeline_mode<synchronous>, transform_indices = @transform_0, window_bounds = array<i64: 8, 4, 128>}, {pipeline_mode = #tpu.pipeline_mode<synchronous>, transform_indices = @transform_1, window_bounds = array<i64: 8, 4, 40>}, {pipeline_mode = #tpu.pipeline_mode<synchronous>, transform_indices = @transform_2, window_bounds = array<i64: 8, 4, 32>}, {pipeline_mode = #tpu.pipeline_mode<synchronous>, transform_indices = @transform_3, window_bounds = array<i64: 32, 16>}, {pipeline_mode = #tpu.pipeline_mode<synchronous>, transform_indices = @transform_4, window_bounds = array<i64: 4, 16>}, {pipeline_mode = #tpu.pipeline_mode<synchronous>, transform_indices = @transform_5, window_bounds = array<i64: 16, 64>}, {pipeline_mode = #tpu.pipeline_mode<synchronous>, transform_indices = @transform_6, window_bounds = array<i64: 2, 4, 32>}, {pipeline_mode = #tpu.pipeline_mode<synchronous>, transform_indices = @transform_7, window_bounds = array<i64: 128, 128>}, {pipeline_mode = #tpu.pipeline_mode<synchronous>, transform_indices = @transform_8, window_bounds = array<i64: 96, 32>}, {pipeline_mode = #tpu.pipeline_mode<synchronous>, transform_indices = @transform_9, window_bounds = array<i64: 32, 128>}, {pipeline_mode = #tpu.pipeline_mode<synchronous>, transform_indices = @transform_10, window_bounds = array<i64: 40, 128>}]} {
    %cst = arith.constant 0.000000e+00 : f32
    %0 = vector.broadcast %cst : f32 to vector<40x32xf32>
    %c0 = arith.constant 0 : index
    %c0_0 = arith.constant 0 : index
    %1 = vector.load %arg12[%c0, %c0_0] : memref<40x32xf32, #tpu.memory_space<vmem>>, vector<40x32xf32>
    tpu.vector_store %arg12[%c0, %c0_0], %0 {strides = array<i32>} : memref<40x32xf32, #tpu.memory_space<vmem>>, vector<40x32xf32>,
    %cst_1 = arith.constant 0.000000e+00 : f32
    %2 = vector.broadcast %cst_1 : f32 to vector<40x64xf32>
    %c0_2 = arith.constant 0 : index
    %c0_3 = arith.constant 0 : index
    %3 = vector.load %arg13[%c0_2, %c0_3] : memref<40x64xf32, #tpu.memory_space<vmem>>, vector<40x64xf32>
    tpu.vector_store %arg13[%c0_2, %c0_3], %2 {strides = array<i32>} : memref<40x64xf32, #tpu.memory_space<vmem>>, vector<40x64xf32>,
    %c0_4 = arith.constant 0 : index
    %c0_5 = arith.constant 0 : index
    %4 = vector.load %arg4[%c0_4, %c0_5] : memref<32x16xf32, #tpu.memory_space<vmem>>, vector<32x16xf32>
    %c0_6 = arith.constant 0 : index
    %c0_7 = arith.constant 0 : index
    %5 = vector.load %arg5[%c0_6, %c0_7] : memref<4x16xf32, #tpu.memory_space<vmem>>, vector<4x16xf32>
    %c0_8 = arith.constant 0 : index
    %c0_9 = arith.constant 0 : index
    %6 = vector.load %arg6[%c0_8, %c0_9] : memref<16x64xf32, #tpu.memory_space<vmem>>, vector<16x64xf32>
    %c0_10 = arith.constant 0 : index
    %c0_11 = arith.constant 0 : index
    %c0_12 = arith.constant 0 : index
    %7 = vector.load %arg7[%c0_10, %c0_11, %c0_12] : memref<2x4x32xf32, #tpu.memory_space<vmem>>, vector<1x4x32xf32>
    %8 = vector.shape_cast %7 : vector<1x4x32xf32> to vector<4x32xf32>
    %c1 = arith.constant 1 : index
    %c0_13 = arith.constant 0 : index
    %c0_14 = arith.constant 0 : index
    %9 = vector.load %arg7[%c1, %c0_13, %c0_14] : memref<2x4x32xf32, #tpu.memory_space<vmem>>, vector<1x4x32xf32>
    %10 = vector.shape_cast %9 : vector<1x4x32xf32> to vector<4x32xf32>
    %cst_15 = arith.constant 0.000000e+00 : f32
    %11 = vector.broadcast %cst_15 : f32 to vector<4x64xf32>
    %c0_16 = arith.constant 0 : index
    %c0_17 = arith.constant 0 : index
    %c0_18 = arith.constant 0 : index
    %12 = vector.load %arg2[%c0_16, %c0_17, %c0_18] : memref<8x4x40xf32, #tpu.memory_space<vmem>>, vector<1x4x40xf32>
    %13 = vector.shape_cast %12 : vector<1x4x40xf32> to vector<4x40xf32>
    %c0_19 = arith.constant 0 : index
    %c0_20 = arith.constant 0 : index
    %14 = vector.load %arg12[%c0_19, %c0_20] : memref<40x32xf32, #tpu.memory_space<vmem>>, vector<40x32xf32>
    %cst_21 = arith.constant dense<0.000000e+00> : vector<4x32xf32>
    %15 = tpu.matmul %13, %14, %cst_21 {dimension_numbers = #tpu.dot_dimension_numbers<[1], [0], [0], [1], [0, 0, 1, 1], [], []>} : vector<4x40xf32>, vector<40x32xf32>, vector<4x32xf32> -> vector<4x32xf32>
    %16 = tpu.concatenate %15, %11, %8 in 1 : vector<4x32xf32>, vector<4x64xf32>, vector<4x32xf32> -> vector<4x128xf32>
    %c0_22 = arith.constant 0 : index
    %c0_23 = arith.constant 0 : index
    %c0_24 = arith.constant 0 : index
    %17 = vector.load %arg1[%c0_22, %c0_23, %c0_24] : memref<8x4x128xf32, #tpu.memory_space<vmem>>, vector<1x4x128xf32>
    %18 = vector.shape_cast %17 : vector<1x4x128xf32> to vector<4x128xf32>
    %c0_25 = arith.constant 0 : index
    %c0_26 = arith.constant 0 : index
    %19 = vector.load %arg8[%c0_25, %c0_26] : memref<128x128xf32, #tpu.memory_space<vmem>>, vector<128x128xf32>
    %cst_27 = arith.constant dense<0.000000e+00> : vector<4x128xf32>
    %20 = tpu.matmul %16, %19, %cst_27 {dimension_numbers = #tpu.dot_dimension_numbers<[1], [0], [0], [1], [0, 0, 1, 1], [], []>} : vector<4x128xf32>, vector<128x128xf32>, vector<4x128xf32> -> vector<4x128xf32>
    %21 = arith.addf %18, %20 : vector<4x128xf32>
    %22 = arith.negf %21 : vector<4x128xf32>
    %23 = math.exp %22 : vector<4x128xf32>
    %cst_28 = arith.constant 1.000000e+00 : f32
    %24 = vector.broadcast %cst_28 : f32 to vector<4x128xf32>
    %25 = arith.addf %24, %23 : vector<4x128xf32>
    %26 = arith.divf %24, %25 : vector<4x128xf32>
    %27 = vector.extract_strided_slice %26 {offsets = [0, 0], sizes = [4, 32], strides = [1, 1]} : vector<4x128xf32> to vector<4x32xf32>
    %28 = vector.extract_strided_slice %26 {offsets = [0, 32], sizes = [4, 32], strides = [1, 1]} : vector<4x128xf32> to vector<4x32xf32>
    %29 = vector.extract_strided_slice %26 {offsets = [0, 96], sizes = [4, 32], strides = [1, 1]} : vector<4x128xf32> to vector<4x32xf32>
    %30 = vector.extract_strided_slice %21 {offsets = [0, 64], sizes = [4, 32], strides = [1, 1]} : vector<4x128xf32> to vector<4x32xf32>
    %31 = math.tanh %30 : vector<4x32xf32>
    %32 = arith.mulf %28, %10 : vector<4x32xf32>
    %33 = arith.mulf %27, %31 : vector<4x32xf32>
    %34 = arith.addf %32, %33 : vector<4x32xf32>
    %35 = math.tanh %34 : vector<4x32xf32>
    %36 = arith.mulf %29, %35 : vector<4x32xf32>
    %c0_29 = arith.constant 0 : index
    %c0_30 = arith.constant 0 : index
    %c0_31 = arith.constant 0 : index
    %37 = vector.load %arg3[%c0_29, %c0_30, %c0_31] : memref<8x4x32xf32, #tpu.memory_space<vmem>>, vector<1x4x32xf32>
    %38 = vector.shape_cast %37 : vector<1x4x32xf32> to vector<4x32xf32>
    %cst_32 = arith.constant 1.000000e+00 : f32
    %39 = vector.broadcast %cst_32 : f32 to vector<4x32xf32>
    %40 = arith.subf %39, %38 : vector<4x32xf32>
    %41 = arith.mulf %36, %38 : vector<4x32xf32>
    %42 = arith.mulf %8, %40 : vector<4x32xf32>
    %43 = arith.addf %41, %42 : vector<4x32xf32>
    %44 = arith.mulf %34, %38 : vector<4x32xf32>
    %45 = arith.mulf %10, %40 : vector<4x32xf32>
    %46 = arith.addf %44, %45 : vector<4x32xf32>
    %cst_33 = arith.constant dense<0.000000e+00> : vector<4x16xf32>
    %47 = tpu.matmul %43, %4, %cst_33 {dimension_numbers = #tpu.dot_dimension_numbers<[1], [0], [0], [1], [0, 0, 1, 1], [], []>} : vector<4x32xf32>, vector<32x16xf32>, vector<4x16xf32> -> vector<4x16xf32>
    %48 = arith.addf %47, %5 : vector<4x16xf32>
    %49 = math.exp %48 : vector<4x16xf32>
    %cst_34 = arith.constant dense<0.000000e+00> : vector<4xf32>
    %50 = vector.multi_reduction <add>, %49, %cst_34 [1] : vector<4x16xf32> to vector<4xf32>
    %51 = vector.shape_cast %50 : vector<4xf32> to vector<4x1xf32>
    %52 = tpu.reciprocal %51 {approx = true} : vector<4x1xf32> -> vector<4x1xf32>
    %53 = vector.broadcast %52 : vector<4x1xf32> to vector<4x16xf32>
    %54 = arith.mulf %49, %53 : vector<4x16xf32>
    %cst_35 = arith.constant dense<0.000000e+00> : vector<4x64xf32>
    %55 = tpu.matmul %54, %6, %cst_35 {dimension_numbers = #tpu.dot_dimension_numbers<[1], [0], [0], [1], [0, 0, 1, 1], [], []>} : vector<4x16xf32>, vector<16x64xf32>, vector<4x64xf32> -> vector<4x64xf32>
    %c4 = arith.constant 4 : index
    %c0_36 = arith.constant 0 : index
    %56 = vector.load %arg12[%c4, %c0_36] : memref<40x32xf32, #tpu.memory_space<vmem>>, vector<4x32xf32>
    tpu.vector_store %arg12[%c4, %c0_36], %43 {strides = array<i32>} : memref<40x32xf32, #tpu.memory_space<vmem>>, vector<4x32xf32>,
    %c4_37 = arith.constant 4 : index
    %c0_38 = arith.constant 0 : index
    %57 = vector.load %arg13[%c4_37, %c0_38] : memref<40x64xf32, #tpu.memory_space<vmem>>, vector<4x64xf32>
    tpu.vector_store %arg13[%c4_37, %c0_38], %55 {strides = array<i32>} : memref<40x64xf32, #tpu.memory_space<vmem>>, vector<4x64xf32>,
    %c1_39 = arith.constant 1 : index
    %c0_40 = arith.constant 0 : index
    %c0_41 = arith.constant 0 : index
    %58 = vector.load %arg2[%c1_39, %c0_40, %c0_41] : memref<8x4x40xf32, #tpu.memory_space<vmem>>, vector<1x4x40xf32>
    %59 = vector.shape_cast %58 : vector<1x4x40xf32> to vector<4x40xf32>
    %c0_42 = arith.constant 0 : index
    %c0_43 = arith.constant 0 : index
    %60 = vector.load %arg12[%c0_42, %c0_43] : memref<40x32xf32, #tpu.memory_space<vmem>>, vector<40x32xf32>
    %cst_44 = arith.constant dense<0.000000e+00> : vector<4x32xf32>
    %61 = tpu.matmul %59, %60, %cst_44 {dimension_numbers = #tpu.dot_dimension_numbers<[1], [0], [0], [1], [0, 0, 1, 1], [], []>} : vector<4x40xf32>, vector<40x32xf32>, vector<4x32xf32> -> vector<4x32xf32>
    %62 = tpu.concatenate %61, %55, %43 in 1 : vector<4x32xf32>, vector<4x64xf32>, vector<4x32xf32> -> vector<4x128xf32>
    %c1_45 = arith.constant 1 : index
    %c0_46 = arith.constant 0 : index
    %c0_47 = arith.constant 0 : index
    %63 = vector.load %arg1[%c1_45, %c0_46, %c0_47] : memref<8x4x128xf32, #tpu.memory_space<vmem>>, vector<1x4x128xf32>
    %64 = vector.shape_cast %63 : vector<1x4x128xf32> to vector<4x128xf32>
    %c0_48 = arith.constant 0 : index
    %c0_49 = arith.constant 0 : index
    %65 = vector.load %arg8[%c0_48, %c0_49] : memref<128x128xf32, #tpu.memory_space<vmem>>, vector<128x128xf32>
    %cst_50 = arith.constant dense<0.000000e+00> : vector<4x128xf32>
    %66 = tpu.matmul %62, %65, %cst_50 {dimension_numbers = #tpu.dot_dimension_numbers<[1], [0], [0], [1], [0, 0, 1, 1], [], []>} : vector<4x128xf32>, vector<128x128xf32>, vector<4x128xf32> -> vector<4x128xf32>
    %67 = arith.addf %64, %66 : vector<4x128xf32>
    %68 = arith.negf %67 : vector<4x128xf32>
    %69 = math.exp %68 : vector<4x128xf32>
    %cst_51 = arith.constant 1.000000e+00 : f32
    %70 = vector.broadcast %cst_51 : f32 to vector<4x128xf32>
    %71 = arith.addf %70, %69 : vector<4x128xf32>
    %72 = arith.divf %70, %71 : vector<4x128xf32>
    %73 = vector.extract_strided_slice %72 {offsets = [0, 0], sizes = [4, 32], strides = [1, 1]} : vector<4x128xf32> to vector<4x32xf32>
    %74 = vector.extract_strided_slice %72 {offsets = [0, 32], sizes = [4, 32], strides = [1, 1]} : vector<4x128xf32> to vector<4x32xf32>
    %75 = vector.extract_strided_slice %72 {offsets = [0, 96], sizes = [4, 32], strides = [1, 1]} : vector<4x128xf32> to vector<4x32xf32>
    %76 = vector.extract_strided_slice %67 {offsets = [0, 64], sizes = [4, 32], strides = [1, 1]} : vector<4x128xf32> to vector<4x32xf32>
    %77 = math.tanh %76 : vector<4x32xf32>
    %78 = arith.mulf %74, %46 : vector<4x32xf32>
    %79 = arith.mulf %73, %77 : vector<4x32xf32>
    %80 = arith.addf %78, %79 : vector<4x32xf32>
    %81 = math.tanh %80 : vector<4x32xf32>
    %82 = arith.mulf %75, %81 : vector<4x32xf32>
    %c1_52 = arith.constant 1 : index
    %c0_53 = arith.constant 0 : index
    %c0_54 = arith.constant 0 : index
    %83 = vector.load %arg3[%c1_52, %c0_53, %c0_54] : memref<8x4x32xf32, #tpu.memory_space<vmem>>, vector<1x4x32xf32>
    %84 = vector.shape_cast %83 : vector<1x4x32xf32> to vector<4x32xf32>
    %cst_55 = arith.constant 1.000000e+00 : f32
    %85 = vector.broadcast %cst_55 : f32 to vector<4x32xf32>
    %86 = arith.subf %85, %84 : vector<4x32xf32>
    %87 = arith.mulf %82, %84 : vector<4x32xf32>
    %88 = arith.mulf %43, %86 : vector<4x32xf32>
    %89 = arith.addf %87, %88 : vector<4x32xf32>
    %90 = arith.mulf %80, %84 : vector<4x32xf32>
    %91 = arith.mulf %46, %86 : vector<4x32xf32>
    %92 = arith.addf %90, %91 : vector<4x32xf32>
    %cst_56 = arith.constant dense<0.000000e+00> : vector<4x16xf32>
    %93 = tpu.matmul %89, %4, %cst_56 {dimension_numbers = #tpu.dot_dimension_numbers<[1], [0], [0], [1], [0, 0, 1, 1], [], []>} : vector<4x32xf32>, vector<32x16xf32>, vector<4x16xf32> -> vector<4x16xf32>
    %94 = arith.addf %93, %5 : vector<4x16xf32>
    %95 = math.exp %94 : vector<4x16xf32>
    %cst_57 = arith.constant dense<0.000000e+00> : vector<4xf32>
    %96 = vector.multi_reduction <add>, %95, %cst_57 [1] : vector<4x16xf32> to vector<4xf32>
    %97 = vector.shape_cast %96 : vector<4xf32> to vector<4x1xf32>
    %98 = tpu.reciprocal %97 {approx = true} : vector<4x1xf32> -> vector<4x1xf32>
    %99 = vector.broadcast %98 : vector<4x1xf32> to vector<4x16xf32>
    %100 = arith.mulf %95, %99 : vector<4x16xf32>
    %cst_58 = arith.constant dense<0.000000e+00> : vector<4x64xf32>
    %101 = tpu.matmul %100, %6, %cst_58 {dimension_numbers = #tpu.dot_dimension_numbers<[1], [0], [0], [1], [0, 0, 1, 1], [], []>} : vector<4x16xf32>, vector<16x64xf32>, vector<4x64xf32> -> vector<4x64xf32>
    %c8 = arith.constant 8 : index
    %c0_59 = arith.constant 0 : index
    %102 = vector.load %arg12[%c8, %c0_59] : memref<40x32xf32, #tpu.memory_space<vmem>>, vector<4x32xf32>
    tpu.vector_store %arg12[%c8, %c0_59], %89 {strides = array<i32>} : memref<40x32xf32, #tpu.memory_space<vmem>>, vector<4x32xf32>,
    %c8_60 = arith.constant 8 : index
    %c0_61 = arith.constant 0 : index
    %103 = vector.load %arg13[%c8_60, %c0_61] : memref<40x64xf32, #tpu.memory_space<vmem>>, vector<4x64xf32>
    tpu.vector_store %arg13[%c8_60, %c0_61], %101 {strides = array<i32>} : memref<40x64xf32, #tpu.memory_space<vmem>>, vector<4x64xf32>,
    %c2 = arith.constant 2 : index
    %c0_62 = arith.constant 0 : index
    %c0_63 = arith.constant 0 : index
    %104 = vector.load %arg2[%c2, %c0_62, %c0_63] : memref<8x4x40xf32, #tpu.memory_space<vmem>>, vector<1x4x40xf32>
    %105 = vector.shape_cast %104 : vector<1x4x40xf32> to vector<4x40xf32>
    %c0_64 = arith.constant 0 : index
    %c0_65 = arith.constant 0 : index
    %106 = vector.load %arg12[%c0_64, %c0_65] : memref<40x32xf32, #tpu.memory_space<vmem>>, vector<40x32xf32>
    %cst_66 = arith.constant dense<0.000000e+00> : vector<4x32xf32>
    %107 = tpu.matmul %105, %106, %cst_66 {dimension_numbers = #tpu.dot_dimension_numbers<[1], [0], [0], [1], [0, 0, 1, 1], [], []>} : vector<4x40xf32>, vector<40x32xf32>, vector<4x32xf32> -> vector<4x32xf32>
    %108 = tpu.concatenate %107, %101, %89 in 1 : vector<4x32xf32>, vector<4x64xf32>, vector<4x32xf32> -> vector<4x128xf32>
    %c2_67 = arith.constant 2 : index
    %c0_68 = arith.constant 0 : index
    %c0_69 = arith.constant 0 : index
    %109 = vector.load %arg1[%c2_67, %c0_68, %c0_69] : memref<8x4x128xf32, #tpu.memory_space<vmem>>, vector<1x4x128xf32>
    %110 = vector.shape_cast %109 : vector<1x4x128xf32> to vector<4x128xf32>
    %c0_70 = arith.constant 0 : index
    %c0_71 = arith.constant 0 : index
    %111 = vector.load %arg8[%c0_70, %c0_71] : memref<128x128xf32, #tpu.memory_space<vmem>>, vector<128x128xf32>
    %cst_72 = arith.constant dense<0.000000e+00> : vector<4x128xf32>
    %112 = tpu.matmul %108, %111, %cst_72 {dimension_numbers = #tpu.dot_dimension_numbers<[1], [0], [0], [1], [0, 0, 1, 1], [], []>} : vector<4x128xf32>, vector<128x128xf32>, vector<4x128xf32> -> vector<4x128xf32>
    %113 = arith.addf %110, %112 : vector<4x128xf32>
    %114 = arith.negf %113 : vector<4x128xf32>
    %115 = math.exp %114 : vector<4x128xf32>
    %cst_73 = arith.constant 1.000000e+00 : f32
    %116 = vector.broadcast %cst_73 : f32 to vector<4x128xf32>
    %117 = arith.addf %116, %115 : vector<4x128xf32>
    %118 = arith.divf %116, %117 : vector<4x128xf32>
    %119 = vector.extract_strided_slice %118 {offsets = [0, 0], sizes = [4, 32], strides = [1, 1]} : vector<4x128xf32> to vector<4x32xf32>
    %120 = vector.extract_strided_slice %118 {offsets = [0, 32], sizes = [4, 32], strides = [1, 1]} : vector<4x128xf32> to vector<4x32xf32>
    %121 = vector.extract_strided_slice %118 {offsets = [0, 96], sizes = [4, 32], strides = [1, 1]} : vector<4x128xf32> to vector<4x32xf32>
    %122 = vector.extract_strided_slice %113 {offsets = [0, 64], sizes = [4, 32], strides = [1, 1]} : vector<4x128xf32> to vector<4x32xf32>
    %123 = math.tanh %122 : vector<4x32xf32>
    %124 = arith.mulf %120, %92 : vector<4x32xf32>
    %125 = arith.mulf %119, %123 : vector<4x32xf32>
    %126 = arith.addf %124, %125 : vector<4x32xf32>
    %127 = math.tanh %126 : vector<4x32xf32>
    %128 = arith.mulf %121, %127 : vector<4x32xf32>
    %c2_74 = arith.constant 2 : index
    %c0_75 = arith.constant 0 : index
    %c0_76 = arith.constant 0 : index
    %129 = vector.load %arg3[%c2_74, %c0_75, %c0_76] : memref<8x4x32xf32, #tpu.memory_space<vmem>>, vector<1x4x32xf32>
    %130 = vector.shape_cast %129 : vector<1x4x32xf32> to vector<4x32xf32>
    %cst_77 = arith.constant 1.000000e+00 : f32
    %131 = vector.broadcast %cst_77 : f32 to vector<4x32xf32>
    %132 = arith.subf %131, %130 : vector<4x32xf32>
    %133 = arith.mulf %128, %130 : vector<4x32xf32>
    %134 = arith.mulf %89, %132 : vector<4x32xf32>
    %135 = arith.addf %133, %134 : vector<4x32xf32>
    %136 = arith.mulf %126, %130 : vector<4x32xf32>
    %137 = arith.mulf %92, %132 : vector<4x32xf32>
    %138 = arith.addf %136, %137 : vector<4x32xf32>
    %cst_78 = arith.constant dense<0.000000e+00> : vector<4x16xf32>
    %139 = tpu.matmul %135, %4, %cst_78 {dimension_numbers = #tpu.dot_dimension_numbers<[1], [0], [0], [1], [0, 0, 1, 1], [], []>} : vector<4x32xf32>, vector<32x16xf32>, vector<4x16xf32> -> vector<4x16xf32>
    %140 = arith.addf %139, %5 : vector<4x16xf32>
    %141 = math.exp %140 : vector<4x16xf32>
    %cst_79 = arith.constant dense<0.000000e+00> : vector<4xf32>
    %142 = vector.multi_reduction <add>, %141, %cst_79 [1] : vector<4x16xf32> to vector<4xf32>
    %143 = vector.shape_cast %142 : vector<4xf32> to vector<4x1xf32>
    %144 = tpu.reciprocal %143 {approx = true} : vector<4x1xf32> -> vector<4x1xf32>
    %145 = vector.broadcast %144 : vector<4x1xf32> to vector<4x16xf32>
    %146 = arith.mulf %141, %145 : vector<4x16xf32>
    %cst_80 = arith.constant dense<0.000000e+00> : vector<4x64xf32>
    %147 = tpu.matmul %146, %6, %cst_80 {dimension_numbers = #tpu.dot_dimension_numbers<[1], [0], [0], [1], [0, 0, 1, 1], [], []>} : vector<4x16xf32>, vector<16x64xf32>, vector<4x64xf32> -> vector<4x64xf32>
    %c12 = arith.constant 12 : index
    %c0_81 = arith.constant 0 : index
    %148 = vector.load %arg12[%c12, %c0_81] : memref<40x32xf32, #tpu.memory_space<vmem>>, vector<4x32xf32>
    tpu.vector_store %arg12[%c12, %c0_81], %135 {strides = array<i32>} : memref<40x32xf32, #tpu.memory_space<vmem>>, vector<4x32xf32>,
    %c12_82 = arith.constant 12 : index
    %c0_83 = arith.constant 0 : index
    %149 = vector.load %arg13[%c12_82, %c0_83] : memref<40x64xf32, #tpu.memory_space<vmem>>, vector<4x64xf32>
    tpu.vector_store %arg13[%c12_82, %c0_83], %147 {strides = array<i32>} : memref<40x64xf32, #tpu.memory_space<vmem>>, vector<4x64xf32>,
    %c3 = arith.constant 3 : index
    %c0_84 = arith.constant 0 : index
    %c0_85 = arith.constant 0 : index
    %150 = vector.load %arg2[%c3, %c0_84, %c0_85] : memref<8x4x40xf32, #tpu.memory_space<vmem>>, vector<1x4x40xf32>
    %151 = vector.shape_cast %150 : vector<1x4x40xf32> to vector<4x40xf32>
    %c0_86 = arith.constant 0 : index
    %c0_87 = arith.constant 0 : index
    %152 = vector.load %arg12[%c0_86, %c0_87] : memref<40x32xf32, #tpu.memory_space<vmem>>, vector<40x32xf32>
    %cst_88 = arith.constant dense<0.000000e+00> : vector<4x32xf32>
    %153 = tpu.matmul %151, %152, %cst_88 {dimension_numbers = #tpu.dot_dimension_numbers<[1], [0], [0], [1], [0, 0, 1, 1], [], []>} : vector<4x40xf32>, vector<40x32xf32>, vector<4x32xf32> -> vector<4x32xf32>
    %154 = tpu.concatenate %153, %147, %135 in 1 : vector<4x32xf32>, vector<4x64xf32>, vector<4x32xf32> -> vector<4x128xf32>
    %c3_89 = arith.constant 3 : index
    %c0_90 = arith.constant 0 : index
    %c0_91 = arith.constant 0 : index
    %155 = vector.load %arg1[%c3_89, %c0_90, %c0_91] : memref<8x4x128xf32, #tpu.memory_space<vmem>>, vector<1x4x128xf32>
    %156 = vector.shape_cast %155 : vector<1x4x128xf32> to vector<4x128xf32>
    %c0_92 = arith.constant 0 : index
    %c0_93 = arith.constant 0 : index
    %157 = vector.load %arg8[%c0_92, %c0_93] : memref<128x128xf32, #tpu.memory_space<vmem>>, vector<128x128xf32>
    %cst_94 = arith.constant dense<0.000000e+00> : vector<4x128xf32>
    %158 = tpu.matmul %154, %157, %cst_94 {dimension_numbers = #tpu.dot_dimension_numbers<[1], [0], [0], [1], [0, 0, 1, 1], [], []>} : vector<4x128xf32>, vector<128x128xf32>, vector<4x128xf32> -> vector<4x128xf32>
    %159 = arith.addf %156, %158 : vector<4x128xf32>
    %160 = arith.negf %159 : vector<4x128xf32>
    %161 = math.exp %160 : vector<4x128xf32>
    %cst_95 = arith.constant 1.000000e+00 : f32
    %162 = vector.broadcast %cst_95 : f32 to vector<4x128xf32>
    %163 = arith.addf %162, %161 : vector<4x128xf32>
    %164 = arith.divf %162, %163 : vector<4x128xf32>
    %165 = vector.extract_strided_slice %164 {offsets = [0, 0], sizes = [4, 32], strides = [1, 1]} : vector<4x128xf32> to vector<4x32xf32>
    %166 = vector.extract_strided_slice %164 {offsets = [0, 32], sizes = [4, 32], strides = [1, 1]} : vector<4x128xf32> to vector<4x32xf32>
    %167 = vector.extract_strided_slice %164 {offsets = [0, 96], sizes = [4, 32], strides = [1, 1]} : vector<4x128xf32> to vector<4x32xf32>
    %168 = vector.extract_strided_slice %159 {offsets = [0, 64], sizes = [4, 32], strides = [1, 1]} : vector<4x128xf32> to vector<4x32xf32>
    %169 = math.tanh %168 : vector<4x32xf32>
    %170 = arith.mulf %166, %138 : vector<4x32xf32>
    %171 = arith.mulf %165, %169 : vector<4x32xf32>
    %172 = arith.addf %170, %171 : vector<4x32xf32>
    %173 = math.tanh %172 : vector<4x32xf32>
    %174 = arith.mulf %167, %173 : vector<4x32xf32>
    %c3_96 = arith.constant 3 : index
    %c0_97 = arith.constant 0 : index
    %c0_98 = arith.constant 0 : index
    %175 = vector.load %arg3[%c3_96, %c0_97, %c0_98] : memref<8x4x32xf32, #tpu.memory_space<vmem>>, vector<1x4x32xf32>
    %176 = vector.shape_cast %175 : vector<1x4x32xf32> to vector<4x32xf32>
    %cst_99 = arith.constant 1.000000e+00 : f32
    %177 = vector.broadcast %cst_99 : f32 to vector<4x32xf32>
    %178 = arith.subf %177, %176 : vector<4x32xf32>
    %179 = arith.mulf %174, %176 : vector<4x32xf32>
    %180 = arith.mulf %135, %178 : vector<4x32xf32>
    %181 = arith.addf %179, %180 : vector<4x32xf32>
    %182 = arith.mulf %172, %176 : vector<4x32xf32>
    %183 = arith.mulf %138, %178 : vector<4x32xf32>
    %184 = arith.addf %182, %183 : vector<4x32xf32>
    %cst_100 = arith.constant dense<0.000000e+00> : vector<4x16xf32>
    %185 = tpu.matmul %181, %4, %cst_100 {dimension_numbers = #tpu.dot_dimension_numbers<[1], [0], [0], [1], [0, 0, 1, 1], [], []>} : vector<4x32xf32>, vector<32x16xf32>, vector<4x16xf32> -> vector<4x16xf32>
    %186 = arith.addf %185, %5 : vector<4x16xf32>
    %187 = math.exp %186 : vector<4x16xf32>
    %cst_101 = arith.constant dense<0.000000e+00> : vector<4xf32>
    %188 = vector.multi_reduction <add>, %187, %cst_101 [1] : vector<4x16xf32> to vector<4xf32>
    %189 = vector.shape_cast %188 : vector<4xf32> to vector<4x1xf32>
    %190 = tpu.reciprocal %189 {approx = true} : vector<4x1xf32> -> vector<4x1xf32>
    %191 = vector.broadcast %190 : vector<4x1xf32> to vector<4x16xf32>
    %192 = arith.mulf %187, %191 : vector<4x16xf32>
    %cst_102 = arith.constant dense<0.000000e+00> : vector<4x64xf32>
    %193 = tpu.matmul %192, %6, %cst_102 {dimension_numbers = #tpu.dot_dimension_numbers<[1], [0], [0], [1], [0, 0, 1, 1], [], []>} : vector<4x16xf32>, vector<16x64xf32>, vector<4x64xf32> -> vector<4x64xf32>
    %c16 = arith.constant 16 : index
    %c0_103 = arith.constant 0 : index
    %194 = vector.load %arg12[%c16, %c0_103] : memref<40x32xf32, #tpu.memory_space<vmem>>, vector<4x32xf32>
    tpu.vector_store %arg12[%c16, %c0_103], %181 {strides = array<i32>} : memref<40x32xf32, #tpu.memory_space<vmem>>, vector<4x32xf32>,
    %c16_104 = arith.constant 16 : index
    %c0_105 = arith.constant 0 : index
    %195 = vector.load %arg13[%c16_104, %c0_105] : memref<40x64xf32, #tpu.memory_space<vmem>>, vector<4x64xf32>
    tpu.vector_store %arg13[%c16_104, %c0_105], %193 {strides = array<i32>} : memref<40x64xf32, #tpu.memory_space<vmem>>, vector<4x64xf32>,
    %c4_106 = arith.constant 4 : index
    %c0_107 = arith.constant 0 : index
    %c0_108 = arith.constant 0 : index
    %196 = vector.load %arg2[%c4_106, %c0_107, %c0_108] : memref<8x4x40xf32, #tpu.memory_space<vmem>>, vector<1x4x40xf32>
    %197 = vector.shape_cast %196 : vector<1x4x40xf32> to vector<4x40xf32>
    %c0_109 = arith.constant 0 : index
    %c0_110 = arith.constant 0 : index
    %198 = vector.load %arg12[%c0_109, %c0_110] : memref<40x32xf32, #tpu.memory_space<vmem>>, vector<40x32xf32>
    %cst_111 = arith.constant dense<0.000000e+00> : vector<4x32xf32>
    %199 = tpu.matmul %197, %198, %cst_111 {dimension_numbers = #tpu.dot_dimension_numbers<[1], [0], [0], [1], [0, 0, 1, 1], [], []>} : vector<4x40xf32>, vector<40x32xf32>, vector<4x32xf32> -> vector<4x32xf32>
    %200 = tpu.concatenate %199, %193, %181 in 1 : vector<4x32xf32>, vector<4x64xf32>, vector<4x32xf32> -> vector<4x128xf32>
    %c4_112 = arith.constant 4 : index
    %c0_113 = arith.constant 0 : index
    %c0_114 = arith.constant 0 : index
    %201 = vector.load %arg1[%c4_112, %c0_113, %c0_114] : memref<8x4x128xf32, #tpu.memory_space<vmem>>, vector<1x4x128xf32>
    %202 = vector.shape_cast %201 : vector<1x4x128xf32> to vector<4x128xf32>
    %c0_115 = arith.constant 0 : index
    %c0_116 = arith.constant 0 : index
    %203 = vector.load %arg8[%c0_115, %c0_116] : memref<128x128xf32, #tpu.memory_space<vmem>>, vector<128x128xf32>
    %cst_117 = arith.constant dense<0.000000e+00> : vector<4x128xf32>
    %204 = tpu.matmul %200, %203, %cst_117 {dimension_numbers = #tpu.dot_dimension_numbers<[1], [0], [0], [1], [0, 0, 1, 1], [], []>} : vector<4x128xf32>, vector<128x128xf32>, vector<4x128xf32> -> vector<4x128xf32>
    %205 = arith.addf %202, %204 : vector<4x128xf32>
    %206 = arith.negf %205 : vector<4x128xf32>
    %207 = math.exp %206 : vector<4x128xf32>
    %cst_118 = arith.constant 1.000000e+00 : f32
    %208 = vector.broadcast %cst_118 : f32 to vector<4x128xf32>
    %209 = arith.addf %208, %207 : vector<4x128xf32>
    %210 = arith.divf %208, %209 : vector<4x128xf32>
    %211 = vector.extract_strided_slice %210 {offsets = [0, 0], sizes = [4, 32], strides = [1, 1]} : vector<4x128xf32> to vector<4x32xf32>
    %212 = vector.extract_strided_slice %210 {offsets = [0, 32], sizes = [4, 32], strides = [1, 1]} : vector<4x128xf32> to vector<4x32xf32>
    %213 = vector.extract_strided_slice %210 {offsets = [0, 96], sizes = [4, 32], strides = [1, 1]} : vector<4x128xf32> to vector<4x32xf32>
    %214 = vector.extract_strided_slice %205 {offsets = [0, 64], sizes = [4, 32], strides = [1, 1]} : vector<4x128xf32> to vector<4x32xf32>
    %215 = math.tanh %214 : vector<4x32xf32>
    %216 = arith.mulf %212, %184 : vector<4x32xf32>
    %217 = arith.mulf %211, %215 : vector<4x32xf32>
    %218 = arith.addf %216, %217 : vector<4x32xf32>
    %219 = math.tanh %218 : vector<4x32xf32>
    %220 = arith.mulf %213, %219 : vector<4x32xf32>
    %c4_119 = arith.constant 4 : index
    %c0_120 = arith.constant 0 : index
    %c0_121 = arith.constant 0 : index
    %221 = vector.load %arg3[%c4_119, %c0_120, %c0_121] : memref<8x4x32xf32, #tpu.memory_space<vmem>>, vector<1x4x32xf32>
    %222 = vector.shape_cast %221 : vector<1x4x32xf32> to vector<4x32xf32>
    %cst_122 = arith.constant 1.000000e+00 : f32
    %223 = vector.broadcast %cst_122 : f32 to vector<4x32xf32>
    %224 = arith.subf %223, %222 : vector<4x32xf32>
    %225 = arith.mulf %220, %222 : vector<4x32xf32>
    %226 = arith.mulf %181, %224 : vector<4x32xf32>
    %227 = arith.addf %225, %226 : vector<4x32xf32>
    %228 = arith.mulf %218, %222 : vector<4x32xf32>
    %229 = arith.mulf %184, %224 : vector<4x32xf32>
    %230 = arith.addf %228, %229 : vector<4x32xf32>
    %cst_123 = arith.constant dense<0.000000e+00> : vector<4x16xf32>
    %231 = tpu.matmul %227, %4, %cst_123 {dimension_numbers = #tpu.dot_dimension_numbers<[1], [0], [0], [1], [0, 0, 1, 1], [], []>} : vector<4x32xf32>, vector<32x16xf32>, vector<4x16xf32> -> vector<4x16xf32>
    %232 = arith.addf %231, %5 : vector<4x16xf32>
    %233 = math.exp %232 : vector<4x16xf32>
    %cst_124 = arith.constant dense<0.000000e+00> : vector<4xf32>
    %234 = vector.multi_reduction <add>, %233, %cst_124 [1] : vector<4x16xf32> to vector<4xf32>
    %235 = vector.shape_cast %234 : vector<4xf32> to vector<4x1xf32>
    %236 = tpu.reciprocal %235 {approx = true} : vector<4x1xf32> -> vector<4x1xf32>
    %237 = vector.broadcast %236 : vector<4x1xf32> to vector<4x16xf32>
    %238 = arith.mulf %233, %237 : vector<4x16xf32>
    %cst_125 = arith.constant dense<0.000000e+00> : vector<4x64xf32>
    %239 = tpu.matmul %238, %6, %cst_125 {dimension_numbers = #tpu.dot_dimension_numbers<[1], [0], [0], [1], [0, 0, 1, 1], [], []>} : vector<4x16xf32>, vector<16x64xf32>, vector<4x64xf32> -> vector<4x64xf32>
    %c20 = arith.constant 20 : index
    %c0_126 = arith.constant 0 : index
    %240 = vector.load %arg12[%c20, %c0_126] : memref<40x32xf32, #tpu.memory_space<vmem>>, vector<4x32xf32>
    tpu.vector_store %arg12[%c20, %c0_126], %227 {strides = array<i32>} : memref<40x32xf32, #tpu.memory_space<vmem>>, vector<4x32xf32>,
    %c20_127 = arith.constant 20 : index
    %c0_128 = arith.constant 0 : index
    %241 = vector.load %arg13[%c20_127, %c0_128] : memref<40x64xf32, #tpu.memory_space<vmem>>, vector<4x64xf32>
    tpu.vector_store %arg13[%c20_127, %c0_128], %239 {strides = array<i32>} : memref<40x64xf32, #tpu.memory_space<vmem>>, vector<4x64xf32>,
    %c5 = arith.constant 5 : index
    %c0_129 = arith.constant 0 : index
    %c0_130 = arith.constant 0 : index
    %242 = vector.load %arg2[%c5, %c0_129, %c0_130] : memref<8x4x40xf32, #tpu.memory_space<vmem>>, vector<1x4x40xf32>
    %243 = vector.shape_cast %242 : vector<1x4x40xf32> to vector<4x40xf32>
    %c0_131 = arith.constant 0 : index
    %c0_132 = arith.constant 0 : index
    %244 = vector.load %arg12[%c0_131, %c0_132] : memref<40x32xf32, #tpu.memory_space<vmem>>, vector<40x32xf32>
    %cst_133 = arith.constant dense<0.000000e+00> : vector<4x32xf32>
    %245 = tpu.matmul %243, %244, %cst_133 {dimension_numbers = #tpu.dot_dimension_numbers<[1], [0], [0], [1], [0, 0, 1, 1], [], []>} : vector<4x40xf32>, vector<40x32xf32>, vector<4x32xf32> -> vector<4x32xf32>
    %246 = tpu.concatenate %245, %239, %227 in 1 : vector<4x32xf32>, vector<4x64xf32>, vector<4x32xf32> -> vector<4x128xf32>
    %c5_134 = arith.constant 5 : index
    %c0_135 = arith.constant 0 : index
    %c0_136 = arith.constant 0 : index
    %247 = vector.load %arg1[%c5_134, %c0_135, %c0_136] : memref<8x4x128xf32, #tpu.memory_space<vmem>>, vector<1x4x128xf32>
    %248 = vector.shape_cast %247 : vector<1x4x128xf32> to vector<4x128xf32>
    %c0_137 = arith.constant 0 : index
    %c0_138 = arith.constant 0 : index
    %249 = vector.load %arg8[%c0_137, %c0_138] : memref<128x128xf32, #tpu.memory_space<vmem>>, vector<128x128xf32>
    %cst_139 = arith.constant dense<0.000000e+00> : vector<4x128xf32>
    %250 = tpu.matmul %246, %249, %cst_139 {dimension_numbers = #tpu.dot_dimension_numbers<[1], [0], [0], [1], [0, 0, 1, 1], [], []>} : vector<4x128xf32>, vector<128x128xf32>, vector<4x128xf32> -> vector<4x128xf32>
    %251 = arith.addf %248, %250 : vector<4x128xf32>
    %252 = arith.negf %251 : vector<4x128xf32>
    %253 = math.exp %252 : vector<4x128xf32>
    %cst_140 = arith.constant 1.000000e+00 : f32
    %254 = vector.broadcast %cst_140 : f32 to vector<4x128xf32>
    %255 = arith.addf %254, %253 : vector<4x128xf32>
    %256 = arith.divf %254, %255 : vector<4x128xf32>
    %257 = vector.extract_strided_slice %256 {offsets = [0, 0], sizes = [4, 32], strides = [1, 1]} : vector<4x128xf32> to vector<4x32xf32>
    %258 = vector.extract_strided_slice %256 {offsets = [0, 32], sizes = [4, 32], strides = [1, 1]} : vector<4x128xf32> to vector<4x32xf32>
    %259 = vector.extract_strided_slice %256 {offsets = [0, 96], sizes = [4, 32], strides = [1, 1]} : vector<4x128xf32> to vector<4x32xf32>
    %260 = vector.extract_strided_slice %251 {offsets = [0, 64], sizes = [4, 32], strides = [1, 1]} : vector<4x128xf32> to vector<4x32xf32>
    %261 = math.tanh %260 : vector<4x32xf32>
    %262 = arith.mulf %258, %230 : vector<4x32xf32>
    %263 = arith.mulf %257, %261 : vector<4x32xf32>
    %264 = arith.addf %262, %263 : vector<4x32xf32>
    %265 = math.tanh %264 : vector<4x32xf32>
    %266 = arith.mulf %259, %265 : vector<4x32xf32>
    %c5_141 = arith.constant 5 : index
    %c0_142 = arith.constant 0 : index
    %c0_143 = arith.constant 0 : index
    %267 = vector.load %arg3[%c5_141, %c0_142, %c0_143] : memref<8x4x32xf32, #tpu.memory_space<vmem>>, vector<1x4x32xf32>
    %268 = vector.shape_cast %267 : vector<1x4x32xf32> to vector<4x32xf32>
    %cst_144 = arith.constant 1.000000e+00 : f32
    %269 = vector.broadcast %cst_144 : f32 to vector<4x32xf32>
    %270 = arith.subf %269, %268 : vector<4x32xf32>
    %271 = arith.mulf %266, %268 : vector<4x32xf32>
    %272 = arith.mulf %227, %270 : vector<4x32xf32>
    %273 = arith.addf %271, %272 : vector<4x32xf32>
    %274 = arith.mulf %264, %268 : vector<4x32xf32>
    %275 = arith.mulf %230, %270 : vector<4x32xf32>
    %276 = arith.addf %274, %275 : vector<4x32xf32>
    %cst_145 = arith.constant dense<0.000000e+00> : vector<4x16xf32>
    %277 = tpu.matmul %273, %4, %cst_145 {dimension_numbers = #tpu.dot_dimension_numbers<[1], [0], [0], [1], [0, 0, 1, 1], [], []>} : vector<4x32xf32>, vector<32x16xf32>, vector<4x16xf32> -> vector<4x16xf32>
    %278 = arith.addf %277, %5 : vector<4x16xf32>
    %279 = math.exp %278 : vector<4x16xf32>
    %cst_146 = arith.constant dense<0.000000e+00> : vector<4xf32>
    %280 = vector.multi_reduction <add>, %279, %cst_146 [1] : vector<4x16xf32> to vector<4xf32>
    %281 = vector.shape_cast %280 : vector<4xf32> to vector<4x1xf32>
    %282 = tpu.reciprocal %281 {approx = true} : vector<4x1xf32> -> vector<4x1xf32>
    %283 = vector.broadcast %282 : vector<4x1xf32> to vector<4x16xf32>
    %284 = arith.mulf %279, %283 : vector<4x16xf32>
    %cst_147 = arith.constant dense<0.000000e+00> : vector<4x64xf32>
    %285 = tpu.matmul %284, %6, %cst_147 {dimension_numbers = #tpu.dot_dimension_numbers<[1], [0], [0], [1], [0, 0, 1, 1], [], []>} : vector<4x16xf32>, vector<16x64xf32>, vector<4x64xf32> -> vector<4x64xf32>
    %c24 = arith.constant 24 : index
    %c0_148 = arith.constant 0 : index
    %286 = vector.load %arg12[%c24, %c0_148] : memref<40x32xf32, #tpu.memory_space<vmem>>, vector<4x32xf32>
    tpu.vector_store %arg12[%c24, %c0_148], %273 {strides = array<i32>} : memref<40x32xf32, #tpu.memory_space<vmem>>, vector<4x32xf32>,
    %c24_149 = arith.constant 24 : index
    %c0_150 = arith.constant 0 : index
    %287 = vector.load %arg13[%c24_149, %c0_150] : memref<40x64xf32, #tpu.memory_space<vmem>>, vector<4x64xf32>
    tpu.vector_store %arg13[%c24_149, %c0_150], %285 {strides = array<i32>} : memref<40x64xf32, #tpu.memory_space<vmem>>, vector<4x64xf32>,
    %c6 = arith.constant 6 : index
    %c0_151 = arith.constant 0 : index
    %c0_152 = arith.constant 0 : index
    %288 = vector.load %arg2[%c6, %c0_151, %c0_152] : memref<8x4x40xf32, #tpu.memory_space<vmem>>, vector<1x4x40xf32>
    %289 = vector.shape_cast %288 : vector<1x4x40xf32> to vector<4x40xf32>
    %c0_153 = arith.constant 0 : index
    %c0_154 = arith.constant 0 : index
    %290 = vector.load %arg12[%c0_153, %c0_154] : memref<40x32xf32, #tpu.memory_space<vmem>>, vector<40x32xf32>
    %cst_155 = arith.constant dense<0.000000e+00> : vector<4x32xf32>
    %291 = tpu.matmul %289, %290, %cst_155 {dimension_numbers = #tpu.dot_dimension_numbers<[1], [0], [0], [1], [0, 0, 1, 1], [], []>} : vector<4x40xf32>, vector<40x32xf32>, vector<4x32xf32> -> vector<4x32xf32>
    %292 = tpu.concatenate %291, %285, %273 in 1 : vector<4x32xf32>, vector<4x64xf32>, vector<4x32xf32> -> vector<4x128xf32>
    %c6_156 = arith.constant 6 : index
    %c0_157 = arith.constant 0 : index
    %c0_158 = arith.constant 0 : index
    %293 = vector.load %arg1[%c6_156, %c0_157, %c0_158] : memref<8x4x128xf32, #tpu.memory_space<vmem>>, vector<1x4x128xf32>
    %294 = vector.shape_cast %293 : vector<1x4x128xf32> to vector<4x128xf32>
    %c0_159 = arith.constant 0 : index
    %c0_160 = arith.constant 0 : index
    %295 = vector.load %arg8[%c0_159, %c0_160] : memref<128x128xf32, #tpu.memory_space<vmem>>, vector<128x128xf32>
    %cst_161 = arith.constant dense<0.000000e+00> : vector<4x128xf32>
    %296 = tpu.matmul %292, %295, %cst_161 {dimension_numbers = #tpu.dot_dimension_numbers<[1], [0], [0], [1], [0, 0, 1, 1], [], []>} : vector<4x128xf32>, vector<128x128xf32>, vector<4x128xf32> -> vector<4x128xf32>
    %297 = arith.addf %294, %296 : vector<4x128xf32>
    %298 = arith.negf %297 : vector<4x128xf32>
    %299 = math.exp %298 : vector<4x128xf32>
    %cst_162 = arith.constant 1.000000e+00 : f32
    %300 = vector.broadcast %cst_162 : f32 to vector<4x128xf32>
    %301 = arith.addf %300, %299 : vector<4x128xf32>
    %302 = arith.divf %300, %301 : vector<4x128xf32>
    %303 = vector.extract_strided_slice %302 {offsets = [0, 0], sizes = [4, 32], strides = [1, 1]} : vector<4x128xf32> to vector<4x32xf32>
    %304 = vector.extract_strided_slice %302 {offsets = [0, 32], sizes = [4, 32], strides = [1, 1]} : vector<4x128xf32> to vector<4x32xf32>
    %305 = vector.extract_strided_slice %302 {offsets = [0, 96], sizes = [4, 32], strides = [1, 1]} : vector<4x128xf32> to vector<4x32xf32>
    %306 = vector.extract_strided_slice %297 {offsets = [0, 64], sizes = [4, 32], strides = [1, 1]} : vector<4x128xf32> to vector<4x32xf32>
    %307 = math.tanh %306 : vector<4x32xf32>
    %308 = arith.mulf %304, %276 : vector<4x32xf32>
    %309 = arith.mulf %303, %307 : vector<4x32xf32>
    %310 = arith.addf %308, %309 : vector<4x32xf32>
    %311 = math.tanh %310 : vector<4x32xf32>
    %312 = arith.mulf %305, %311 : vector<4x32xf32>
    %c6_163 = arith.constant 6 : index
    %c0_164 = arith.constant 0 : index
    %c0_165 = arith.constant 0 : index
    %313 = vector.load %arg3[%c6_163, %c0_164, %c0_165] : memref<8x4x32xf32, #tpu.memory_space<vmem>>, vector<1x4x32xf32>
    %314 = vector.shape_cast %313 : vector<1x4x32xf32> to vector<4x32xf32>
    %cst_166 = arith.constant 1.000000e+00 : f32
    %315 = vector.broadcast %cst_166 : f32 to vector<4x32xf32>
    %316 = arith.subf %315, %314 : vector<4x32xf32>
    %317 = arith.mulf %312, %314 : vector<4x32xf32>
    %318 = arith.mulf %273, %316 : vector<4x32xf32>
    %319 = arith.addf %317, %318 : vector<4x32xf32>
    %320 = arith.mulf %310, %314 : vector<4x32xf32>
    %321 = arith.mulf %276, %316 : vector<4x32xf32>
    %322 = arith.addf %320, %321 : vector<4x32xf32>
    %cst_167 = arith.constant dense<0.000000e+00> : vector<4x16xf32>
    %323 = tpu.matmul %319, %4, %cst_167 {dimension_numbers = #tpu.dot_dimension_numbers<[1], [0], [0], [1], [0, 0, 1, 1], [], []>} : vector<4x32xf32>, vector<32x16xf32>, vector<4x16xf32> -> vector<4x16xf32>
    %324 = arith.addf %323, %5 : vector<4x16xf32>
    %325 = math.exp %324 : vector<4x16xf32>
    %cst_168 = arith.constant dense<0.000000e+00> : vector<4xf32>
    %326 = vector.multi_reduction <add>, %325, %cst_168 [1] : vector<4x16xf32> to vector<4xf32>
    %327 = vector.shape_cast %326 : vector<4xf32> to vector<4x1xf32>
    %328 = tpu.reciprocal %327 {approx = true} : vector<4x1xf32> -> vector<4x1xf32>
    %329 = vector.broadcast %328 : vector<4x1xf32> to vector<4x16xf32>
    %330 = arith.mulf %325, %329 : vector<4x16xf32>
    %cst_169 = arith.constant dense<0.000000e+00> : vector<4x64xf32>
    %331 = tpu.matmul %330, %6, %cst_169 {dimension_numbers = #tpu.dot_dimension_numbers<[1], [0], [0], [1], [0, 0, 1, 1], [], []>} : vector<4x16xf32>, vector<16x64xf32>, vector<4x64xf32> -> vector<4x64xf32>
    %c28 = arith.constant 28 : index
    %c0_170 = arith.constant 0 : index
    %332 = vector.load %arg12[%c28, %c0_170] : memref<40x32xf32, #tpu.memory_space<vmem>>, vector<4x32xf32>
    tpu.vector_store %arg12[%c28, %c0_170], %319 {strides = array<i32>} : memref<40x32xf32, #tpu.memory_space<vmem>>, vector<4x32xf32>,
    %c28_171 = arith.constant 28 : index
    %c0_172 = arith.constant 0 : index
    %333 = vector.load %arg13[%c28_171, %c0_172] : memref<40x64xf32, #tpu.memory_space<vmem>>, vector<4x64xf32>
    tpu.vector_store %arg13[%c28_171, %c0_172], %331 {strides = array<i32>} : memref<40x64xf32, #tpu.memory_space<vmem>>, vector<4x64xf32>,
    %c7 = arith.constant 7 : index
    %c0_173 = arith.constant 0 : index
    %c0_174 = arith.constant 0 : index
    %334 = vector.load %arg2[%c7, %c0_173, %c0_174] : memref<8x4x40xf32, #tpu.memory_space<vmem>>, vector<1x4x40xf32>
    %335 = vector.shape_cast %334 : vector<1x4x40xf32> to vector<4x40xf32>
    %c0_175 = arith.constant 0 : index
    %c0_176 = arith.constant 0 : index
    %336 = vector.load %arg12[%c0_175, %c0_176] : memref<40x32xf32, #tpu.memory_space<vmem>>, vector<40x32xf32>
    %cst_177 = arith.constant dense<0.000000e+00> : vector<4x32xf32>
    %337 = tpu.matmul %335, %336, %cst_177 {dimension_numbers = #tpu.dot_dimension_numbers<[1], [0], [0], [1], [0, 0, 1, 1], [], []>} : vector<4x40xf32>, vector<40x32xf32>, vector<4x32xf32> -> vector<4x32xf32>
    %338 = tpu.concatenate %337, %331, %319 in 1 : vector<4x32xf32>, vector<4x64xf32>, vector<4x32xf32> -> vector<4x128xf32>
    %c7_178 = arith.constant 7 : index
    %c0_179 = arith.constant 0 : index
    %c0_180 = arith.constant 0 : index
    %339 = vector.load %arg1[%c7_178, %c0_179, %c0_180] : memref<8x4x128xf32, #tpu.memory_space<vmem>>, vector<1x4x128xf32>
    %340 = vector.shape_cast %339 : vector<1x4x128xf32> to vector<4x128xf32>
    %c0_181 = arith.constant 0 : index
    %c0_182 = arith.constant 0 : index
    %341 = vector.load %arg8[%c0_181, %c0_182] : memref<128x128xf32, #tpu.memory_space<vmem>>, vector<128x128xf32>
    %cst_183 = arith.constant dense<0.000000e+00> : vector<4x128xf32>
    %342 = tpu.matmul %338, %341, %cst_183 {dimension_numbers = #tpu.dot_dimension_numbers<[1], [0], [0], [1], [0, 0, 1, 1], [], []>} : vector<4x128xf32>, vector<128x128xf32>, vector<4x128xf32> -> vector<4x128xf32>
    %343 = arith.addf %340, %342 : vector<4x128xf32>
    %344 = arith.negf %343 : vector<4x128xf32>
    %345 = math.exp %344 : vector<4x128xf32>
    %cst_184 = arith.constant 1.000000e+00 : f32
    %346 = vector.broadcast %cst_184 : f32 to vector<4x128xf32>
    %347 = arith.addf %346, %345 : vector<4x128xf32>
    %348 = arith.divf %346, %347 : vector<4x128xf32>
    %349 = vector.extract_strided_slice %348 {offsets = [0, 0], sizes = [4, 32], strides = [1, 1]} : vector<4x128xf32> to vector<4x32xf32>
    %350 = vector.extract_strided_slice %348 {offsets = [0, 32], sizes = [4, 32], strides = [1, 1]} : vector<4x128xf32> to vector<4x32xf32>
    %351 = vector.extract_strided_slice %348 {offsets = [0, 96], sizes = [4, 32], strides = [1, 1]} : vector<4x128xf32> to vector<4x32xf32>
    %352 = vector.extract_strided_slice %343 {offsets = [0, 64], sizes = [4, 32], strides = [1, 1]} : vector<4x128xf32> to vector<4x32xf32>
    %353 = math.tanh %352 : vector<4x32xf32>
    %354 = arith.mulf %350, %322 : vector<4x32xf32>
    %355 = arith.mulf %349, %353 : vector<4x32xf32>
    %356 = arith.addf %354, %355 : vector<4x32xf32>
    %357 = math.tanh %356 : vector<4x32xf32>
    %358 = arith.mulf %351, %357 : vector<4x32xf32>
    %c7_185 = arith.constant 7 : index
    %c0_186 = arith.constant 0 : index
    %c0_187 = arith.constant 0 : index
    %359 = vector.load %arg3[%c7_185, %c0_186, %c0_187] : memref<8x4x32xf32, #tpu.memory_space<vmem>>, vector<1x4x32xf32>
    %360 = vector.shape_cast %359 : vector<1x4x32xf32> to vector<4x32xf32>
    %cst_188 = arith.constant 1.000000e+00 : f32
    %361 = vector.broadcast %cst_188 : f32 to vector<4x32xf32>
    %362 = arith.subf %361, %360 : vector<4x32xf32>
    %363 = arith.mulf %358, %360 : vector<4x32xf32>
    %364 = arith.mulf %319, %362 : vector<4x32xf32>
    %365 = arith.addf %363, %364 : vector<4x32xf32>
    %cst_189 = arith.constant dense<0.000000e+00> : vector<4x16xf32>
    %366 = tpu.matmul %365, %4, %cst_189 {dimension_numbers = #tpu.dot_dimension_numbers<[1], [0], [0], [1], [0, 0, 1, 1], [], []>} : vector<4x32xf32>, vector<32x16xf32>, vector<4x16xf32> -> vector<4x16xf32>
    %367 = arith.addf %366, %5 : vector<4x16xf32>
    %368 = math.exp %367 : vector<4x16xf32>
    %cst_190 = arith.constant dense<0.000000e+00> : vector<4xf32>
    %369 = vector.multi_reduction <add>, %368, %cst_190 [1] : vector<4x16xf32> to vector<4xf32>
    %370 = vector.shape_cast %369 : vector<4xf32> to vector<4x1xf32>
    %371 = tpu.reciprocal %370 {approx = true} : vector<4x1xf32> -> vector<4x1xf32>
    %372 = vector.broadcast %371 : vector<4x1xf32> to vector<4x16xf32>
    %373 = arith.mulf %368, %372 : vector<4x16xf32>
    %cst_191 = arith.constant dense<0.000000e+00> : vector<4x64xf32>
    %374 = tpu.matmul %373, %6, %cst_191 {dimension_numbers = #tpu.dot_dimension_numbers<[1], [0], [0], [1], [0, 0, 1, 1], [], []>} : vector<4x16xf32>, vector<16x64xf32>, vector<4x64xf32> -> vector<4x64xf32>
    %c32 = arith.constant 32 : index
    %c0_192 = arith.constant 0 : index
    %375 = vector.load %arg12[%c32, %c0_192] : memref<40x32xf32, #tpu.memory_space<vmem>>, vector<4x32xf32>
    tpu.vector_store %arg12[%c32, %c0_192], %365 {strides = array<i32>} : memref<40x32xf32, #tpu.memory_space<vmem>>, vector<4x32xf32>,
    %c32_193 = arith.constant 32 : index
    %c0_194 = arith.constant 0 : index
    %376 = vector.load %arg13[%c32_193, %c0_194] : memref<40x64xf32, #tpu.memory_space<vmem>>, vector<4x64xf32>
    tpu.vector_store %arg13[%c32_193, %c0_194], %374 {strides = array<i32>} : memref<40x64xf32, #tpu.memory_space<vmem>>, vector<4x64xf32>,
    %c0_195 = arith.constant 0 : index
    %c0_196 = arith.constant 0 : index
    %377 = vector.load %arg9[%c0_195, %c0_196] : memref<96x32xf32, #tpu.memory_space<vmem>>, vector<96x32xf32>
    %c0_197 = arith.constant 0 : index
    %c0_198 = arith.constant 0 : index
    %378 = vector.load %arg12[%c0_197, %c0_198] : memref<40x32xf32, #tpu.memory_space<vmem>>, vector<40x32xf32>
    %379 = vector.extract_strided_slice %377 {offsets = [0, 0], sizes = [32, 32], strides = [1, 1]} : vector<96x32xf32> to vector<32x32xf32>
    %cst_199 = arith.constant dense<0.000000e+00> : vector<40x32xf32>
    %380 = tpu.matmul %378, %379, %cst_199 {dimension_numbers = #tpu.dot_dimension_numbers<[1], [0], [0], [1], [0, 0, 1, 1], [], []>} : vector<40x32xf32>, vector<32x32xf32>, vector<40x32xf32> -> vector<40x32xf32>
    %c0_200 = arith.constant 0 : index
    %c0_201 = arith.constant 0 : index
    %381 = vector.load %arg13[%c0_200, %c0_201] : memref<40x64xf32, #tpu.memory_space<vmem>>, vector<40x64xf32>
    %382 = vector.extract_strided_slice %377 {offsets = [32, 0], sizes = [64, 32], strides = [1, 1]} : vector<96x32xf32> to vector<64x32xf32>
    %cst_202 = arith.constant dense<0.000000e+00> : vector<40x32xf32>
    %383 = tpu.matmul %381, %382, %cst_202 {dimension_numbers = #tpu.dot_dimension_numbers<[1], [0], [0], [1], [0, 0, 1, 1], [], []>} : vector<40x64xf32>, vector<64x32xf32>, vector<40x32xf32> -> vector<40x32xf32>
    %384 = arith.addf %380, %383 : vector<40x32xf32>
    %385 = math.tanh %384 : vector<40x32xf32>
    %c0_203 = arith.constant 0 : index
    %c0_204 = arith.constant 0 : index
    %386 = vector.load %arg10[%c0_203, %c0_204] : memref<32x128xf32, #tpu.memory_space<vmem>>, vector<32x128xf32>
    %cst_205 = arith.constant dense<0.000000e+00> : vector<40x128xf32>
    %387 = tpu.matmul %385, %386, %cst_205 {dimension_numbers = #tpu.dot_dimension_numbers<[1], [0], [0], [1], [0, 0, 1, 1], [], []>} : vector<40x32xf32>, vector<32x128xf32>, vector<40x128xf32> -> vector<40x128xf32>
    %c0_206 = arith.constant 0 : index
    %c0_207 = arith.constant 0 : index
    %388 = vector.load %arg11[%c0_206, %c0_207] : memref<40x128xf32, #tpu.memory_space<vmem>>, vector<40x128xf32>
    tpu.vector_store %arg11[%c0_206, %c0_207], %387 {strides = array<i32>} : memref<40x128xf32, #tpu.memory_space<vmem>>, vector<40x128xf32>,
    return
  }
  func.func @transform_0(%arg0: i32) -> (i32, i32, i32) {
    %c0_i32 = arith.constant 0 : i32
    %c0_i32_0 = arith.constant 0 : i32
    %c0_i32_1 = arith.constant 0 : i32
    %c0_i32_2 = arith.constant 0 : i32
    return %c0_i32, %c0_i32_0, %c0_i32_1 : i32, i32, i32
  }
  func.func @transform_1(%arg0: i32) -> (i32, i32, i32) {
    %c0_i32 = arith.constant 0 : i32
    %c0_i32_0 = arith.constant 0 : i32
    %c0_i32_1 = arith.constant 0 : i32
    %c0_i32_2 = arith.constant 0 : i32
    return %c0_i32, %c0_i32_0, %c0_i32_1 : i32, i32, i32
  }
  func.func @transform_2(%arg0: i32) -> (i32, i32, i32) {
    %c0_i32 = arith.constant 0 : i32
    %c0_i32_0 = arith.constant 0 : i32
    %c0_i32_1 = arith.constant 0 : i32
    %c0_i32_2 = arith.constant 0 : i32
    return %c0_i32, %c0_i32_0, %c0_i32_1 : i32, i32, i32
  }
  func.func @transform_3(%arg0: i32) -> (i32, i32) {
    %c0_i32 = arith.constant 0 : i32
    %c0_i32_0 = arith.constant 0 : i32
    %c0_i32_1 = arith.constant 0 : i32
    return %c0_i32, %c0_i32_0 : i32, i32
  }
  func.func @transform_4(%arg0: i32) -> (i32, i32) {
    %c0_i32 = arith.constant 0 : i32
    %c0_i32_0 = arith.constant 0 : i32
    %c0_i32_1 = arith.constant 0 : i32
    return %c0_i32, %c0_i32_0 : i32, i32
  }
  func.func @transform_5(%arg0: i32) -> (i32, i32) {
    %c0_i32 = arith.constant 0 : i32
    %c0_i32_0 = arith.constant 0 : i32
    %c0_i32_1 = arith.constant 0 : i32
    return %c0_i32, %c0_i32_0 : i32, i32
  }
  func.func @transform_6(%arg0: i32) -> (i32, i32, i32) {
    %c0_i32 = arith.constant 0 : i32
    %c0_i32_0 = arith.constant 0 : i32
    %c0_i32_1 = arith.constant 0 : i32
    %c0_i32_2 = arith.constant 0 : i32
    return %c0_i32, %c0_i32_0, %c0_i32_1 : i32, i32, i32
  }
  func.func @transform_7(%arg0: i32) -> (i32, i32) {
    %c0_i32 = arith.constant 0 : i32
    %c0_i32_0 = arith.constant 0 : i32
    %c0_i32_1 = arith.constant 0 : i32
    return %c0_i32, %c0_i32_0 : i32, i32
  }
  func.func @transform_8(%arg0: i32) -> (i32, i32) {
    %c0_i32 = arith.constant 0 : i32
    %c0_i32_0 = arith.constant 0 : i32
    %c0_i32_1 = arith.constant 0 : i32
    return %c0_i32, %c0_i32_0 : i32, i32
  }
  func.func @transform_9(%arg0: i32) -> (i32, i32) {
    %c0_i32 = arith.constant 0 : i32
    %c0_i32_0 = arith.constant 0 : i32
    %c0_i32_1 = arith.constant 0 : i32
    return %c0_i32, %c0_i32_0 : i32, i32
  }
  func.func @transform_10(%arg0: i32) -> (i32, i32) {
    %c0_i32 = arith.constant 0 : i32
    %c0_i32_0 = arith.constant 0 : i32
    %c0_i32_1 = arith.constant 0 : i32
    return %c0_i32, %c0_i32_0 : i32, i32
  }
}

</mosaic_0001>

<llo_original>
// kernel: tree_decoder_forward.1
$region0: #{tree_decoder_forward.1}
  #allocation0 [shape = 'u32[]', space=smem, size = 0x4, offset = 0x4, fixed_abs, tag = 'smem constant byte address 0x4 - core index']
  #allocation1 [shape = 'u32[144,128]{1,0:T(1,128)}', space=vmem, size = 0x12000, scoped, tag = 'internal scratch']
  #allocation2 [shape = 'f32[40,32]{1,0:T(8,128)}', space=vmem, size = 0x5000, scoped, tag = 'scratch operand']
  #allocation3 [shape = 'f32[40,64]{1,0:T(8,128)}', space=vmem, size = 0x5000, scoped, tag = 'scratch operand']
  %s0 = inlined_call_operand.vmem [shape: f32[8,4,128], index: 0, kind: input, shape index: {}]
  %s1 = inlined_call_operand.vmem [shape: f32[8,4,40], index: 1, kind: input, shape index: {}]
  %s2 = inlined_call_operand.vmem [shape: f32[8,4,32], index: 2, kind: input, shape index: {}]
  %s3 = inlined_call_operand.vmem [shape: f32[32,16], index: 3, kind: input, shape index: {}]
  %s4 = inlined_call_operand.vmem [shape: f32[4,16], index: 4, kind: input, shape index: {}]
  %s5 = inlined_call_operand.vmem [shape: f32[16,64], index: 5, kind: input, shape index: {}]
  %s6 = inlined_call_operand.vmem [shape: f32[2,4,32], index: 6, kind: input, shape index: {}]
  %s7 = inlined_call_operand.vmem [shape: f32[128,128], index: 7, kind: input, shape index: {}]
  %s8 = inlined_call_operand.vmem [shape: f32[96,32], index: 8, kind: input, shape index: {}]
  %s9 = inlined_call_operand.vmem [shape: f32[32,128], index: 9, kind: input, shape index: {}]
  %s10 = inlined_call_operand.vmem [shape: f32[40,128], index: 10, kind: output, shape index: {}]
  %s11 = sld [smem:[#allocation0]]
  $region50: #{tree_decoder_forward.1} parent=0
    _
  %s13 = ssub.s32 1, %s11
  %s14 = scalar_select 0, %s13, %s11
  // Predicated region
  $region2: #{tree_decoder_forward.1} parent=0 // pred_check
    _
  $region3: #{tree_decoder_forward.1} parent=0 // pred_check_branch
    %16 = sbr.rel (0) target = $region5
  $region4: #{tree_decoder_forward.1} parent=0 // pred_region
    _
  $region5: #{tree_decoder_forward.1} parent=0 // pred_fallthru
    _
  // Predicated region
  $region6: #{tree_decoder_forward.1} parent=0 // pred_check
    _
  $region7: #{tree_decoder_forward.1} parent=0 // pred_check_branch
    %18 = sbr.rel (0) target = $region9
  $region8: #{tree_decoder_forward.1} parent=0 // pred_region
    _
  $region9: #{tree_decoder_forward.1} parent=0 // pred_fallthru
    _
  // Predicated region
  $region10: #{tree_decoder_forward.1} parent=0 // pred_check
    _
  $region11: #{tree_decoder_forward.1} parent=0 // pred_check_branch
    %20 = sbr.rel (0) target = $region13
  $region12: #{tree_decoder_forward.1} parent=0 // pred_region
    _
  $region13: #{tree_decoder_forward.1} parent=0 // pred_fallthru
    _
  // Predicated region
  $region14: #{tree_decoder_forward.1} parent=0 // pred_check
    _
  $region15: #{tree_decoder_forward.1} parent=0 // pred_check_branch
    %22 = sbr.rel (0) target = $region17
  $region16: #{tree_decoder_forward.1} parent=0 // pred_region
    _
  $region17: #{tree_decoder_forward.1} parent=0 // pred_fallthru
    _
  // Predicated region
  $region18: #{tree_decoder_forward.1} parent=0 // pred_check
    _
  $region19: #{tree_decoder_forward.1} parent=0 // pred_check_branch
    %24 = sbr.rel (0) target = $region21
  $region20: #{tree_decoder_forward.1} parent=0 // pred_region
    _
  $region21: #{tree_decoder_forward.1} parent=0 // pred_fallthru
    _
  // Predicated region
  $region22: #{tree_decoder_forward.1} parent=0 // pred_check
    _
  $region23: #{tree_decoder_forward.1} parent=0 // pred_check_branch
    %26 = sbr.rel (0) target = $region25
  $region24: #{tree_decoder_forward.1} parent=0 // pred_region
    _
  $region25: #{tree_decoder_forward.1} parent=0 // pred_fallthru
    _
  // Predicated region
  $region26: #{tree_decoder_forward.1} parent=0 // pred_check
    _
  $region27: #{tree_decoder_forward.1} parent=0 // pred_check_branch
    %28 = sbr.rel (0) target = $region29
  $region28: #{tree_decoder_forward.1} parent=0 // pred_region
    _
  $region29: #{tree_decoder_forward.1} parent=0 // pred_fallthru
    _
  // Predicated region
  $region30: #{tree_decoder_forward.1} parent=0 // pred_check
    _
  $region31: #{tree_decoder_forward.1} parent=0 // pred_check_branch
    %30 = sbr.rel (0) target = $region33
  $region32: #{tree_decoder_forward.1} parent=0 // pred_region
    _
  $region33: #{tree_decoder_forward.1} parent=0 // pred_fallthru
    _
  // Predicated region
  $region34: #{tree_decoder_forward.1} parent=0 // pred_check
    _
  $region35: #{tree_decoder_forward.1} parent=0 // pred_check_branch
    %32 = sbr.rel (0) target = $region37
  $region36: #{tree_decoder_forward.1} parent=0 // pred_region
    _
  $region37: #{tree_decoder_forward.1} parent=0 // pred_fallthru
    _
  // Predicated region
  $region38: #{tree_decoder_forward.1} parent=0 // pred_check
    _
  $region39: #{tree_decoder_forward.1} parent=0 // pred_check_branch
    %34 = sbr.rel (0) target = $region41
  $region40: #{tree_decoder_forward.1} parent=0 // pred_region
    _
  $region41: #{tree_decoder_forward.1} parent=0 // pred_fallthru
    _
  %vm35 = vcmask 261120
  %36 = vst.msk [vmem:[#allocation2] sm:$0xff] %vm35, 0.0
  %37 = vst.msk [vmem:[#allocation2 + $0x8] sm:$0xff] %vm35, 0.0
  %38 = vst.msk [vmem:[#allocation2 + $0x10] sm:$0xff] %vm35, 0.0
  %39 = vst.msk [vmem:[#allocation2 + $0x18] sm:$0xff] %vm35, 0.0
  %40 = vst.msk [vmem:[#allocation2 + $0x20] sm:$0xff] %vm35, 0.0
  %vm41 = vcmask 523264
  %42 = vst.msk [vmem:[#allocation3] sm:$0xff] %vm41, 0.0
  %43 = vst.msk [vmem:[#allocation3 + $0x8] sm:$0xff] %vm41, 0.0
  %44 = vst.msk [vmem:[#allocation3 + $0x10] sm:$0xff] %vm41, 0.0
  %45 = vst.msk [vmem:[#allocation3 + $0x18] sm:$0xff] %vm41, 0.0
  %46 = vst.msk [vmem:[#allocation3 + $0x20] sm:$0xff] %vm41, 0.0
  %v47 = vld [vmem:[%s3] sm:$0xff]
  %v48 = vld [vmem:[%s3 + $0x8] sm:$0xff]
  %v49 = vld [vmem:[%s3 + $0x10] sm:$0xff]
  %v50 = vld [vmem:[%s3 + $0x18] sm:$0xff]
  %v51 = vld [vmem:[%s4] sm:$0xf]
  %v52 = vld [vmem:[%s5] sm:$0xff]
  %v53 = vld [vmem:[%s5 + $0x8] sm:$0xff]
  %v54 = vld [vmem:[%s6] sm:$0xf]
  %s55 = scalar_lea.vmem %s6, 4
  %v56 = vld [vmem:[%s55] sm:$0xf]
  %v57 = vld [vmem:[%s1] sm:$0xf]
  %v58 = vld [vmem:[#allocation2] sm:$0xff]
  %v59 = vld [vmem:[#allocation2 + $0x8] sm:$0xff]
  %v60 = vld [vmem:[#allocation2 + $0x10] sm:$0xff]
  %v61 = vld [vmem:[#allocation2 + $0x18] sm:$0xff]
  %v62 = vld [vmem:[#allocation2 + $0x20] sm:$0xff]
  %vm63 = vcmask 326656
  %v65 = vsel %vm63, %v57, 0
  %67 = vmatprep.subr.mxu0 0.0
  %68 = vmatpush1.msra.mxu0 %v58
  %69 = vmatprep.subr.mxu0 0.0
  %70 = vmatpush1.msra.mxu0 %v59
  %71 = vmatprep.subr.mxu0 0.0
  %72 = vmatpush1.msra.mxu0 %v60
  %73 = vmatprep.subr.mxu0 0.0
  %74 = vmatpush1.msra.mxu0 %v61
  %75 = vmatprep.subr.mxu0 0.0
  %76 = vmatpush1.msra.mxu0 %v62
  %77 = vmatprep.subr.mxu0 0.0
  %78 = vmatpush1.msra.mxu0 0.0
  %79 = vmatprep.subr.mxu0 0.0
  %80 = vmatpush1.msra.mxu0 0.0
  %81 = vmatprep.subr.mxu0 0.0
  %82 = vmatpush1.msra.mxu0 0.0
  %83 = vmatprep.subr.mxu0 0.0
  %84 = vmatpush1.msra.mxu0 0.0
  %85 = vmatprep.subr.mxu0 0.0
  %86 = vmatpush1.msra.mxu0 0.0
  %87 = vmatprep.subr.mxu0 0.0
  %88 = vmatpush1.msra.mxu0 0.0
  %89 = vmatprep.subr.mxu0 0.0
  %90 = vmatpush1.msra.mxu0 0.0
  %91 = vmatprep.subr.mxu0 0.0
  %92 = vmatpush1.msra.mxu0 0.0
  %93 = vmatprep.subr.mxu0 0.0
  %94 = vmatpush1.msra.mxu0 0.0
  %95 = vmatprep.subr.mxu0 0.0
  %96 = vmatpush1.msra.mxu0 0.0
  %97 = vmatprep.subr.mxu0 0.0
  %98 = vmatpush1.msra.mxu0 0.0
  %99 = vmatprep.subr.mxu0 0.0
  %100 = vmatpush1.msra.mxu0 0.0
  %101 = vmatprep.subr.mxu0 0.0
  %102 = vmatpush1.msra.mxu0 0.0
  %103 = vmatprep.subr.mxu0 0.0
  %104 = vmatpush1.msra.mxu0 0.0
  %105 = vmatprep.subr.mxu0 0.0
  %106 = vmatpush1.msra.mxu0 0.0
  %107 = vmatprep.subr.mxu0 0.0
  %108 = vmatpush1.msra.mxu0 0.0
  %109 = vmatprep.subr.mxu0 0.0
  %110 = vmatpush1.msra.mxu0 0.0
  %111 = vmatprep.subr.mxu0 0.0
  %112 = vmatpush1.msra.mxu0 0.0
  %113 = vmatprep.subr.mxu0 0.0
  %114 = vmatpush1.msra.mxu0 0.0
  %115 = vmatprep.subr.mxu0 0.0
  %116 = vmatpush1.msra.mxu0 0.0
  %117 = vmatprep.subr.mxu0 0.0
  %118 = vmatpush1.msra.mxu0 0.0
  %119 = vmatprep.subr.mxu0 0.0
  %120 = vmatpush1.msra.mxu0 0.0
  %121 = vmatprep.subr.mxu0 0.0
  %122 = vmatpush1.msra.mxu0 0.0
  %123 = vmatprep.subr.mxu0 0.0
  %124 = vmatpush1.msra.mxu0 0.0
  %125 = vmatprep.subr.mxu0 0.0
  %126 = vmatpush1.msra.mxu0 0.0
  %127 = vmatprep.subr.mxu0 0.0
  %128 = vmatpush1.msra.mxu0 0.0
  %129 = vmatprep.subr.mxu0 0.0
  %130 = vmatpush1.msra.mxu0 0.0
  %131 = vmatprep.mubr.f32.mxu0 0.0
  %132 = vmatmul.mubr.f32.gmra.mrb[0].mxu0 %v65
  %v133 = vpop.f32.mrb[0].mxu0
  %v134 = vadd.f32 0.0, %v133
  %v135 = vpop.f32.mrb[0].mxu0
  %136 = vdwg.mxu0
  %138 = vrot.lane.b32.xlu0 %v54, 96
  %v139 = vpop.permute.xlu0 %138
  %v141 = vsel %vm35, %v134, 0.0
  %vm142 = vcmask 785408
  %v143 = vsel %vm142, %v141, %v139
  %v144 = vld [vmem:[%s0] sm:$0xf]
  %v145 = vld [vmem:[%s7] sm:$0xff]
  %v146 = vld [vmem:[%s7 + $0x8] sm:$0xff]
  %v147 = vld [vmem:[%s7 + $0x10] sm:$0xff]
  %v148 = vld [vmem:[%s7 + $0x18] sm:$0xff]
  %v149 = vld [vmem:[%s7 + $0x20] sm:$0xff]
  %v150 = vld [vmem:[%s7 + $0x28] sm:$0xff]
  %v151 = vld [vmem:[%s7 + $0x30] sm:$0xff]
  %v152 = vld [vmem:[%s7 + $0x38] sm:$0xff]
  %v153 = vld [vmem:[%s7 + $0x40] sm:$0xff]
  %v154 = vld [vmem:[%s7 + $0x48] sm:$0xff]
  %v155 = vld [vmem:[%s7 + $0x50] sm:$0xff]
  %v156 = vld [vmem:[%s7 + $0x58] sm:$0xff]
  %v157 = vld [vmem:[%s7 + $0x60] sm:$0xff]
  %v158 = vld [vmem:[%s7 + $0x68] sm:$0xff]
  %v159 = vld [vmem:[%s7 + $0x70] sm:$0xff]
  %v160 = vld [vmem:[%s7 + $0x78] sm:$0xff]
  %161 = vmatprep.subr.mxu0 0.0
  %162 = vmatpush1.msra.mxu0 %v145
  %163 = vmatprep.subr.mxu0 0.0
  %164 = vmatpush1.msra.mxu0 %v146
  %165 = vmatprep.subr.mxu0 0.0
  %166 = vmatpush1.msra.mxu0 %v147
  %167 = vmatprep.subr.mxu0 0.0
  %168 = vmatpush1.msra.mxu0 %v148
  %169 = vmatprep.subr.mxu0 0.0
  %170 = vmatpush1.msra.mxu0 %v149
  %171 = vmatprep.subr.mxu0 0.0
  %172 = vmatpush1.msra.mxu0 %v150
  %173 = vmatprep.subr.mxu0 0.0
  %174 = vmatpush1.msra.mxu0 %v151
  %175 = vmatprep.subr.mxu0 0.0
  %176 = vmatpush1.msra.mxu0 %v152
  %177 = vmatprep.subr.mxu0 0.0
  %178 = vmatpush1.msra.mxu0 %v153
  %179 = vmatprep.subr.mxu0 0.0
  %180 = vmatpush1.msra.mxu0 %v154
  %181 = vmatprep.subr.mxu0 0.0
  %182 = vmatpush1.msra.mxu0 %v155
  %183 = vmatprep.subr.mxu0 0.0
  %184 = vmatpush1.msra.mxu0 %v156
  %185 = vmatprep.subr.mxu0 0.0
  %186 = vmatpush1.msra.mxu0 %v157
  %187 = vmatprep.subr.mxu0 0.0
  %188 = vmatpush1.msra.mxu0 %v158
  %189 = vmatprep.subr.mxu0 0.0
  %190 = vmatpush1.msra.mxu0 %v159
  %191 = vmatprep.subr.mxu0 0.0
  %192 = vmatpush1.msra.mxu0 %v160
  %193 = vmatprep.subr.mxu0 0.0
  %194 = vmatpush1.msra.mxu0 0.0
  %195 = vmatprep.subr.mxu0 0.0
  %196 = vmatpush1.msra.mxu0 0.0
  %197 = vmatprep.subr.mxu0 0.0
  %198 = vmatpush1.msra.mxu0 0.0
  %199 = vmatprep.subr.mxu0 0.0
  %200 = vmatpush1.msra.mxu0 0.0
  %201 = vmatprep.subr.mxu0 0.0
  %202 = vmatpush1.msra.mxu0 0.0
  %203 = vmatprep.subr.mxu0 0.0
  %204 = vmatpush1.msra.mxu0 0.0
  %205 = vmatprep.subr.mxu0 0.0
  %206 = vmatpush1.msra.mxu0 0.0
  %207 = vmatprep.subr.mxu0 0.0
  %208 = vmatpush1.msra.mxu0 0.0
  %209 = vmatprep.subr.mxu0 0.0
  %210 = vmatpush1.msra.mxu0 0.0
  %211 = vmatprep.subr.mxu0 0.0
  %212 = vmatpush1.msra.mxu0 0.0
  %213 = vmatprep.subr.mxu0 0.0
  %214 = vmatpush1.msra.mxu0 0.0
  %215 = vmatprep.subr.mxu0 0.0
  %216 = vmatpush1.msra.mxu0 0.0
  %217 = vmatprep.subr.mxu0 0.0
  %218 = vmatpush1.msra.mxu0 0.0
  %219 = vmatprep.subr.mxu0 0.0
  %220 = vmatpush1.msra.mxu0 0.0
  %221 = vmatprep.subr.mxu0 0.0
  %222 = vmatpush1.msra.mxu0 0.0
  %223 = vmatprep.subr.mxu0 0.0
  %224 = vmatpush1.msra.mxu0 0.0
  %225 = vmatprep.mubr.f32.mxu0 0.0
  %226 = vmatmul.mubr.f32.gmra.mrb[0].mxu0 %v143
  %v227 = vpop.f32.mrb[0].mxu0
  %v228 = vadd.f32 0.0, %v227
  %v229 = vpop.f32.mrb[0].mxu0
  %230 = vdwg.mxu0
  %v231 = vadd.f32 %v144, %v228
  %v232 = vxor.u32 %v231, 2147483648
  %v233 = vmul.f32 %v232, 1.442695
  %v234 = vpow.pop %v233
  %v235 = vadd.f32 %v234, 1.0
  %v236 = vrcp.pop %v235
  %v237 = vmul.f32 1.0, %v236
  %v238 = vtanh.pop %v231
  %240 = vrot.lane.b32.xlu0 %v56, 32
  %v241 = vpop.permute.xlu0 %240
  %v243 = vmul.f32 %v237, %v241
  %245 = vrot.lane.b32.xlu0 %v238, 64
  %v246 = vpop.permute.xlu0 %245
  %v248 = vmul.f32 %v237, %v246
  %250 = vrot.lane.b32.xlu0 %v248, 32
  %v251 = vpop.permute.xlu0 %250
  %v253 = vadd.f32 %v243, %v251
  %v254 = vtanh.pop %v253
  %256 = vrot.lane.b32.xlu0 %v254, 64
  %v257 = vpop.permute.xlu0 %256
  %v259 = vmul.f32 %v237, %v257
  %v260 = vld [vmem:[%s2] sm:$0xf]
  %v261 = vsub.f32 1.0, %v260
  %263 = vrot.lane.b32.xlu0 %v260, 96
  %v264 = vpop.permute.xlu0 %263
  %v266 = vmul.f32 %v259, %v264
  %v267 = vmul.f32 %v54, %v261
  %269 = vrot.lane.b32.xlu0 %v267, 96
  %v270 = vpop.permute.xlu0 %269
  %v272 = vadd.f32 %v266, %v270
  %273 = vrot.lane.b32.xlu0 %v260, 32
  %v274 = vpop.permute.xlu0 %273
  %v276 = vmul.f32 %v253, %v274
  %v277 = vmul.f32 %v56, %v261
  %279 = vrot.lane.b32.xlu0 %v277, 32
  %v280 = vpop.permute.xlu0 %279
  %v282 = vadd.f32 %v276, %v280
  %284 = vrot.lane.b32.xlu0 %v272, 32
  %v285 = vpop.permute.xlu0 %284
  %v286 = vsel %vm35, %v285, 0
  %288 = vmatprep.subr.mxu0 0.0
  %289 = vmatpush1.msra.mxu0 %v47
  %290 = vmatprep.subr.mxu0 0.0
  %291 = vmatpush1.msra.mxu0 %v48
  %292 = vmatprep.subr.mxu0 0.0
  %293 = vmatpush1.msra.mxu0 %v49
  %294 = vmatprep.subr.mxu0 0.0
  %295 = vmatpush1.msra.mxu0 %v50
  %296 = vmatprep.subr.mxu0 0.0
  %297 = vmatpush1.msra.mxu0 0.0
  %298 = vmatprep.subr.mxu0 0.0
  %299 = vmatpush1.msra.mxu0 0.0
  %300 = vmatprep.subr.mxu0 0.0
  %301 = vmatpush1.msra.mxu0 0.0
  %302 = vmatprep.subr.mxu0 0.0
  %303 = vmatpush1.msra.mxu0 0.0
  %304 = vmatprep.subr.mxu0 0.0
  %305 = vmatpush1.msra.mxu0 0.0
  %306 = vmatprep.subr.mxu0 0.0
  %307 = vmatpush1.msra.mxu0 0.0
  %308 = vmatprep.subr.mxu0 0.0
  %309 = vmatpush1.msra.mxu0 0.0
  %310 = vmatprep.subr.mxu0 0.0
  %311 = vmatpush1.msra.mxu0 0.0
  %312 = vmatprep.subr.mxu0 0.0
  %313 = vmatpush1.msra.mxu0 0.0
  %314 = vmatprep.subr.mxu0 0.0
  %315 = vmatpush1.msra.mxu0 0.0
  %316 = vmatprep.subr.mxu0 0.0
  %317 = vmatpush1.msra.mxu0 0.0
  %318 = vmatprep.subr.mxu0 0.0
  %319 = vmatpush1.msra.mxu0 0.0
  %320 = vmatprep.subr.mxu0 0.0
  %321 = vmatpush1.msra.mxu0 0.0
  %322 = vmatprep.subr.mxu0 0.0
  %323 = vmatpush1.msra.mxu0 0.0
  %324 = vmatprep.subr.mxu0 0.0
  %325 = vmatpush1.msra.mxu0 0.0
  %326 = vmatprep.subr.mxu0 0.0
  %327 = vmatpush1.msra.mxu0 0.0
  %328 = vmatprep.subr.mxu0 0.0
  %329 = vmatpush1.msra.mxu0 0.0
  %330 = vmatprep.subr.mxu0 0.0
  %331 = vmatpush1.msra.mxu0 0.0
  %332 = vmatprep.subr.mxu0 0.0
  %333 = vmatpush1.msra.mxu0 0.0
  %334 = vmatprep.subr.mxu0 0.0
  %335 = vmatpush1.msra.mxu0 0.0
  %336 = vmatprep.subr.mxu0 0.0
  %337 = vmatpush1.msra.mxu0 0.0
  %338 = vmatprep.subr.mxu0 0.0
  %339 = vmatpush1.msra.mxu0 0.0
  %340 = vmatprep.subr.mxu0 0.0
  %341 = vmatpush1.msra.mxu0 0.0
  %342 = vmatprep.subr.mxu0 0.0
  %343 = vmatpush1.msra.mxu0 0.0
  %344 = vmatprep.subr.mxu0 0.0
  %345 = vmatpush1.msra.mxu0 0.0
  %346 = vmatprep.subr.mxu0 0.0
  %347 = vmatpush1.msra.mxu0 0.0
  %348 = vmatprep.subr.mxu0 0.0
  %349 = vmatpush1.msra.mxu0 0.0
  %350 = vmatprep.subr.mxu0 0.0
  %351 = vmatpush1.msra.mxu0 0.0
  %352 = vmatprep.mubr.f32.mxu0 0.0
  %353 = vmatmul.mubr.f32.gmra.mrb[0].mxu0 %v286
  %v354 = vpop.f32.mrb[0].mxu0
  %v355 = vadd.f32 %v51, %v354
  %v356 = vpop.f32.mrb[0].mxu0
  %357 = vdwg.mxu0
  %v358 = vmul.f32 %v355, 1.442695
  %v359 = vpow.pop %v358
  %vm360 = vcmask 125952
  %v361 = vsel %vm360, %v359, 0.0
  %362 = vadd.xlane.f32.xlu0 %v361
  %v363 = vpop.xlane.xlu0 %362
  %v364 = vrcp.pop %v363
  %v365 = vmul.f32 %v359, %v364
  %vm366 = vcmask 130048
  %v368 = vsel %vm366, %v365, 0
  %370 = vmatprep.subr.mxu0 0.0
  %371 = vmatpush1.msra.mxu0 %v52
  %372 = vmatprep.subr.mxu0 0.0
  %373 = vmatpush1.msra.mxu0 %v53
  %374 = vmatprep.subr.mxu0 0.0
  %375 = vmatpush1.msra.mxu0 0.0
  %376 = vmatprep.subr.mxu0 0.0
  %377 = vmatpush1.msra.mxu0 0.0
  %378 = vmatprep.subr.mxu0 0.0
  %379 = vmatpush1.msra.mxu0 0.0
  %380 = vmatprep.subr.mxu0 0.0
  %381 = vmatpush1.msra.mxu0 0.0
  %382 = vmatprep.subr.mxu0 0.0
  %383 = vmatpush1.msra.mxu0 0.0
  %384 = vmatprep.subr.mxu0 0.0
  %385 = vmatpush1.msra.mxu0 0.0
  %386 = vmatprep.subr.mxu0 0.0
  %387 = vmatpush1.msra.mxu0 0.0
  %388 = vmatprep.subr.mxu0 0.0
  %389 = vmatpush1.msra.mxu0 0.0
  %390 = vmatprep.subr.mxu0 0.0
  %391 = vmatpush1.msra.mxu0 0.0
  %392 = vmatprep.subr.mxu0 0.0
  %393 = vmatpush1.msra.mxu0 0.0
  %394 = vmatprep.subr.mxu0 0.0
  %395 = vmatpush1.msra.mxu0 0.0
  %396 = vmatprep.subr.mxu0 0.0
  %397 = vmatpush1.msra.mxu0 0.0
  %398 = vmatprep.subr.mxu0 0.0
  %399 = vmatpush1.msra.mxu0 0.0
  %400 = vmatprep.subr.mxu0 0.0
  %401 = vmatpush1.msra.mxu0 0.0
  %402 = vmatprep.subr.mxu0 0.0
  %403 = vmatpush1.msra.mxu0 0.0
  %404 = vmatprep.subr.mxu0 0.0
  %405 = vmatpush1.msra.mxu0 0.0
  %406 = vmatprep.subr.mxu0 0.0
  %407 = vmatpush1.msra.mxu0 0.0
  %408 = vmatprep.subr.mxu0 0.0
  %409 = vmatpush1.msra.mxu0 0.0
  %410 = vmatprep.subr.mxu0 0.0
  %411 = vmatpush1.msra.mxu0 0.0
  %412 = vmatprep.subr.mxu0 0.0
  %413 = vmatpush1.msra.mxu0 0.0
  %414 = vmatprep.subr.mxu0 0.0
  %415 = vmatpush1.msra.mxu0 0.0
  %416 = vmatprep.subr.mxu0 0.0
  %417 = vmatpush1.msra.mxu0 0.0
  %418 = vmatprep.subr.mxu0 0.0
  %419 = vmatpush1.msra.mxu0 0.0
  %420 = vmatprep.subr.mxu0 0.0
  %421 = vmatpush1.msra.mxu0 0.0
  %422 = vmatprep.subr.mxu0 0.0
  %423 = vmatpush1.msra.mxu0 0.0
  %424 = vmatprep.subr.mxu0 0.0
  %425 = vmatpush1.msra.mxu0 0.0
  %426 = vmatprep.subr.mxu0 0.0
  %427 = vmatpush1.msra.mxu0 0.0
  %428 = vmatprep.subr.mxu0 0.0
  %429 = vmatpush1.msra.mxu0 0.0
  %430 = vmatprep.subr.mxu0 0.0
  %431 = vmatpush1.msra.mxu0 0.0
  %432 = vmatprep.subr.mxu0 0.0
  %433 = vmatpush1.msra.mxu0 0.0
  %434 = vmatprep.mubr.f32.mxu0 0.0
  %435 = vmatmul.mubr.f32.gmra.mrb[0].mxu0 %v368
  %v436 = vpop.f32.mrb[0].mxu0
  %v437 = vadd.f32 0.0, %v436
  %v438 = vpop.f32.mrb[0].mxu0
  %439 = vdwg.mxu0
  %vm441 = vcmask 257024
  %442 = vst.msk [vmem:[#allocation2 + $0x4] sm:$0xf] %vm441, %v285
  %vm443 = vcmask 519168
  %444 = vst.msk [vmem:[#allocation3 + $0x4] sm:$0xf] %vm443, %v437
  %s445 = scalar_lea.vmem %s1, 4
  %v446 = vld [vmem:[%s445] sm:$0xf]
  %v447 = vld [vmem:[#allocation2] sm:$0xff]
  %v448 = vld [vmem:[#allocation2 + $0x8] sm:$0xff]
  %v449 = vld [vmem:[#allocation2 + $0x10] sm:$0xff]
  %v450 = vld [vmem:[#allocation2 + $0x18] sm:$0xff]
  %v451 = vld [vmem:[#allocation2 + $0x20] sm:$0xff]
  %v453 = vsel %vm63, %v446, 0
  %455 = vmatprep.subr.mxu0 0.0
  %456 = vmatpush1.msra.mxu0 %v447
  %457 = vmatprep.subr.mxu0 0.0
  %458 = vmatpush1.msra.mxu0 %v448
  %459 = vmatprep.subr.mxu0 0.0
  %460 = vmatpush1.msra.mxu0 %v449
  %461 = vmatprep.subr.mxu0 0.0
  %462 = vmatpush1.msra.mxu0 %v450
  %463 = vmatprep.subr.mxu0 0.0
  %464 = vmatpush1.msra.mxu0 %v451
  %465 = vmatprep.subr.mxu0 0.0
  %466 = vmatpush1.msra.mxu0 0.0
  %467 = vmatprep.subr.mxu0 0.0
  %468 = vmatpush1.msra.mxu0 0.0
  %469 = vmatprep.subr.mxu0 0.0
  %470 = vmatpush1.msra.mxu0 0.0
  %471 = vmatprep.subr.mxu0 0.0
  %472 = vmatpush1.msra.mxu0 0.0
  %473 = vmatprep.subr.mxu0 0.0
  %474 = vmatpush1.msra.mxu0 0.0
  %475 = vmatprep.subr.mxu0 0.0
  %476 = vmatpush1.msra.mxu0 0.0
  %477 = vmatprep.subr.mxu0 0.0
  %478 = vmatpush1.msra.mxu0 0.0
  %479 = vmatprep.subr.mxu0 0.0
  %480 = vmatpush1.msra.mxu0 0.0
  %481 = vmatprep.subr.mxu0 0.0
  %482 = vmatpush1.msra.mxu0 0.0
  %483 = vmatprep.subr.mxu0 0.0
  %484 = vmatpush1.msra.mxu0 0.0
  %485 = vmatprep.subr.mxu0 0.0
  %486 = vmatpush1.msra.mxu0 0.0
  %487 = vmatprep.subr.mxu0 0.0
  %488 = vmatpush1.msra.mxu0 0.0
  %489 = vmatprep.subr.mxu0 0.0
  %490 = vmatpush1.msra.mxu0 0.0
  %491 = vmatprep.subr.mxu0 0.0
  %492 = vmatpush1.msra.mxu0 0.0
  %493 = vmatprep.subr.mxu0 0.0
  %494 = vmatpush1.msra.mxu0 0.0
  %495 = vmatprep.subr.mxu0 0.0
  %496 = vmatpush1.msra.mxu0 0.0
  %497 = vmatprep.subr.mxu0 0.0
  %498 = vmatpush1.msra.mxu0 0.0
  %499 = vmatprep.subr.mxu0 0.0
  %500 = vmatpush1.msra.mxu0 0.0
  %501 = vmatprep.subr.mxu0 0.0
  %502 = vmatpush1.msra.mxu0 0.0
  %503 = vmatprep.subr.mxu0 0.0
  %504 = vmatpush1.msra.mxu0 0.0
  %505 = vmatprep.subr.mxu0 0.0
  %506 = vmatpush1.msra.mxu0 0.0
  %507 = vmatprep.subr.mxu0 0.0
  %508 = vmatpush1.msra.mxu0 0.0
  %509 = vmatprep.subr.mxu0 0.0
  %510 = vmatpush1.msra.mxu0 0.0
  %511 = vmatprep.subr.mxu0 0.0
  %512 = vmatpush1.msra.mxu0 0.0
  %513 = vmatprep.subr.mxu0 0.0
  %514 = vmatpush1.msra.mxu0 0.0
  %515 = vmatprep.subr.mxu0 0.0
  %516 = vmatpush1.msra.mxu0 0.0
  %517 = vmatprep.subr.mxu0 0.0
  %518 = vmatpush1.msra.mxu0 0.0
  %519 = vmatprep.mubr.f32.mxu0 0.0
  %520 = vmatmul.mubr.f32.gmra.mrb[0].mxu0 %v453
  %v521 = vpop.f32.mrb[0].mxu0
  %v522 = vadd.f32 0.0, %v521
  %v523 = vpop.f32.mrb[0].mxu0
  %524 = vdwg.mxu0
  %526 = vrot.lane.b32.xlu0 %v437, 32
  %v527 = vpop.permute.xlu0 %526
  %v529 = vsel %vm35, %v522, %v527
  %v530 = vsel %vm142, %v529, %v272
  %s531 = scalar_lea.vmem %s0, 4
  %v532 = vld [vmem:[%s531] sm:$0xf]
  %v533 = vld [vmem:[%s7] sm:$0xff]
  %v534 = vld [vmem:[%s7 + $0x8] sm:$0xff]
  %v535 = vld [vmem:[%s7 + $0x10] sm:$0xff]
  %v536 = vld [vmem:[%s7 + $0x18] sm:$0xff]
  %v537 = vld [vmem:[%s7 + $0x20] sm:$0xff]
  %v538 = vld [vmem:[%s7 + $0x28] sm:$0xff]
  %v539 = vld [vmem:[%s7 + $0x30] sm:$0xff]
  %v540 = vld [vmem:[%s7 + $0x38] sm:$0xff]
  %v541 = vld [vmem:[%s7 + $0x40] sm:$0xff]
  %v542 = vld [vmem:[%s7 + $0x48] sm:$0xff]
  %v543 = vld [vmem:[%s7 + $0x50] sm:$0xff]
  %v544 = vld [vmem:[%s7 + $0x58] sm:$0xff]
  %v545 = vld [vmem:[%s7 + $0x60] sm:$0xff]
  %v546 = vld [vmem:[%s7 + $0x68] sm:$0xff]
  %v547 = vld [vmem:[%s7 + $0x70] sm:$0xff]
  %v548 = vld [vmem:[%s7 + $0x78] sm:$0xff]
  %549 = vmatprep.subr.mxu0 0.0
  %550 = vmatpush1.msra.mxu0 %v533
  %551 = vmatprep.subr.mxu0 0.0
  %552 = vmatpush1.msra.mxu0 %v534
  %553 = vmatprep.subr.mxu0 0.0
  %554 = vmatpush1.msra.mxu0 %v535
  %555 = vmatprep.subr.mxu0 0.0
  %556 = vmatpush1.msra.mxu0 %v536
  %557 = vmatprep.subr.mxu0 0.0
  %558 = vmatpush1.msra.mxu0 %v537
  %559 = vmatprep.subr.mxu0 0.0
  %560 = vmatpush1.msra.mxu0 %v538
  %561 = vmatprep.subr.mxu0 0.0
  %562 = vmatpush1.msra.mxu0 %v539
  %563 = vmatprep.subr.mxu0 0.0
  %564 = vmatpush1.msra.mxu0 %v540
  %565 = vmatprep.subr.mxu0 0.0
  %566 = vmatpush1.msra.mxu0 %v541
  %567 = vmatprep.subr.mxu0 0.0
  %568 = vmatpush1.msra.mxu0 %v542
  %569 = vmatprep.subr.mxu0 0.0
  %570 = vmatpush1.msra.mxu0 %v543
  %571 = vmatprep.subr.mxu0 0.0
  %572 = vmatpush1.msra.mxu0 %v544
  %573 = vmatprep.subr.mxu0 0.0
  %574 = vmatpush1.msra.mxu0 %v545
  %575 = vmatprep.subr.mxu0 0.0
  %576 = vmatpush1.msra.mxu0 %v546
  %577 = vmatprep.subr.mxu0 0.0
  %578 = vmatpush1.msra.mxu0 %v547
  %579 = vmatprep.subr.mxu0 0.0
  %580 = vmatpush1.msra.mxu0 %v548
  %581 = vmatprep.subr.mxu0 0.0
  %582 = vmatpush1.msra.mxu0 0.0
  %583 = vmatprep.subr.mxu0 0.0
  %584 = vmatpush1.msra.mxu0 0.0
  %585 = vmatprep.subr.mxu0 0.0
  %586 = vmatpush1.msra.mxu0 0.0
  %587 = vmatprep.subr.mxu0 0.0
  %588 = vmatpush1.msra.mxu0 0.0
  %589 = vmatprep.subr.mxu0 0.0
  %590 = vmatpush1.msra.mxu0 0.0
  %591 = vmatprep.subr.mxu0 0.0
  %592 = vmatpush1.msra.mxu0 0.0
  %593 = vmatprep.subr.mxu0 0.0
  %594 = vmatpush1.msra.mxu0 0.0
  %595 = vmatprep.subr.mxu0 0.0
  %596 = vmatpush1.msra.mxu0 0.0
  %597 = vmatprep.subr.mxu0 0.0
  %598 = vmatpush1.msra.mxu0 0.0
  %599 = vmatprep.subr.mxu0 0.0
  %600 = vmatpush1.msra.mxu0 0.0
  %601 = vmatprep.subr.mxu0 0.0
  %602 = vmatpush1.msra.mxu0 0.0
  %603 = vmatprep.subr.mxu0 0.0
  %604 = vmatpush1.msra.mxu0 0.0
  %605 = vmatprep.subr.mxu0 0.0
  %606 = vmatpush1.msra.mxu0 0.0
  %607 = vmatprep.subr.mxu0 0.0
  %608 = vmatpush1.msra.mxu0 0.0
  %609 = vmatprep.subr.mxu0 0.0
  %610 = vmatpush1.msra.mxu0 0.0
  %611 = vmatprep.subr.mxu0 0.0
  %612 = vmatpush1.msra.mxu0 0.0
  %613 = vmatprep.mubr.f32.mxu0 0.0
  %614 = vmatmul.mubr.f32.gmra.mrb[0].mxu0 %v530
  %v615 = vpop.f32.mrb[0].mxu0
  %v616 = vadd.f32 0.0, %v615
  %v617 = vpop.f32.mrb[0].mxu0
  %618 = vdwg.mxu0
  %v619 = vadd.f32 %v532, %v616
  %v620 = vxor.u32 %v619, 2147483648
  %v621 = vmul.f32 %v620, 1.442695
  %v622 = vpow.pop %v621
  %v623 = vadd.f32 %v622, 1.0
  %v624 = vrcp.pop %v623
  %v625 = vmul.f32 1.0, %v624
  %v626 = vtanh.pop %v619
  %v627 = vmul.f32 %v625, %v282
  %629 = vrot.lane.b32.xlu0 %v626, 64
  %v630 = vpop.permute.xlu0 %629
  %v632 = vmul.f32 %v625, %v630
  %634 = vrot.lane.b32.xlu0 %v632, 32
  %v635 = vpop.permute.xlu0 %634
  %v637 = vadd.f32 %v627, %v635
  %v638 = vtanh.pop %v637
  %640 = vrot.lane.b32.xlu0 %v638, 64
  %v641 = vpop.permute.xlu0 %640
  %v643 = vmul.f32 %v625, %v641
  %s644 = scalar_lea.vmem %s2, 4
  %v645 = vld [vmem:[%s644] sm:$0xf]
  %v646 = vsub.f32 1.0, %v645
  %648 = vrot.lane.b32.xlu0 %v645, 96
  %v649 = vpop.permute.xlu0 %648
  %v651 = vmul.f32 %v643, %v649
  %653 = vrot.lane.b32.xlu0 %v646, 96
  %v654 = vpop.permute.xlu0 %653
  %v656 = vmul.f32 %v272, %v654
  %v657 = vadd.f32 %v651, %v656
  %658 = vrot.lane.b32.xlu0 %v645, 32
  %v659 = vpop.permute.xlu0 %658
  %v661 = vmul.f32 %v637, %v659
  %662 = vrot.lane.b32.xlu0 %v646, 32
  %v663 = vpop.permute.xlu0 %662
  %v665 = vmul.f32 %v282, %v663
  %v666 = vadd.f32 %v661, %v665
  %668 = vrot.lane.b32.xlu0 %v657, 32
  %v669 = vpop.permute.xlu0 %668
  %v670 = vsel %vm35, %v669, 0
  %672 = vmatprep.subr.mxu0 0.0
  %673 = vmatpush1.msra.mxu0 %v47
  %674 = vmatprep.subr.mxu0 0.0
  %675 = vmatpush1.msra.mxu0 %v48
  %676 = vmatprep.subr.mxu0 0.0
  %677 = vmatpush1.msra.mxu0 %v49
  %678 = vmatprep.subr.mxu0 0.0
  %679 = vmatpush1.msra.mxu0 %v50
  %680 = vmatprep.subr.mxu0 0.0
  %681 = vmatpush1.msra.mxu0 0.0
  %682 = vmatprep.subr.mxu0 0.0
  %683 = vmatpush1.msra.mxu0 0.0
  %684 = vmatprep.subr.mxu0 0.0
  %685 = vmatpush1.msra.mxu0 0.0
  %686 = vmatprep.subr.mxu0 0.0
  %687 = vmatpush1.msra.mxu0 0.0
  %688 = vmatprep.subr.mxu0 0.0
  %689 = vmatpush1.msra.mxu0 0.0
  %690 = vmatprep.subr.mxu0 0.0
  %691 = vmatpush1.msra.mxu0 0.0
  %692 = vmatprep.subr.mxu0 0.0
  %693 = vmatpush1.msra.mxu0 0.0
  %694 = vmatprep.subr.mxu0 0.0
  %695 = vmatpush1.msra.mxu0 0.0
  %696 = vmatprep.subr.mxu0 0.0
  %697 = vmatpush1.msra.mxu0 0.0
  %698 = vmatprep.subr.mxu0 0.0
  %699 = vmatpush1.msra.mxu0 0.0
  %700 = vmatprep.subr.mxu0 0.0
  %701 = vmatpush1.msra.mxu0 0.0
  %702 = vmatprep.subr.mxu0 0.0
  %703 = vmatpush1.msra.mxu0 0.0
  %704 = vmatprep.subr.mxu0 0.0
  %705 = vmatpush1.msra.mxu0 0.0
  %706 = vmatprep.subr.mxu0 0.0
  %707 = vmatpush1.msra.mxu0 0.0
  %708 = vmatprep.subr.mxu0 0.0
  %709 = vmatpush1.msra.mxu0 0.0
  %710 = vmatprep.subr.mxu0 0.0
  %711 = vmatpush1.msra.mxu0 0.0
  %712 = vmatprep.subr.mxu0 0.0
  %713 = vmatpush1.msra.mxu0 0.0
  %714 = vmatprep.subr.mxu0 0.0
  %715 = vmatpush1.msra.mxu0 0.0
  %716 = vmatprep.subr.mxu0 0.0
  %717 = vmatpush1.msra.mxu0 0.0
  %718 = vmatprep.subr.mxu0 0.0
  %719 = vmatpush1.msra.mxu0 0.0
  %720 = vmatprep.subr.mxu0 0.0
  %721 = vmatpush1.msra.mxu0 0.0
  %722 = vmatprep.subr.mxu0 0.0
  %723 = vmatpush1.msra.mxu0 0.0
  %724 = vmatprep.subr.mxu0 0.0
  %725 = vmatpush1.msra.mxu0 0.0
  %726 = vmatprep.subr.mxu0 0.0
  %727 = vmatpush1.msra.mxu0 0.0
  %728 = vmatprep.subr.mxu0 0.0
  %729 = vmatpush1.msra.mxu0 0.0
  %730 = vmatprep.subr.mxu0 0.0
  %731 = vmatpush1.msra.mxu0 0.0
  %732 = vmatprep.subr.mxu0 0.0
  %733 = vmatpush1.msra.mxu0 0.0
  %734 = vmatprep.subr.mxu0 0.0
  %735 = vmatpush1.msra.mxu0 0.0
  %736 = vmatprep.mubr.f32.mxu0 0.0
  %737 = vmatmul.mubr.f32.gmra.mrb[0].mxu0 %v670
  %v738 = vpop.f32.mrb[0].mxu0
  %v739 = vadd.f32 %v51, %v738
  %v740 = vpop.f32.mrb[0].mxu0
  %741 = vdwg.mxu0
  %v742 = vmul.f32 %v739, 1.442695
  %v743 = vpow.pop %v742
  %v744 = vsel %vm360, %v743, 0.0
  %745 = vadd.xlane.f32.xlu0 %v744
  %v746 = vpop.xlane.xlu0 %745
  %v747 = vrcp.pop %v746
  %v748 = vmul.f32 %v743, %v747
  %v750 = vsel %vm366, %v748, 0
  %752 = vmatprep.subr.mxu0 0.0
  %753 = vmatpush1.msra.mxu0 %v52
  %754 = vmatprep.subr.mxu0 0.0
  %755 = vmatpush1.msra.mxu0 %v53
  %756 = vmatprep.subr.mxu0 0.0
  %757 = vmatpush1.msra.mxu0 0.0
  %758 = vmatprep.subr.mxu0 0.0
  %759 = vmatpush1.msra.mxu0 0.0
  %760 = vmatprep.subr.mxu0 0.0
  %761 = vmatpush1.msra.mxu0 0.0
  %762 = vmatprep.subr.mxu0 0.0
  %763 = vmatpush1.msra.mxu0 0.0
  %764 = vmatprep.subr.mxu0 0.0
  %765 = vmatpush1.msra.mxu0 0.0
  %766 = vmatprep.subr.mxu0 0.0
  %767 = vmatpush1.msra.mxu0 0.0
  %768 = vmatprep.subr.mxu0 0.0
  %769 = vmatpush1.msra.mxu0 0.0
  %770 = vmatprep.subr.mxu0 0.0
  %771 = vmatpush1.msra.mxu0 0.0
  %772 = vmatprep.subr.mxu0 0.0
  %773 = vmatpush1.msra.mxu0 0.0
  %774 = vmatprep.subr.mxu0 0.0
  %775 = vmatpush1.msra.mxu0 0.0
  %776 = vmatprep.subr.mxu0 0.0
  %777 = vmatpush1.msra.mxu0 0.0
  %778 = vmatprep.subr.mxu0 0.0
  %779 = vmatpush1.msra.mxu0 0.0
  %780 = vmatprep.subr.mxu0 0.0
  %781 = vmatpush1.msra.mxu0 0.0
  %782 = vmatprep.subr.mxu0 0.0
  %783 = vmatpush1.msra.mxu0 0.0
  %784 = vmatprep.subr.mxu0 0.0
  %785 = vmatpush1.msra.mxu0 0.0
  %786 = vmatprep.subr.mxu0 0.0
  %787 = vmatpush1.msra.mxu0 0.0
  %788 = vmatprep.subr.mxu0 0.0
  %789 = vmatpush1.msra.mxu0 0.0
  %790 = vmatprep.subr.mxu0 0.0
  %791 = vmatpush1.msra.mxu0 0.0
  %792 = vmatprep.subr.mxu0 0.0
  %793 = vmatpush1.msra.mxu0 0.0
  %794 = vmatprep.subr.mxu0 0.0
  %795 = vmatpush1.msra.mxu0 0.0
  %796 = vmatprep.subr.mxu0 0.0
  %797 = vmatpush1.msra.mxu0 0.0
  %798 = vmatprep.subr.mxu0 0.0
  %799 = vmatpush1.msra.mxu0 0.0
  %800 = vmatprep.subr.mxu0 0.0
  %801 = vmatpush1.msra.mxu0 0.0
  %802 = vmatprep.subr.mxu0 0.0
  %803 = vmatpush1.msra.mxu0 0.0
  %804 = vmatprep.subr.mxu0 0.0
  %805 = vmatpush1.msra.mxu0 0.0
  %806 = vmatprep.subr.mxu0 0.0
  %807 = vmatpush1.msra.mxu0 0.0
  %808 = vmatprep.subr.mxu0 0.0
  %809 = vmatpush1.msra.mxu0 0.0
  %810 = vmatprep.subr.mxu0 0.0
  %811 = vmatpush1.msra.mxu0 0.0
  %812 = vmatprep.subr.mxu0 0.0
  %813 = vmatpush1.msra.mxu0 0.0
  %814 = vmatprep.subr.mxu0 0.0
  %815 = vmatpush1.msra.mxu0 0.0
  %816 = vmatprep.mubr.f32.mxu0 0.0
  %817 = vmatmul.mubr.f32.gmra.mrb[0].mxu0 %v750
  %v818 = vpop.f32.mrb[0].mxu0
  %v819 = vadd.f32 0.0, %v818
  %v820 = vpop.f32.mrb[0].mxu0
  %821 = vdwg.mxu0
  %823 = vst.msk [vmem:[#allocation2 + $0x8] sm:$0xf] %vm441, %v669
  %824 = vst.msk [vmem:[#allocation3 + $0x8] sm:$0xf] %vm443, %v819
  %s825 = scalar_lea.vmem %s1, 8
  %v826 = vld [vmem:[%s825] sm:$0xf]
  %v827 = vld [vmem:[#allocation2] sm:$0xff]
  %v828 = vld [vmem:[#allocation2 + $0x8] sm:$0xff]
  %v829 = vld [vmem:[#allocation2 + $0x10] sm:$0xff]
  %v830 = vld [vmem:[#allocation2 + $0x18] sm:$0xff]
  %v831 = vld [vmem:[#allocation2 + $0x20] sm:$0xff]
  %v833 = vsel %vm63, %v826, 0
  %835 = vmatprep.subr.mxu0 0.0
  %836 = vmatpush1.msra.mxu0 %v827
  %837 = vmatprep.subr.mxu0 0.0
  %838 = vmatpush1.msra.mxu0 %v828
  %839 = vmatprep.subr.mxu0 0.0
  %840 = vmatpush1.msra.mxu0 %v829
  %841 = vmatprep.subr.mxu0 0.0
  %842 = vmatpush1.msra.mxu0 %v830
  %843 = vmatprep.subr.mxu0 0.0
  %844 = vmatpush1.msra.mxu0 %v831
  %845 = vmatprep.subr.mxu0 0.0
  %846 = vmatpush1.msra.mxu0 0.0
  %847 = vmatprep.subr.mxu0 0.0
  %848 = vmatpush1.msra.mxu0 0.0
  %849 = vmatprep.subr.mxu0 0.0
  %850 = vmatpush1.msra.mxu0 0.0
  %851 = vmatprep.subr.mxu0 0.0
  %852 = vmatpush1.msra.mxu0 0.0
  %853 = vmatprep.subr.mxu0 0.0
  %854 = vmatpush1.msra.mxu0 0.0
  %855 = vmatprep.subr.mxu0 0.0
  %856 = vmatpush1.msra.mxu0 0.0
  %857 = vmatprep.subr.mxu0 0.0
  %858 = vmatpush1.msra.mxu0 0.0
  %859 = vmatprep.subr.mxu0 0.0
  %860 = vmatpush1.msra.mxu0 0.0
  %861 = vmatprep.subr.mxu0 0.0
  %862 = vmatpush1.msra.mxu0 0.0
  %863 = vmatprep.subr.mxu0 0.0
  %864 = vmatpush1.msra.mxu0 0.0
  %865 = vmatprep.subr.mxu0 0.0
  %866 = vmatpush1.msra.mxu0 0.0
  %867 = vmatprep.subr.mxu0 0.0
  %868 = vmatpush1.msra.mxu0 0.0
  %869 = vmatprep.subr.mxu0 0.0
  %870 = vmatpush1.msra.mxu0 0.0
  %871 = vmatprep.subr.mxu0 0.0
  %872 = vmatpush1.msra.mxu0 0.0
  %873 = vmatprep.subr.mxu0 0.0
  %874 = vmatpush1.msra.mxu0 0.0
  %875 = vmatprep.subr.mxu0 0.0
  %876 = vmatpush1.msra.mxu0 0.0
  %877 = vmatprep.subr.mxu0 0.0
  %878 = vmatpush1.msra.mxu0 0.0
  %879 = vmatprep.subr.mxu0 0.0
  %880 = vmatpush1.msra.mxu0 0.0
  %881 = vmatprep.subr.mxu0 0.0
  %882 = vmatpush1.msra.mxu0 0.0
  %883 = vmatprep.subr.mxu0 0.0
  %884 = vmatpush1.msra.mxu0 0.0
  %885 = vmatprep.subr.mxu0 0.0
  %886 = vmatpush1.msra.mxu0 0.0
  %887 = vmatprep.subr.mxu0 0.0
  %888 = vmatpush1.msra.mxu0 0.0
  %889 = vmatprep.subr.mxu0 0.0
  %890 = vmatpush1.msra.mxu0 0.0
  %891 = vmatprep.subr.mxu0 0.0
  %892 = vmatpush1.msra.mxu0 0.0
  %893 = vmatprep.subr.mxu0 0.0
  %894 = vmatpush1.msra.mxu0 0.0
  %895 = vmatprep.subr.mxu0 0.0
  %896 = vmatpush1.msra.mxu0 0.0
  %897 = vmatprep.subr.mxu0 0.0
  %898 = vmatpush1.msra.mxu0 0.0
  %899 = vmatprep.mubr.f32.mxu0 0.0
  %900 = vmatmul.mubr.f32.gmra.mrb[0].mxu0 %v833
  %v901 = vpop.f32.mrb[0].mxu0
  %v902 = vadd.f32 0.0, %v901
  %v903 = vpop.f32.mrb[0].mxu0
  %904 = vdwg.mxu0
  %906 = vrot.lane.b32.xlu0 %v819, 32
  %v907 = vpop.permute.xlu0 %906
  %v909 = vsel %vm35, %v902, %v907
  %v910 = vsel %vm142, %v909, %v657
  %s911 = scalar_lea.vmem %s0, 8
  %v912 = vld [vmem:[%s911] sm:$0xf]
  %v913 = vld [vmem:[%s7] sm:$0xff]
  %v914 = vld [vmem:[%s7 + $0x8] sm:$0xff]
  %v915 = vld [vmem:[%s7 + $0x10] sm:$0xff]
  %v916 = vld [vmem:[%s7 + $0x18] sm:$0xff]
  %v917 = vld [vmem:[%s7 + $0x20] sm:$0xff]
  %v918 = vld [vmem:[%s7 + $0x28] sm:$0xff]
  %v919 = vld [vmem:[%s7 + $0x30] sm:$0xff]
  %v920 = vld [vmem:[%s7 + $0x38] sm:$0xff]
  %v921 = vld [vmem:[%s7 + $0x40] sm:$0xff]
  %v922 = vld [vmem:[%s7 + $0x48] sm:$0xff]
  %v923 = vld [vmem:[%s7 + $0x50] sm:$0xff]
  %v924 = vld [vmem:[%s7 + $0x58] sm:$0xff]
  %v925 = vld [vmem:[%s7 + $0x60] sm:$0xff]
  %v926 = vld [vmem:[%s7 + $0x68] sm:$0xff]
  %v927 = vld [vmem:[%s7 + $0x70] sm:$0xff]
  %v928 = vld [vmem:[%s7 + $0x78] sm:$0xff]
  %929 = vmatprep.subr.mxu0 0.0
  %930 = vmatpush1.msra.mxu0 %v913
  %931 = vmatprep.subr.mxu0 0.0
  %932 = vmatpush1.msra.mxu0 %v914
  %933 = vmatprep.subr.mxu0 0.0
  %934 = vmatpush1.msra.mxu0 %v915
  %935 = vmatprep.subr.mxu0 0.0
  %936 = vmatpush1.msra.mxu0 %v916
  %937 = vmatprep.subr.mxu0 0.0
  %938 = vmatpush1.msra.mxu0 %v917
  %939 = vmatprep.subr.mxu0 0.0
  %940 = vmatpush1.msra.mxu0 %v918
  %941 = vmatprep.subr.mxu0 0.0
  %942 = vmatpush1.msra.mxu0 %v919
  %943 = vmatprep.subr.mxu0 0.0
  %944 = vmatpush1.msra.mxu0 %v920
  %945 = vmatprep.subr.mxu0 0.0
  %946 = vmatpush1.msra.mxu0 %v921
  %947 = vmatprep.subr.mxu0 0.0
  %948 = vmatpush1.msra.mxu0 %v922
  %949 = vmatprep.subr.mxu0 0.0
  %950 = vmatpush1.msra.mxu0 %v923
  %951 = vmatprep.subr.mxu0 0.0
  %952 = vmatpush1.msra.mxu0 %v924
  %953 = vmatprep.subr.mxu0 0.0
  %954 = vmatpush1.msra.mxu0 %v925
  %955 = vmatprep.subr.mxu0 0.0
  %956 = vmatpush1.msra.mxu0 %v926
  %957 = vmatprep.subr.mxu0 0.0
  %958 = vmatpush1.msra.mxu0 %v927
  %959 = vmatprep.subr.mxu0 0.0
  %960 = vmatpush1.msra.mxu0 %v928
  %961 = vmatprep.subr.mxu0 0.0
  %962 = vmatpush1.msra.mxu0 0.0
  %963 = vmatprep.subr.mxu0 0.0
  %964 = vmatpush1.msra.mxu0 0.0
  %965 = vmatprep.subr.mxu0 0.0
  %966 = vmatpush1.msra.mxu0 0.0
  %967 = vmatprep.subr.mxu0 0.0
  %968 = vmatpush1.msra.mxu0 0.0
  %969 = vmatprep.subr.mxu0 0.0
  %970 = vmatpush1.msra.mxu0 0.0
  %971 = vmatprep.subr.mxu0 0.0
  %972 = vmatpush1.msra.mxu0 0.0
  %973 = vmatprep.subr.mxu0 0.0
  %974 = vmatpush1.msra.mxu0 0.0
  %975 = vmatprep.subr.mxu0 0.0
  %976 = vmatpush1.msra.mxu0 0.0
  %977 = vmatprep.subr.mxu0 0.0
  %978 = vmatpush1.msra.mxu0 0.0
  %979 = vmatprep.subr.mxu0 0.0
  %980 = vmatpush1.msra.mxu0 0.0
  %981 = vmatprep.subr.mxu0 0.0
  %982 = vmatpush1.msra.mxu0 0.0
  %983 = vmatprep.subr.mxu0 0.0
  %984 = vmatpush1.msra.mxu0 0.0
  %985 = vmatprep.subr.mxu0 0.0
  %986 = vmatpush1.msra.mxu0 0.0
  %987 = vmatprep.subr.mxu0 0.0
  %988 = vmatpush1.msra.mxu0 0.0
  %989 = vmatprep.subr.mxu0 0.0
  %990 = vmatpush1.msra.mxu0 0.0
  %991 = vmatprep.subr.mxu0 0.0
  %992 = vmatpush1.msra.mxu0 0.0
  %993 = vmatprep.mubr.f32.mxu0 0.0
  %994 = vmatmul.mubr.f32.gmra.mrb[0].mxu0 %v910
  %v995 = vpop.f32.mrb[0].mxu0
  %v996 = vadd.f32 0.0, %v995
  %v997 = vpop.f32.mrb[0].mxu0
  %998 = vdwg.mxu0
  %v999 = vadd.f32 %v912, %v996
  %v1000 = vxor.u32 %v999, 2147483648
  %v1001 = vmul.f32 %v1000, 1.442695
  %v1002 = vpow.pop %v1001
  %v1003 = vadd.f32 %v1002, 1.0
  %v1004 = vrcp.pop %v1003
  %v1005 = vmul.f32 1.0, %v1004
  %v1006 = vtanh.pop %v999
  %v1007 = vmul.f32 %v1005, %v666
  %1009 = vrot.lane.b32.xlu0 %v1006, 64
  %v1010 = vpop.permute.xlu0 %1009
  %v1012 = vmul.f32 %v1005, %v1010
  %1014 = vrot.lane.b32.xlu0 %v1012, 32
  %v1015 = vpop.permute.xlu0 %1014
  %v1017 = vadd.f32 %v1007, %v1015
  %v1018 = vtanh.pop %v1017
  %1020 = vrot.lane.b32.xlu0 %v1018, 64
  %v1021 = vpop.permute.xlu0 %1020
  %v1023 = vmul.f32 %v1005, %v1021
  %s1024 = scalar_lea.vmem %s2, 8
  %v1025 = vld [vmem:[%s1024] sm:$0xf]
  %v1026 = vsub.f32 1.0, %v1025
  %1028 = vrot.lane.b32.xlu0 %v1025, 96
  %v1029 = vpop.permute.xlu0 %1028
  %v1031 = vmul.f32 %v1023, %v1029
  %1033 = vrot.lane.b32.xlu0 %v1026, 96
  %v1034 = vpop.permute.xlu0 %1033
  %v1036 = vmul.f32 %v657, %v1034
  %v1037 = vadd.f32 %v1031, %v1036
  %1038 = vrot.lane.b32.xlu0 %v1025, 32
  %v1039 = vpop.permute.xlu0 %1038
  %v1041 = vmul.f32 %v1017, %v1039
  %1042 = vrot.lane.b32.xlu0 %v1026, 32
  %v1043 = vpop.permute.xlu0 %1042
  %v1045 = vmul.f32 %v666, %v1043
  %v1046 = vadd.f32 %v1041, %v1045
  %1048 = vrot.lane.b32.xlu0 %v1037, 32
  %v1049 = vpop.permute.xlu0 %1048
  %v1050 = vsel %vm35, %v1049, 0
  %1052 = vmatprep.subr.mxu0 0.0
  %1053 = vmatpush1.msra.mxu0 %v47
  %1054 = vmatprep.subr.mxu0 0.0
  %1055 = vmatpush1.msra.mxu0 %v48
  %1056 = vmatprep.subr.mxu0 0.0
  %1057 = vmatpush1.msra.mxu0 %v49
  %1058 = vmatprep.subr.mxu0 0.0
  %1059 = vmatpush1.msra.mxu0 %v50
  %1060 = vmatprep.subr.mxu0 0.0
  %1061 = vmatpush1.msra.mxu0 0.0
  %1062 = vmatprep.subr.mxu0 0.0
  %1063 = vmatpush1.msra.mxu0 0.0
  %1064 = vmatprep.subr.mxu0 0.0
  %1065 = vmatpush1.msra.mxu0 0.0
  %1066 = vmatprep.subr.mxu0 0.0
  %1067 = vmatpush1.msra.mxu0 0.0
  %1068 = vmatprep.subr.mxu0 0.0
  %1069 = vmatpush1.msra.mxu0 0.0
  %1070 = vmatprep.subr.mxu0 0.0
  %1071 = vmatpush1.msra.mxu0 0.0
  %1072 = vmatprep.subr.mxu0 0.0
  %1073 = vmatpush1.msra.mxu0 0.0
  %1074 = vmatprep.subr.mxu0 0.0
  %1075 = vmatpush1.msra.mxu0 0.0
  %1076 = vmatprep.subr.mxu0 0.0
  %1077 = vmatpush1.msra.mxu0 0.0
  %1078 = vmatprep.subr.mxu0 0.0
  %1079 = vmatpush1.msra.mxu0 0.0
  %1080 = vmatprep.subr.mxu0 0.0
  %1081 = vmatpush1.msra.mxu0 0.0
  %1082 = vmatprep.subr.mxu0 0.0
  %1083 = vmatpush1.msra.mxu0 0.0
  %1084 = vmatprep.subr.mxu0 0.0
  %1085 = vmatpush1.msra.mxu0 0.0
  %1086 = vmatprep.subr.mxu0 0.0
  %1087 = vmatpush1.msra.mxu0 0.0
  %1088 = vmatprep.subr.mxu0 0.0
  %1089 = vmatpush1.msra.mxu0 0.0
  %1090 = vmatprep.subr.mxu0 0.0
  %1091 = vmatpush1.msra.mxu0 0.0
  %1092 = vmatprep.subr.mxu0 0.0
  %1093 = vmatpush1.msra.mxu0 0.0
  %1094 = vmatprep.subr.mxu0 0.0
  %1095 = vmatpush1.msra.mxu0 0.0
  %1096 = vmatprep.subr.mxu0 0.0
  %1097 = vmatpush1.msra.mxu0 0.0
  %1098 = vmatprep.subr.mxu0 0.0
  %1099 = vmatpush1.msra.mxu0 0.0
  %1100 = vmatprep.subr.mxu0 0.0
  %1101 = vmatpush1.msra.mxu0 0.0
  %1102 = vmatprep.subr.mxu0 0.0
  %1103 = vmatpush1.msra.mxu0 0.0
  %1104 = vmatprep.subr.mxu0 0.0
  %1105 = vmatpush1.msra.mxu0 0.0
  %1106 = vmatprep.subr.mxu0 0.0
  %1107 = vmatpush1.msra.mxu0 0.0
  %1108 = vmatprep.subr.mxu0 0.0
  %1109 = vmatpush1.msra.mxu0 0.0
  %1110 = vmatprep.subr.mxu0 0.0
  %1111 = vmatpush1.msra.mxu0 0.0
  %1112 = vmatprep.subr.mxu0 0.0
  %1113 = vmatpush1.msra.mxu0 0.0
  %1114 = vmatprep.subr.mxu0 0.0
  %1115 = vmatpush1.msra.mxu0 0.0
  %1116 = vmatprep.mubr.f32.mxu0 0.0
  %1117 = vmatmul.mubr.f32.gmra.mrb[0].mxu0 %v1050
  %v1118 = vpop.f32.mrb[0].mxu0
  %v1119 = vadd.f32 %v51, %v1118
  %v1120 = vpop.f32.mrb[0].mxu0
  %1121 = vdwg.mxu0
  %v1122 = vmul.f32 %v1119, 1.442695
  %v1123 = vpow.pop %v1122
  %v1124 = vsel %vm360, %v1123, 0.0
  %1125 = vadd.xlane.f32.xlu0 %v1124
  %v1126 = vpop.xlane.xlu0 %1125
  %v1127 = vrcp.pop %v1126
  %v1128 = vmul.f32 %v1123, %v1127
  %v1130 = vsel %vm366, %v1128, 0
  %1132 = vmatprep.subr.mxu0 0.0
  %1133 = vmatpush1.msra.mxu0 %v52
  %1134 = vmatprep.subr.mxu0 0.0
  %1135 = vmatpush1.msra.mxu0 %v53
  %1136 = vmatprep.subr.mxu0 0.0
  %1137 = vmatpush1.msra.mxu0 0.0
  %1138 = vmatprep.subr.mxu0 0.0
  %1139 = vmatpush1.msra.mxu0 0.0
  %1140 = vmatprep.subr.mxu0 0.0
  %1141 = vmatpush1.msra.mxu0 0.0
  %1142 = vmatprep.subr.mxu0 0.0
  %1143 = vmatpush1.msra.mxu0 0.0
  %1144 = vmatprep.subr.mxu0 0.0
  %1145 = vmatpush1.msra.mxu0 0.0
  %1146 = vmatprep.subr.mxu0 0.0
  %1147 = vmatpush1.msra.mxu0 0.0
  %1148 = vmatprep.subr.mxu0 0.0
  %1149 = vmatpush1.msra.mxu0 0.0
  %1150 = vmatprep.subr.mxu0 0.0
  %1151 = vmatpush1.msra.mxu0 0.0
  %1152 = vmatprep.subr.mxu0 0.0
  %1153 = vmatpush1.msra.mxu0 0.0
  %1154 = vmatprep.subr.mxu0 0.0
  %1155 = vmatpush1.msra.mxu0 0.0
  %1156 = vmatprep.subr.mxu0 0.0
  %1157 = vmatpush1.msra.mxu0 0.0
  %1158 = vmatprep.subr.mxu0 0.0
  %1159 = vmatpush1.msra.mxu0 0.0
  %1160 = vmatprep.subr.mxu0 0.0
  %1161 = vmatpush1.msra.mxu0 0.0
  %1162 = vmatprep.subr.mxu0 0.0
  %1163 = vmatpush1.msra.mxu0 0.0
  %1164 = vmatprep.subr.mxu0 0.0
  %1165 = vmatpush1.msra.mxu0 0.0
  %1166 = vmatprep.subr.mxu0 0.0
  %1167 = vmatpush1.msra.mxu0 0.0
  %1168 = vmatprep.subr.mxu0 0.0
  %1169 = vmatpush1.msra.mxu0 0.0
  %1170 = vmatprep.subr.mxu0 0.0
  %1171 = vmatpush1.msra.mxu0 0.0
  %1172 = vmatprep.subr.mxu0 0.0
  %1173 = vmatpush1.msra.mxu0 0.0
  %1174 = vmatprep.subr.mxu0 0.0
  %1175 = vmatpush1.msra.mxu0 0.0
  %1176 = vmatprep.subr.mxu0 0.0
  %1177 = vmatpush1.msra.mxu0 0.0
  %1178 = vmatprep.subr.mxu0 0.0
  %1179 = vmatpush1.msra.mxu0 0.0
  %1180 = vmatprep.subr.mxu0 0.0
  %1181 = vmatpush1.msra.mxu0 0.0
  %1182 = vmatprep.subr.mxu0 0.0
  %1183 = vmatpush1.msra.mxu0 0.0
  %1184 = vmatprep.subr.mxu0 0.0
  %1185 = vmatpush1.msra.mxu0 0.0
  %1186 = vmatprep.subr.mxu0 0.0
  %1187 = vmatpush1.msra.mxu0 0.0
  %1188 = vmatprep.subr.mxu0 0.0
  %1189 = vmatpush1.msra.mxu0 0.0
  %1190 = vmatprep.subr.mxu0 0.0
  %1191 = vmatpush1.msra.mxu0 0.0
  %1192 = vmatprep.subr.mxu0 0.0
  %1193 = vmatpush1.msra.mxu0 0.0
  %1194 = vmatprep.subr.mxu0 0.0
  %1195 = vmatpush1.msra.mxu0 0.0
  %1196 = vmatprep.mubr.f32.mxu0 0.0
  %1197 = vmatmul.mubr.f32.gmra.mrb[0].mxu0 %v1130
  %v1198 = vpop.f32.mrb[0].mxu0
  %v1199 = vadd.f32 0.0, %v1198
  %v1200 = vpop.f32.mrb[0].mxu0
  %1201 = vdwg.mxu0
  %1203 = vst.msk [vmem:[#allocation2 + $0xc] sm:$0xf] %vm441, %v1049
  %1204 = vst.msk [vmem:[#allocation3 + $0xc] sm:$0xf] %vm443, %v1199
  %s1205 = scalar_lea.vmem %s1, 12
  %v1206 = vld [vmem:[%s1205] sm:$0xf]
  %v1207 = vld [vmem:[#allocation2] sm:$0xff]
  %v1208 = vld [vmem:[#allocation2 + $0x8] sm:$0xff]
  %v1209 = vld [vmem:[#allocation2 + $0x10] sm:$0xff]
  %v1210 = vld [vmem:[#allocation2 + $0x18] sm:$0xff]
  %v1211 = vld [vmem:[#allocation2 + $0x20] sm:$0xff]
  %v1213 = vsel %vm63, %v1206, 0
  %1215 = vmatprep.subr.mxu0 0.0
  %1216 = vmatpush1.msra.mxu0 %v1207
  %1217 = vmatprep.subr.mxu0 0.0
  %1218 = vmatpush1.msra.mxu0 %v1208
  %1219 = vmatprep.subr.mxu0 0.0
  %1220 = vmatpush1.msra.mxu0 %v1209
  %1221 = vmatprep.subr.mxu0 0.0
  %1222 = vmatpush1.msra.mxu0 %v1210
  %1223 = vmatprep.subr.mxu0 0.0
  %1224 = vmatpush1.msra.mxu0 %v1211
  %1225 = vmatprep.subr.mxu0 0.0
  %1226 = vmatpush1.msra.mxu0 0.0
  %1227 = vmatprep.subr.mxu0 0.0
  %1228 = vmatpush1.msra.mxu0 0.0
  %1229 = vmatprep.subr.mxu0 0.0
  %1230 = vmatpush1.msra.mxu0 0.0
  %1231 = vmatprep.subr.mxu0 0.0
  %1232 = vmatpush1.msra.mxu0 0.0
  %1233 = vmatprep.subr.mxu0 0.0
  %1234 = vmatpush1.msra.mxu0 0.0
  %1235 = vmatprep.subr.mxu0 0.0
  %1236 = vmatpush1.msra.mxu0 0.0
  %1237 = vmatprep.subr.mxu0 0.0
  %1238 = vmatpush1.msra.mxu0 0.0
  %1239 = vmatprep.subr.mxu0 0.0
  %1240 = vmatpush1.msra.mxu0 0.0
  %1241 = vmatprep.subr.mxu0 0.0
  %1242 = vmatpush1.msra.mxu0 0.0
  %1243 = vmatprep.subr.mxu0 0.0
  %1244 = vmatpush1.msra.mxu0 0.0
  %1245 = vmatprep.subr.mxu0 0.0
  %1246 = vmatpush1.msra.mxu0 0.0
  %1247 = vmatprep.subr.mxu0 0.0
  %1248 = vmatpush1.msra.mxu0 0.0
  %1249 = vmatprep.subr.mxu0 0.0
  %1250 = vmatpush1.msra.mxu0 0.0
  %1251 = vmatprep.subr.mxu0 0.0
  %1252 = vmatpush1.msra.mxu0 0.0
  %1253 = vmatprep.subr.mxu0 0.0
  %1254 = vmatpush1.msra.mxu0 0.0
  %1255 = vmatprep.subr.mxu0 0.0
  %1256 = vmatpush1.msra.mxu0 0.0
  %1257 = vmatprep.subr.mxu0 0.0
  %1258 = vmatpush1.msra.mxu0 0.0
  %1259 = vmatprep.subr.mxu0 0.0
  %1260 = vmatpush1.msra.mxu0 0.0
  %1261 = vmatprep.subr.mxu0 0.0
  %1262 = vmatpush1.msra.mxu0 0.0
  %1263 = vmatprep.subr.mxu0 0.0
  %1264 = vmatpush1.msra.mxu0 0.0
  %1265 = vmatprep.subr.mxu0 0.0
  %1266 = vmatpush1.msra.mxu0 0.0
  %1267 = vmatprep.subr.mxu0 0.0
  %1268 = vmatpush1.msra.mxu0 0.0
  %1269 = vmatprep.subr.mxu0 0.0
  %1270 = vmatpush1.msra.mxu0 0.0
  %1271 = vmatprep.subr.mxu0 0.0
  %1272 = vmatpush1.msra.mxu0 0.0
  %1273 = vmatprep.subr.mxu0 0.0
  %1274 = vmatpush1.msra.mxu0 0.0
  %1275 = vmatprep.subr.mxu0 0.0
  %1276 = vmatpush1.msra.mxu0 0.0
  %1277 = vmatprep.subr.mxu0 0.0
  %1278 = vmatpush1.msra.mxu0 0.0
  %1279 = vmatprep.mubr.f32.mxu0 0.0
  %1280 = vmatmul.mubr.f32.gmra.mrb[0].mxu0 %v1213
  %v1281 = vpop.f32.mrb[0].mxu0
  %v1282 = vadd.f32 0.0, %v1281
  %v1283 = vpop.f32.mrb[0].mxu0
  %1284 = vdwg.mxu0
  %1286 = vrot.lane.b32.xlu0 %v1199, 32
  %v1287 = vpop.permute.xlu0 %1286
  %v1289 = vsel %vm35, %v1282, %v1287
  %v1290 = vsel %vm142, %v1289, %v1037
  %s1291 = scalar_lea.vmem %s0, 12
  %v1292 = vld [vmem:[%s1291] sm:$0xf]
  %v1293 = vld [vmem:[%s7] sm:$0xff]
  %v1294 = vld [vmem:[%s7 + $0x8] sm:$0xff]
  %v1295 = vld [vmem:[%s7 + $0x10] sm:$0xff]
  %v1296 = vld [vmem:[%s7 + $0x18] sm:$0xff]
  %v1297 = vld [vmem:[%s7 + $0x20] sm:$0xff]
  %v1298 = vld [vmem:[%s7 + $0x28] sm:$0xff]
  %v1299 = vld [vmem:[%s7 + $0x30] sm:$0xff]
  %v1300 = vld [vmem:[%s7 + $0x38] sm:$0xff]
  %v1301 = vld [vmem:[%s7 + $0x40] sm:$0xff]
  %v1302 = vld [vmem:[%s7 + $0x48] sm:$0xff]
  %v1303 = vld [vmem:[%s7 + $0x50] sm:$0xff]
  %v1304 = vld [vmem:[%s7 + $0x58] sm:$0xff]
  %v1305 = vld [vmem:[%s7 + $0x60] sm:$0xff]
  %v1306 = vld [vmem:[%s7 + $0x68] sm:$0xff]
  %v1307 = vld [vmem:[%s7 + $0x70] sm:$0xff]
  %v1308 = vld [vmem:[%s7 + $0x78] sm:$0xff]
  %1309 = vmatprep.subr.mxu0 0.0
  %1310 = vmatpush1.msra.mxu0 %v1293
  %1311 = vmatprep.subr.mxu0 0.0
  %1312 = vmatpush1.msra.mxu0 %v1294
  %1313 = vmatprep.subr.mxu0 0.0
  %1314 = vmatpush1.msra.mxu0 %v1295
  %1315 = vmatprep.subr.mxu0 0.0
  %1316 = vmatpush1.msra.mxu0 %v1296
  %1317 = vmatprep.subr.mxu0 0.0
  %1318 = vmatpush1.msra.mxu0 %v1297
  %1319 = vmatprep.subr.mxu0 0.0
  %1320 = vmatpush1.msra.mxu0 %v1298
  %1321 = vmatprep.subr.mxu0 0.0
  %1322 = vmatpush1.msra.mxu0 %v1299
  %1323 = vmatprep.subr.mxu0 0.0
  %1324 = vmatpush1.msra.mxu0 %v1300
  %1325 = vmatprep.subr.mxu0 0.0
  %1326 = vmatpush1.msra.mxu0 %v1301
  %1327 = vmatprep.subr.mxu0 0.0
  %1328 = vmatpush1.msra.mxu0 %v1302
  %1329 = vmatprep.subr.mxu0 0.0
  %1330 = vmatpush1.msra.mxu0 %v1303
  %1331 = vmatprep.subr.mxu0 0.0
  %1332 = vmatpush1.msra.mxu0 %v1304
  %1333 = vmatprep.subr.mxu0 0.0
  %1334 = vmatpush1.msra.mxu0 %v1305
  %1335 = vmatprep.subr.mxu0 0.0
  %1336 = vmatpush1.msra.mxu0 %v1306
  %1337 = vmatprep.subr.mxu0 0.0
  %1338 = vmatpush1.msra.mxu0 %v1307
  %1339 = vmatprep.subr.mxu0 0.0
  %1340 = vmatpush1.msra.mxu0 %v1308
  %1341 = vmatprep.subr.mxu0 0.0
  %1342 = vmatpush1.msra.mxu0 0.0
  %1343 = vmatprep.subr.mxu0 0.0
  %1344 = vmatpush1.msra.mxu0 0.0
  %1345 = vmatprep.subr.mxu0 0.0
  %1346 = vmatpush1.msra.mxu0 0.0
  %1347 = vmatprep.subr.mxu0 0.0
  %1348 = vmatpush1.msra.mxu0 0.0
  %1349 = vmatprep.subr.mxu0 0.0
  %1350 = vmatpush1.msra.mxu0 0.0
  %1351 = vmatprep.subr.mxu0 0.0
  %1352 = vmatpush1.msra.mxu0 0.0
  %1353 = vmatprep.subr.mxu0 0.0
  %1354 = vmatpush1.msra.mxu0 0.0
  %1355 = vmatprep.subr.mxu0 0.0
  %1356 = vmatpush1.msra.mxu0 0.0
  %1357 = vmatprep.subr.mxu0 0.0
  %1358 = vmatpush1.msra.mxu0 0.0
  %1359 = vmatprep.subr.mxu0 0.0
  %1360 = vmatpush1.msra.mxu0 0.0
  %1361 = vmatprep.subr.mxu0 0.0
  %1362 = vmatpush1.msra.mxu0 0.0
  %1363 = vmatprep.subr.mxu0 0.0
  %1364 = vmatpush1.msra.mxu0 0.0
  %1365 = vmatprep.subr.mxu0 0.0
  %1366 = vmatpush1.msra.mxu0 0.0
  %1367 = vmatprep.subr.mxu0 0.0
  %1368 = vmatpush1.msra.mxu0 0.0
  %1369 = vmatprep.subr.mxu0 0.0
  %1370 = vmatpush1.msra.mxu0 0.0
  %1371 = vmatprep.subr.mxu0 0.0
  %1372 = vmatpush1.msra.mxu0 0.0
  %1373 = vmatprep.mubr.f32.mxu0 0.0
  %1374 = vmatmul.mubr.f32.gmra.mrb[0].mxu0 %v1290
  %v1375 = vpop.f32.mrb[0].mxu0
  %v1376 = vadd.f32 0.0, %v1375
  %v1377 = vpop.f32.mrb[0].mxu0
  %1378 = vdwg.mxu0
  %v1379 = vadd.f32 %v1292, %v1376
  %v1380 = vxor.u32 %v1379, 2147483648
  %v1381 = vmul.f32 %v1380, 1.442695
  %v1382 = vpow.pop %v1381
  %v1383 = vadd.f32 %v1382, 1.0
  %v1384 = vrcp.pop %v1383
  %v1385 = vmul.f32 1.0, %v1384
  %v1386 = vtanh.pop %v1379
  %v1387 = vmul.f32 %v1385, %v1046
  %1389 = vrot.lane.b32.xlu0 %v1386, 64
  %v1390 = vpop.permute.xlu0 %1389
  %v1392 = vmul.f32 %v1385, %v1390
  %1394 = vrot.lane.b32.xlu0 %v1392, 32
  %v1395 = vpop.permute.xlu0 %1394
  %v1397 = vadd.f32 %v1387, %v1395
  %v1398 = vtanh.pop %v1397
  %1400 = vrot.lane.b32.xlu0 %v1398, 64
  %v1401 = vpop.permute.xlu0 %1400
  %v1403 = vmul.f32 %v1385, %v1401
  %s1404 = scalar_lea.vmem %s2, 12
  %v1405 = vld [vmem:[%s1404] sm:$0xf]
  %v1406 = vsub.f32 1.0, %v1405
  %1408 = vrot.lane.b32.xlu0 %v1405, 96
  %v1409 = vpop.permute.xlu0 %1408
  %v1411 = vmul.f32 %v1403, %v1409
  %1413 = vrot.lane.b32.xlu0 %v1406, 96
  %v1414 = vpop.permute.xlu0 %1413
  %v1416 = vmul.f32 %v1037, %v1414
  %v1417 = vadd.f32 %v1411, %v1416
  %1418 = vrot.lane.b32.xlu0 %v1405, 32
  %v1419 = vpop.permute.xlu0 %1418
  %v1421 = vmul.f32 %v1397, %v1419
  %1422 = vrot.lane.b32.xlu0 %v1406, 32
  %v1423 = vpop.permute.xlu0 %1422
  %v1425 = vmul.f32 %v1046, %v1423
  %v1426 = vadd.f32 %v1421, %v1425
  %1428 = vrot.lane.b32.xlu0 %v1417, 32
  %v1429 = vpop.permute.xlu0 %1428
  %v1430 = vsel %vm35, %v1429, 0
  %1432 = vmatprep.subr.mxu0 0.0
  %1433 = vmatpush1.msra.mxu0 %v47
  %1434 = vmatprep.subr.mxu0 0.0
  %1435 = vmatpush1.msra.mxu0 %v48
  %1436 = vmatprep.subr.mxu0 0.0
  %1437 = vmatpush1.msra.mxu0 %v49
  %1438 = vmatprep.subr.mxu0 0.0
  %1439 = vmatpush1.msra.mxu0 %v50
  %1440 = vmatprep.subr.mxu0 0.0
  %1441 = vmatpush1.msra.mxu0 0.0
  %1442 = vmatprep.subr.mxu0 0.0
  %1443 = vmatpush1.msra.mxu0 0.0
  %1444 = vmatprep.subr.mxu0 0.0
  %1445 = vmatpush1.msra.mxu0 0.0
  %1446 = vmatprep.subr.mxu0 0.0
  %1447 = vmatpush1.msra.mxu0 0.0
  %1448 = vmatprep.subr.mxu0 0.0
  %1449 = vmatpush1.msra.mxu0 0.0
  %1450 = vmatprep.subr.mxu0 0.0
  %1451 = vmatpush1.msra.mxu0 0.0
  %1452 = vmatprep.subr.mxu0 0.0
  %1453 = vmatpush1.msra.mxu0 0.0
  %1454 = vmatprep.subr.mxu0 0.0
  %1455 = vmatpush1.msra.mxu0 0.0
  %1456 = vmatprep.subr.mxu0 0.0
  %1457 = vmatpush1.msra.mxu0 0.0
  %1458 = vmatprep.subr.mxu0 0.0
  %1459 = vmatpush1.msra.mxu0 0.0
  %1460 = vmatprep.subr.mxu0 0.0
  %1461 = vmatpush1.msra.mxu0 0.0
  %1462 = vmatprep.subr.mxu0 0.0
  %1463 = vmatpush1.msra.mxu0 0.0
  %1464 = vmatprep.subr.mxu0 0.0
  %1465 = vmatpush1.msra.mxu0 0.0
  %1466 = vmatprep.subr.mxu0 0.0
  %1467 = vmatpush1.msra.mxu0 0.0
  %1468 = vmatprep.subr.mxu0 0.0
  %1469 = vmatpush1.msra.mxu0 0.0
  %1470 = vmatprep.subr.mxu0 0.0
  %1471 = vmatpush1.msra.mxu0 0.0
  %1472 = vmatprep.subr.mxu0 0.0
  %1473 = vmatpush1.msra.mxu0 0.0
  %1474 = vmatprep.subr.mxu0 0.0
  %1475 = vmatpush1.msra.mxu0 0.0
  %1476 = vmatprep.subr.mxu0 0.0
  %1477 = vmatpush1.msra.mxu0 0.0
  %1478 = vmatprep.subr.mxu0 0.0
  %1479 = vmatpush1.msra.mxu0 0.0
  %1480 = vmatprep.subr.mxu0 0.0
  %1481 = vmatpush1.msra.mxu0 0.0
  %1482 = vmatprep.subr.mxu0 0.0
  %1483 = vmatpush1.msra.mxu0 0.0
  %1484 = vmatprep.subr.mxu0 0.0
  %1485 = vmatpush1.msra.mxu0 0.0
  %1486 = vmatprep.subr.mxu0 0.0
  %1487 = vmatpush1.msra.mxu0 0.0
  %1488 = vmatprep.subr.mxu0 0.0
  %1489 = vmatpush1.msra.mxu0 0.0
  %1490 = vmatprep.subr.mxu0 0.0
  %1491 = vmatpush1.msra.mxu0 0.0
  %1492 = vmatprep.subr.mxu0 0.0
  %1493 = vmatpush1.msra.mxu0 0.0
  %1494 = vmatprep.subr.mxu0 0.0
  %1495 = vmatpush1.msra.mxu0 0.0
  %1496 = vmatprep.mubr.f32.mxu0 0.0
  %1497 = vmatmul.mubr.f32.gmra.mrb[0].mxu0 %v1430
  %v1498 = vpop.f32.mrb[0].mxu0
  %v1499 = vadd.f32 %v51, %v1498
  %v1500 = vpop.f32.mrb[0].mxu0
  %1501 = vdwg.mxu0
  %v1502 = vmul.f32 %v1499, 1.442695
  %v1503 = vpow.pop %v1502
  %v1504 = vsel %vm360, %v1503, 0.0
  %1505 = vadd.xlane.f32.xlu0 %v1504
  %v1506 = vpop.xlane.xlu0 %1505
  %v1507 = vrcp.pop %v1506
  %v1508 = vmul.f32 %v1503, %v1507
  %v1510 = vsel %vm366, %v1508, 0
  %1512 = vmatprep.subr.mxu0 0.0
  %1513 = vmatpush1.msra.mxu0 %v52
  %1514 = vmatprep.subr.mxu0 0.0
  %1515 = vmatpush1.msra.mxu0 %v53
  %1516 = vmatprep.subr.mxu0 0.0
  %1517 = vmatpush1.msra.mxu0 0.0
  %1518 = vmatprep.subr.mxu0 0.0
  %1519 = vmatpush1.msra.mxu0 0.0
  %1520 = vmatprep.subr.mxu0 0.0
  %1521 = vmatpush1.msra.mxu0 0.0
  %1522 = vmatprep.subr.mxu0 0.0
  %1523 = vmatpush1.msra.mxu0 0.0
  %1524 = vmatprep.subr.mxu0 0.0
  %1525 = vmatpush1.msra.mxu0 0.0
  %1526 = vmatprep.subr.mxu0 0.0
  %1527 = vmatpush1.msra.mxu0 0.0
  %1528 = vmatprep.subr.mxu0 0.0
  %1529 = vmatpush1.msra.mxu0 0.0
  %1530 = vmatprep.subr.mxu0 0.0
  %1531 = vmatpush1.msra.mxu0 0.0
  %1532 = vmatprep.subr.mxu0 0.0
  %1533 = vmatpush1.msra.mxu0 0.0
  %1534 = vmatprep.subr.mxu0 0.0
  %1535 = vmatpush1.msra.mxu0 0.0
  %1536 = vmatprep.subr.mxu0 0.0
  %1537 = vmatpush1.msra.mxu0 0.0
  %1538 = vmatprep.subr.mxu0 0.0
  %1539 = vmatpush1.msra.mxu0 0.0
  %1540 = vmatprep.subr.mxu0 0.0
  %1541 = vmatpush1.msra.mxu0 0.0
  %1542 = vmatprep.subr.mxu0 0.0
  %1543 = vmatpush1.msra.mxu0 0.0
  %1544 = vmatprep.subr.mxu0 0.0
  %1545 = vmatpush1.msra.mxu0 0.0
  %1546 = vmatprep.subr.mxu0 0.0
  %1547 = vmatpush1.msra.mxu0 0.0
  %1548 = vmatprep.subr.mxu0 0.0
  %1549 = vmatpush1.msra.mxu0 0.0
  %1550 = vmatprep.subr.mxu0 0.0
  %1551 = vmatpush1.msra.mxu0 0.0
  %1552 = vmatprep.subr.mxu0 0.0
  %1553 = vmatpush1.msra.mxu0 0.0
  %1554 = vmatprep.subr.mxu0 0.0
  %1555 = vmatpush1.msra.mxu0 0.0
  %1556 = vmatprep.subr.mxu0 0.0
  %1557 = vmatpush1.msra.mxu0 0.0
  %1558 = vmatprep.subr.mxu0 0.0
  %1559 = vmatpush1.msra.mxu0 0.0
  %1560 = vmatprep.subr.mxu0 0.0
  %1561 = vmatpush1.msra.mxu0 0.0
  %1562 = vmatprep.subr.mxu0 0.0
  %1563 = vmatpush1.msra.mxu0 0.0
  %1564 = vmatprep.subr.mxu0 0.0
  %1565 = vmatpush1.msra.mxu0 0.0
  %1566 = vmatprep.subr.mxu0 0.0
  %1567 = vmatpush1.msra.mxu0 0.0
  %1568 = vmatprep.subr.mxu0 0.0
  %1569 = vmatpush1.msra.mxu0 0.0
  %1570 = vmatprep.subr.mxu0 0.0
  %1571 = vmatpush1.msra.mxu0 0.0
  %1572 = vmatprep.subr.mxu0 0.0
  %1573 = vmatpush1.msra.mxu0 0.0
  %1574 = vmatprep.subr.mxu0 0.0
  %1575 = vmatpush1.msra.mxu0 0.0
  %1576 = vmatprep.mubr.f32.mxu0 0.0
  %1577 = vmatmul.mubr.f32.gmra.mrb[0].mxu0 %v1510
  %v1578 = vpop.f32.mrb[0].mxu0
  %v1579 = vadd.f32 0.0, %v1578
  %v1580 = vpop.f32.mrb[0].mxu0
  %1581 = vdwg.mxu0
  %1583 = vst.msk [vmem:[#allocation2 + $0x10] sm:$0xf] %vm441, %v1429
  %1584 = vst.msk [vmem:[#allocation3 + $0x10] sm:$0xf] %vm443, %v1579
  %s1585 = scalar_lea.vmem %s1, 16
  %v1586 = vld [vmem:[%s1585] sm:$0xf]
  %v1587 = vld [vmem:[#allocation2] sm:$0xff]
  %v1588 = vld [vmem:[#allocation2 + $0x8] sm:$0xff]
  %v1589 = vld [vmem:[#allocation2 + $0x10] sm:$0xff]
  %v1590 = vld [vmem:[#allocation2 + $0x18] sm:$0xff]
  %v1591 = vld [vmem:[#allocation2 + $0x20] sm:$0xff]
  %v1593 = vsel %vm63, %v1586, 0
  %1595 = vmatprep.subr.mxu0 0.0
  %1596 = vmatpush1.msra.mxu0 %v1587
  %1597 = vmatprep.subr.mxu0 0.0
  %1598 = vmatpush1.msra.mxu0 %v1588
  %1599 = vmatprep.subr.mxu0 0.0
  %1600 = vmatpush1.msra.mxu0 %v1589
  %1601 = vmatprep.subr.mxu0 0.0
  %1602 = vmatpush1.msra.mxu0 %v1590
  %1603 = vmatprep.subr.mxu0 0.0
  %1604 = vmatpush1.msra.mxu0 %v1591
  %1605 = vmatprep.subr.mxu0 0.0
  %1606 = vmatpush1.msra.mxu0 0.0
  %1607 = vmatprep.subr.mxu0 0.0
  %1608 = vmatpush1.msra.mxu0 0.0
  %1609 = vmatprep.subr.mxu0 0.0
  %1610 = vmatpush1.msra.mxu0 0.0
  %1611 = vmatprep.subr.mxu0 0.0
  %1612 = vmatpush1.msra.mxu0 0.0
  %1613 = vmatprep.subr.mxu0 0.0
  %1614 = vmatpush1.msra.mxu0 0.0
  %1615 = vmatprep.subr.mxu0 0.0
  %1616 = vmatpush1.msra.mxu0 0.0
  %1617 = vmatprep.subr.mxu0 0.0
  %1618 = vmatpush1.msra.mxu0 0.0
  %1619 = vmatprep.subr.mxu0 0.0
  %1620 = vmatpush1.msra.mxu0 0.0
  %1621 = vmatprep.subr.mxu0 0.0
  %1622 = vmatpush1.msra.mxu0 0.0
  %1623 = vmatprep.subr.mxu0 0.0
  %1624 = vmatpush1.msra.mxu0 0.0
  %1625 = vmatprep.subr.mxu0 0.0
  %1626 = vmatpush1.msra.mxu0 0.0
  %1627 = vmatprep.subr.mxu0 0.0
  %1628 = vmatpush1.msra.mxu0 0.0
  %1629 = vmatprep.subr.mxu0 0.0
  %1630 = vmatpush1.msra.mxu0 0.0
  %1631 = vmatprep.subr.mxu0 0.0
  %1632 = vmatpush1.msra.mxu0 0.0
  %1633 = vmatprep.subr.mxu0 0.0
  %1634 = vmatpush1.msra.mxu0 0.0
  %1635 = vmatprep.subr.mxu0 0.0
  %1636 = vmatpush1.msra.mxu0 0.0
  %1637 = vmatprep.subr.mxu0 0.0
  %1638 = vmatpush1.msra.mxu0 0.0
  %1639 = vmatprep.subr.mxu0 0.0
  %1640 = vmatpush1.msra.mxu0 0.0
  %1641 = vmatprep.subr.mxu0 0.0
  %1642 = vmatpush1.msra.mxu0 0.0
  %1643 = vmatprep.subr.mxu0 0.0
  %1644 = vmatpush1.msra.mxu0 0.0
  %1645 = vmatprep.subr.mxu0 0.0
  %1646 = vmatpush1.msra.mxu0 0.0
  %1647 = vmatprep.subr.mxu0 0.0
  %1648 = vmatpush1.msra.mxu0 0.0
  %1649 = vmatprep.subr.mxu0 0.0
  %1650 = vmatpush1.msra.mxu0 0.0
  %1651 = vmatprep.subr.mxu0 0.0
  %1652 = vmatpush1.msra.mxu0 0.0
  %1653 = vmatprep.subr.mxu0 0.0
  %1654 = vmatpush1.msra.mxu0 0.0
  %1655 = vmatprep.subr.mxu0 0.0
  %1656 = vmatpush1.msra.mxu0 0.0
  %1657 = vmatprep.subr.mxu0 0.0
  %1658 = vmatpush1.msra.mxu0 0.0
  %1659 = vmatprep.mubr.f32.mxu0 0.0
  %1660 = vmatmul.mubr.f32.gmra.mrb[0].mxu0 %v1593
  %v1661 = vpop.f32.mrb[0].mxu0
  %v1662 = vadd.f32 0.0, %v1661
  %v1663 = vpop.f32.mrb[0].mxu0
  %1664 = vdwg.mxu0
  %1666 = vrot.lane.b32.xlu0 %v1579, 32
  %v1667 = vpop.permute.xlu0 %1666
  %v1669 = vsel %vm35, %v1662, %v1667
  %v1670 = vsel %vm142, %v1669, %v1417
  %s1671 = scalar_lea.vmem %s0, 16
  %v1672 = vld [vmem:[%s1671] sm:$0xf]
  %v1673 = vld [vmem:[%s7] sm:$0xff]
  %v1674 = vld [vmem:[%s7 + $0x8] sm:$0xff]
  %v1675 = vld [vmem:[%s7 + $0x10] sm:$0xff]
  %v1676 = vld [vmem:[%s7 + $0x18] sm:$0xff]
  %v1677 = vld [vmem:[%s7 + $0x20] sm:$0xff]
  %v1678 = vld [vmem:[%s7 + $0x28] sm:$0xff]
  %v1679 = vld [vmem:[%s7 + $0x30] sm:$0xff]
  %v1680 = vld [vmem:[%s7 + $0x38] sm:$0xff]
  %v1681 = vld [vmem:[%s7 + $0x40] sm:$0xff]
  %v1682 = vld [vmem:[%s7 + $0x48] sm:$0xff]
  %v1683 = vld [vmem:[%s7 + $0x50] sm:$0xff]
  %v1684 = vld [vmem:[%s7 + $0x58] sm:$0xff]
  %v1685 = vld [vmem:[%s7 + $0x60] sm:$0xff]
  %v1686 = vld [vmem:[%s7 + $0x68] sm:$0xff]
  %v1687 = vld [vmem:[%s7 + $0x70] sm:$0xff]
  %v1688 = vld [vmem:[%s7 + $0x78] sm:$0xff]
  %1689 = vmatprep.subr.mxu0 0.0
  %1690 = vmatpush1.msra.mxu0 %v1673
  %1691 = vmatprep.subr.mxu0 0.0
  %1692 = vmatpush1.msra.mxu0 %v1674
  %1693 = vmatprep.subr.mxu0 0.0
  %1694 = vmatpush1.msra.mxu0 %v1675
  %1695 = vmatprep.subr.mxu0 0.0
  %1696 = vmatpush1.msra.mxu0 %v1676
  %1697 = vmatprep.subr.mxu0 0.0
  %1698 = vmatpush1.msra.mxu0 %v1677
  %1699 = vmatprep.subr.mxu0 0.0
  %1700 = vmatpush1.msra.mxu0 %v1678
  %1701 = vmatprep.subr.mxu0 0.0
  %1702 = vmatpush1.msra.mxu0 %v1679
  %1703 = vmatprep.subr.mxu0 0.0
  %1704 = vmatpush1.msra.mxu0 %v1680
  %1705 = vmatprep.subr.mxu0 0.0
  %1706 = vmatpush1.msra.mxu0 %v1681
  %1707 = vmatprep.subr.mxu0 0.0
  %1708 = vmatpush1.msra.mxu0 %v1682
  %1709 = vmatprep.subr.mxu0 0.0
  %1710 = vmatpush1.msra.mxu0 %v1683
  %1711 = vmatprep.subr.mxu0 0.0
  %1712 = vmatpush1.msra.mxu0 %v1684
  %1713 = vmatprep.subr.mxu0 0.0
  %1714 = vmatpush1.msra.mxu0 %v1685
  %1715 = vmatprep.subr.mxu0 0.0
  %1716 = vmatpush1.msra.mxu0 %v1686
  %1717 = vmatprep.subr.mxu0 0.0
  %1718 = vmatpush1.msra.mxu0 %v1687
  %1719 = vmatprep.subr.mxu0 0.0
  %1720 = vmatpush1.msra.mxu0 %v1688
  %1721 = vmatprep.subr.mxu0 0.0
  %1722 = vmatpush1.msra.mxu0 0.0
  %1723 = vmatprep.subr.mxu0 0.0
  %1724 = vmatpush1.msra.mxu0 0.0
  %1725 = vmatprep.subr.mxu0 0.0
  %1726 = vmatpush1.msra.mxu0 0.0
  %1727 = vmatprep.subr.mxu0 0.0
  %1728 = vmatpush1.msra.mxu0 0.0
  %1729 = vmatprep.subr.mxu0 0.0
  %1730 = vmatpush1.msra.mxu0 0.0
  %1731 = vmatprep.subr.mxu0 0.0
  %1732 = vmatpush1.msra.mxu0 0.0
  %1733 = vmatprep.subr.mxu0 0.0
  %1734 = vmatpush1.msra.mxu0 0.0
  %1735 = vmatprep.subr.mxu0 0.0
  %1736 = vmatpush1.msra.mxu0 0.0
  %1737 = vmatprep.subr.mxu0 0.0
  %1738 = vmatpush1.msra.mxu0 0.0
  %1739 = vmatprep.subr.mxu0 0.0
  %1740 = vmatpush1.msra.mxu0 0.0
  %1741 = vmatprep.subr.mxu0 0.0
  %1742 = vmatpush1.msra.mxu0 0.0
  %1743 = vmatprep.subr.mxu0 0.0
  %1744 = vmatpush1.msra.mxu0 0.0
  %1745 = vmatprep.subr.mxu0 0.0
  %1746 = vmatpush1.msra.mxu0 0.0
  %1747 = vmatprep.subr.mxu0 0.0
  %1748 = vmatpush1.msra.mxu0 0.0
  %1749 = vmatprep.subr.mxu0 0.0
  %1750 = vmatpush1.msra.mxu0 0.0
  %1751 = vmatprep.subr.mxu0 0.0
  %1752 = vmatpush1.msra.mxu0 0.0
  %1753 = vmatprep.mubr.f32.mxu0 0.0
  %1754 = vmatmul.mubr.f32.gmra.mrb[0].mxu0 %v1670
  %v1755 = vpop.f32.mrb[0].mxu0
  %v1756 = vadd.f32 0.0, %v1755
  %v1757 = vpop.f32.mrb[0].mxu0
  %1758 = vdwg.mxu0
  %v1759 = vadd.f32 %v1672, %v1756
  %v1760 = vxor.u32 %v1759, 2147483648
  %v1761 = vmul.f32 %v1760, 1.442695
  %v1762 = vpow.pop %v1761
  %v1763 = vadd.f32 %v1762, 1.0
  %v1764 = vrcp.pop %v1763
  %v1765 = vmul.f32 1.0, %v1764
  %v1766 = vtanh.pop %v1759
  %v1767 = vmul.f32 %v1765, %v1426
  %1769 = vrot.lane.b32.xlu0 %v1766, 64
  %v1770 = vpop.permute.xlu0 %1769
  %v1772 = vmul.f32 %v1765, %v1770
  %1774 = vrot.lane.b32.xlu0 %v1772, 32
  %v1775 = vpop.permute.xlu0 %1774
  %v1777 = vadd.f32 %v1767, %v1775
  %v1778 = vtanh.pop %v1777
  %1780 = vrot.lane.b32.xlu0 %v1778, 64
  %v1781 = vpop.permute.xlu0 %1780
  %v1783 = vmul.f32 %v1765, %v1781
  %s1784 = scalar_lea.vmem %s2, 16
  %v1785 = vld [vmem:[%s1784] sm:$0xf]
  %v1786 = vsub.f32 1.0, %v1785
  %1788 = vrot.lane.b32.xlu0 %v1785, 96
  %v1789 = vpop.permute.xlu0 %1788
  %v1791 = vmul.f32 %v1783, %v1789
  %1793 = vrot.lane.b32.xlu0 %v1786, 96
  %v1794 = vpop.permute.xlu0 %1793
  %v1796 = vmul.f32 %v1417, %v1794
  %v1797 = vadd.f32 %v1791, %v1796
  %1798 = vrot.lane.b32.xlu0 %v1785, 32
  %v1799 = vpop.permute.xlu0 %1798
  %v1801 = vmul.f32 %v1777, %v1799
  %1802 = vrot.lane.b32.xlu0 %v1786, 32
  %v1803 = vpop.permute.xlu0 %1802
  %v1805 = vmul.f32 %v1426, %v1803
  %v1806 = vadd.f32 %v1801, %v1805
  %1808 = vrot.lane.b32.xlu0 %v1797, 32
  %v1809 = vpop.permute.xlu0 %1808
  %v1810 = vsel %vm35, %v1809, 0
  %1812 = vmatprep.subr.mxu0 0.0
  %1813 = vmatpush1.msra.mxu0 %v47
  %1814 = vmatprep.subr.mxu0 0.0
  %1815 = vmatpush1.msra.mxu0 %v48
  %1816 = vmatprep.subr.mxu0 0.0
  %1817 = vmatpush1.msra.mxu0 %v49
  %1818 = vmatprep.subr.mxu0 0.0
  %1819 = vmatpush1.msra.mxu0 %v50
  %1820 = vmatprep.subr.mxu0 0.0
  %1821 = vmatpush1.msra.mxu0 0.0
  %1822 = vmatprep.subr.mxu0 0.0
  %1823 = vmatpush1.msra.mxu0 0.0
  %1824 = vmatprep.subr.mxu0 0.0
  %1825 = vmatpush1.msra.mxu0 0.0
  %1826 = vmatprep.subr.mxu0 0.0
  %1827 = vmatpush1.msra.mxu0 0.0
  %1828 = vmatprep.subr.mxu0 0.0
  %1829 = vmatpush1.msra.mxu0 0.0
  %1830 = vmatprep.subr.mxu0 0.0
  %1831 = vmatpush1.msra.mxu0 0.0
  %1832 = vmatprep.subr.mxu0 0.0
  %1833 = vmatpush1.msra.mxu0 0.0
  %1834 = vmatprep.subr.mxu0 0.0
  %1835 = vmatpush1.msra.mxu0 0.0
  %1836 = vmatprep.subr.mxu0 0.0
  %1837 = vmatpush1.msra.mxu0 0.0
  %1838 = vmatprep.subr.mxu0 0.0
  %1839 = vmatpush1.msra.mxu0 0.0
  %1840 = vmatprep.subr.mxu0 0.0
  %1841 = vmatpush1.msra.mxu0 0.0
  %1842 = vmatprep.subr.mxu0 0.0
  %1843 = vmatpush1.msra.mxu0 0.0
  %1844 = vmatprep.subr.mxu0 0.0
  %1845 = vmatpush1.msra.mxu0 0.0
  %1846 = vmatprep.subr.mxu0 0.0
  %1847 = vmatpush1.msra.mxu0 0.0
  %1848 = vmatprep.subr.mxu0 0.0
  %1849 = vmatpush1.msra.mxu0 0.0
  %1850 = vmatprep.subr.mxu0 0.0
  %1851 = vmatpush1.msra.mxu0 0.0
  %1852 = vmatprep.subr.mxu0 0.0
  %1853 = vmatpush1.msra.mxu0 0.0
  %1854 = vmatprep.subr.mxu0 0.0
  %1855 = vmatpush1.msra.mxu0 0.0
  %1856 = vmatprep.subr.mxu0 0.0
  %1857 = vmatpush1.msra.mxu0 0.0
  %1858 = vmatprep.subr.mxu0 0.0
  %1859 = vmatpush1.msra.mxu0 0.0
  %1860 = vmatprep.subr.mxu0 0.0
  %1861 = vmatpush1.msra.mxu0 0.0
  %1862 = vmatprep.subr.mxu0 0.0
  %1863 = vmatpush1.msra.mxu0 0.0
  %1864 = vmatprep.subr.mxu0 0.0
  %1865 = vmatpush1.msra.mxu0 0.0
  %1866 = vmatprep.subr.mxu0 0.0
  %1867 = vmatpush1.msra.mxu0 0.0
  %1868 = vmatprep.subr.mxu0 0.0
  %1869 = vmatpush1.msra.mxu0 0.0
  %1870 = vmatprep.subr.mxu0 0.0
  %1871 = vmatpush1.msra.mxu0 0.0
  %1872 = vmatprep.subr.mxu0 0.0
  %1873 = vmatpush1.msra.mxu0 0.0
  %1874 = vmatprep.subr.mxu0 0.0
  %1875 = vmatpush1.msra.mxu0 0.0
  %1876 = vmatprep.mubr.f32.mxu0 0.0
  %1877 = vmatmul.mubr.f32.gmra.mrb[0].mxu0 %v1810
  %v1878 = vpop.f32.mrb[0].mxu0
  %v1879 = vadd.f32 %v51, %v1878
  %v1880 = vpop.f32.mrb[0].mxu0
  %1881 = vdwg.mxu0
  %v1882 = vmul.f32 %v1879, 1.442695
  %v1883 = vpow.pop %v1882
  %v1884 = vsel %vm360, %v1883, 0.0
  %1885 = vadd.xlane.f32.xlu0 %v1884
  %v1886 = vpop.xlane.xlu0 %1885
  %v1887 = vrcp.pop %v1886
  %v1888 = vmul.f32 %v1883, %v1887
  %v1890 = vsel %vm366, %v1888, 0
  %1892 = vmatprep.subr.mxu0 0.0
  %1893 = vmatpush1.msra.mxu0 %v52
  %1894 = vmatprep.subr.mxu0 0.0
  %1895 = vmatpush1.msra.mxu0 %v53
  %1896 = vmatprep.subr.mxu0 0.0
  %1897 = vmatpush1.msra.mxu0 0.0
  %1898 = vmatprep.subr.mxu0 0.0
  %1899 = vmatpush1.msra.mxu0 0.0
  %1900 = vmatprep.subr.mxu0 0.0
  %1901 = vmatpush1.msra.mxu0 0.0
  %1902 = vmatprep.subr.mxu0 0.0
  %1903 = vmatpush1.msra.mxu0 0.0
  %1904 = vmatprep.subr.mxu0 0.0
  %1905 = vmatpush1.msra.mxu0 0.0
  %1906 = vmatprep.subr.mxu0 0.0
  %1907 = vmatpush1.msra.mxu0 0.0
  %1908 = vmatprep.subr.mxu0 0.0
  %1909 = vmatpush1.msra.mxu0 0.0
  %1910 = vmatprep.subr.mxu0 0.0
  %1911 = vmatpush1.msra.mxu0 0.0
  %1912 = vmatprep.subr.mxu0 0.0
  %1913 = vmatpush1.msra.mxu0 0.0
  %1914 = vmatprep.subr.mxu0 0.0
  %1915 = vmatpush1.msra.mxu0 0.0
  %1916 = vmatprep.subr.mxu0 0.0
  %1917 = vmatpush1.msra.mxu0 0.0
  %1918 = vmatprep.subr.mxu0 0.0
  %1919 = vmatpush1.msra.mxu0 0.0
  %1920 = vmatprep.subr.mxu0 0.0
  %1921 = vmatpush1.msra.mxu0 0.0
  %1922 = vmatprep.subr.mxu0 0.0
  %1923 = vmatpush1.msra.mxu0 0.0
  %1924 = vmatprep.subr.mxu0 0.0
  %1925 = vmatpush1.msra.mxu0 0.0
  %1926 = vmatprep.subr.mxu0 0.0
  %1927 = vmatpush1.msra.mxu0 0.0
  %1928 = vmatprep.subr.mxu0 0.0
  %1929 = vmatpush1.msra.mxu0 0.0
  %1930 = vmatprep.subr.mxu0 0.0
  %1931 = vmatpush1.msra.mxu0 0.0
  %1932 = vmatprep.subr.mxu0 0.0
  %1933 = vmatpush1.msra.mxu0 0.0
  %1934 = vmatprep.subr.mxu0 0.0
  %1935 = vmatpush1.msra.mxu0 0.0
  %1936 = vmatprep.subr.mxu0 0.0
  %1937 = vmatpush1.msra.mxu0 0.0
  %1938 = vmatprep.subr.mxu0 0.0
  %1939 = vmatpush1.msra.mxu0 0.0
  %1940 = vmatprep.subr.mxu0 0.0
  %1941 = vmatpush1.msra.mxu0 0.0
  %1942 = vmatprep.subr.mxu0 0.0
  %1943 = vmatpush1.msra.mxu0 0.0
  %1944 = vmatprep.subr.mxu0 0.0
  %1945 = vmatpush1.msra.mxu0 0.0
  %1946 = vmatprep.subr.mxu0 0.0
  %1947 = vmatpush1.msra.mxu0 0.0
  %1948 = vmatprep.subr.mxu0 0.0
  %1949 = vmatpush1.msra.mxu0 0.0
  %1950 = vmatprep.subr.mxu0 0.0
  %1951 = vmatpush1.msra.mxu0 0.0
  %1952 = vmatprep.subr.mxu0 0.0
  %1953 = vmatpush1.msra.mxu0 0.0
  %1954 = vmatprep.subr.mxu0 0.0
  %1955 = vmatpush1.msra.mxu0 0.0
  %1956 = vmatprep.mubr.f32.mxu0 0.0
  %1957 = vmatmul.mubr.f32.gmra.mrb[0].mxu0 %v1890
  %v1958 = vpop.f32.mrb[0].mxu0
  %v1959 = vadd.f32 0.0, %v1958
  %v1960 = vpop.f32.mrb[0].mxu0
  %1961 = vdwg.mxu0
  %1963 = vst.msk [vmem:[#allocation2 + $0x14] sm:$0xf] %vm441, %v1809
  %1964 = vst.msk [vmem:[#allocation3 + $0x14] sm:$0xf] %vm443, %v1959
  %s1965 = scalar_lea.vmem %s1, 20
  %v1966 = vld [vmem:[%s1965] sm:$0xf]
  %v1967 = vld [vmem:[#allocation2] sm:$0xff]
  %v1968 = vld [vmem:[#allocation2 + $0x8] sm:$0xff]
  %v1969 = vld [vmem:[#allocation2 + $0x10] sm:$0xff]
  %v1970 = vld [vmem:[#allocation2 + $0x18] sm:$0xff]
  %v1971 = vld [vmem:[#allocation2 + $0x20] sm:$0xff]
  %v1973 = vsel %vm63, %v1966, 0
  %1975 = vmatprep.subr.mxu0 0.0
  %1976 = vmatpush1.msra.mxu0 %v1967
  %1977 = vmatprep.subr.mxu0 0.0
  %1978 = vmatpush1.msra.mxu0 %v1968
  %1979 = vmatprep.subr.mxu0 0.0
  %1980 = vmatpush1.msra.mxu0 %v1969
  %1981 = vmatprep.subr.mxu0 0.0
  %1982 = vmatpush1.msra.mxu0 %v1970
  %1983 = vmatprep.subr.mxu0 0.0
  %1984 = vmatpush1.msra.mxu0 %v1971
  %1985 = vmatprep.subr.mxu0 0.0
  %1986 = vmatpush1.msra.mxu0 0.0
  %1987 = vmatprep.subr.mxu0 0.0
  %1988 = vmatpush1.msra.mxu0 0.0
  %1989 = vmatprep.subr.mxu0 0.0
  %1990 = vmatpush1.msra.mxu0 0.0
  %1991 = vmatprep.subr.mxu0 0.0
  %1992 = vmatpush1.msra.mxu0 0.0
  %1993 = vmatprep.subr.mxu0 0.0
  %1994 = vmatpush1.msra.mxu0 0.0
  %1995 = vmatprep.subr.mxu0 0.0
  %1996 = vmatpush1.msra.mxu0 0.0
  %1997 = vmatprep.subr.mxu0 0.0
  %1998 = vmatpush1.msra.mxu0 0.0
  %1999 = vmatprep.subr.mxu0 0.0
  %2000 = vmatpush1.msra.mxu0 0.0
  %2001 = vmatprep.subr.mxu0 0.0
  %2002 = vmatpush1.msra.mxu0 0.0
  %2003 = vmatprep.subr.mxu0 0.0
  %2004 = vmatpush1.msra.mxu0 0.0
  %2005 = vmatprep.subr.mxu0 0.0
  %2006 = vmatpush1.msra.mxu0 0.0
  %2007 = vmatprep.subr.mxu0 0.0
  %2008 = vmatpush1.msra.mxu0 0.0
  %2009 = vmatprep.subr.mxu0 0.0
  %2010 = vmatpush1.msra.mxu0 0.0
  %2011 = vmatprep.subr.mxu0 0.0
  %2012 = vmatpush1.msra.mxu0 0.0
  %2013 = vmatprep.subr.mxu0 0.0
  %2014 = vmatpush1.msra.mxu0 0.0
  %2015 = vmatprep.subr.mxu0 0.0
  %2016 = vmatpush1.msra.mxu0 0.0
  %2017 = vmatprep.subr.mxu0 0.0
  %2018 = vmatpush1.msra.mxu0 0.0
  %2019 = vmatprep.subr.mxu0 0.0
  %2020 = vmatpush1.msra.mxu0 0.0
  %2021 = vmatprep.subr.mxu0 0.0
  %2022 = vmatpush1.msra.mxu0 0.0
  %2023 = vmatprep.subr.mxu0 0.0
  %2024 = vmatpush1.msra.mxu0 0.0
  %2025 = vmatprep.subr.mxu0 0.0
  %2026 = vmatpush1.msra.mxu0 0.0
  %2027 = vmatprep.subr.mxu0 0.0
  %2028 = vmatpush1.msra.mxu0 0.0
  %2029 = vmatprep.subr.mxu0 0.0
  %2030 = vmatpush1.msra.mxu0 0.0
  %2031 = vmatprep.subr.mxu0 0.0
  %2032 = vmatpush1.msra.mxu0 0.0
  %2033 = vmatprep.subr.mxu0 0.0
  %2034 = vmatpush1.msra.mxu0 0.0
  %2035 = vmatprep.subr.mxu0 0.0
  %2036 = vmatpush1.msra.mxu0 0.0
  %2037 = vmatprep.subr.mxu0 0.0
  %2038 = vmatpush1.msra.mxu0 0.0
  %2039 = vmatprep.mubr.f32.mxu0 0.0
  %2040 = vmatmul.mubr.f32.gmra.mrb[0].mxu0 %v1973
  %v2041 = vpop.f32.mrb[0].mxu0
  %v2042 = vadd.f32 0.0, %v2041
  %v2043 = vpop.f32.mrb[0].mxu0
  %2044 = vdwg.mxu0
  %2046 = vrot.lane.b32.xlu0 %v1959, 32
  %v2047 = vpop.permute.xlu0 %2046
  %v2049 = vsel %vm35, %v2042, %v2047
  %v2050 = vsel %vm142, %v2049, %v1797
  %s2051 = scalar_lea.vmem %s0, 20
  %v2052 = vld [vmem:[%s2051] sm:$0xf]
  %v2053 = vld [vmem:[%s7] sm:$0xff]
  %v2054 = vld [vmem:[%s7 + $0x8] sm:$0xff]
  %v2055 = vld [vmem:[%s7 + $0x10] sm:$0xff]
  %v2056 = vld [vmem:[%s7 + $0x18] sm:$0xff]
  %v2057 = vld [vmem:[%s7 + $0x20] sm:$0xff]
  %v2058 = vld [vmem:[%s7 + $0x28] sm:$0xff]
  %v2059 = vld [vmem:[%s7 + $0x30] sm:$0xff]
  %v2060 = vld [vmem:[%s7 + $0x38] sm:$0xff]
  %v2061 = vld [vmem:[%s7 + $0x40] sm:$0xff]
  %v2062 = vld [vmem:[%s7 + $0x48] sm:$0xff]
  %v2063 = vld [vmem:[%s7 + $0x50] sm:$0xff]
  %v2064 = vld [vmem:[%s7 + $0x58] sm:$0xff]
  %v2065 = vld [vmem:[%s7 + $0x60] sm:$0xff]
  %v2066 = vld [vmem:[%s7 + $0x68] sm:$0xff]
  %v2067 = vld [vmem:[%s7 + $0x70] sm:$0xff]
  %v2068 = vld [vmem:[%s7 + $0x78] sm:$0xff]
  %2069 = vmatprep.subr.mxu0 0.0
  %2070 = vmatpush1.msra.mxu0 %v2053
  %2071 = vmatprep.subr.mxu0 0.0
  %2072 = vmatpush1.msra.mxu0 %v2054
  %2073 = vmatprep.subr.mxu0 0.0
  %2074 = vmatpush1.msra.mxu0 %v2055
  %2075 = vmatprep.subr.mxu0 0.0
  %2076 = vmatpush1.msra.mxu0 %v2056
  %2077 = vmatprep.subr.mxu0 0.0
  %2078 = vmatpush1.msra.mxu0 %v2057
  %2079 = vmatprep.subr.mxu0 0.0
  %2080 = vmatpush1.msra.mxu0 %v2058
  %2081 = vmatprep.subr.mxu0 0.0
  %2082 = vmatpush1.msra.mxu0 %v2059
  %2083 = vmatprep.subr.mxu0 0.0
  %2084 = vmatpush1.msra.mxu0 %v2060
  %2085 = vmatprep.subr.mxu0 0.0
  %2086 = vmatpush1.msra.mxu0 %v2061
  %2087 = vmatprep.subr.mxu0 0.0
  %2088 = vmatpush1.msra.mxu0 %v2062
  %2089 = vmatprep.subr.mxu0 0.0
  %2090 = vmatpush1.msra.mxu0 %v2063
  %2091 = vmatprep.subr.mxu0 0.0
  %2092 = vmatpush1.msra.mxu0 %v2064
  %2093 = vmatprep.subr.mxu0 0.0
  %2094 = vmatpush1.msra.mxu0 %v2065
  %2095 = vmatprep.subr.mxu0 0.0
  %2096 = vmatpush1.msra.mxu0 %v2066
  %2097 = vmatprep.subr.mxu0 0.0
  %2098 = vmatpush1.msra.mxu0 %v2067
  %2099 = vmatprep.subr.mxu0 0.0
  %2100 = vmatpush1.msra.mxu0 %v2068
  %2101 = vmatprep.subr.mxu0 0.0
  %2102 = vmatpush1.msra.mxu0 0.0
  %2103 = vmatprep.subr.mxu0 0.0
  %2104 = vmatpush1.msra.mxu0 0.0
  %2105 = vmatprep.subr.mxu0 0.0
  %2106 = vmatpush1.msra.mxu0 0.0
  %2107 = vmatprep.subr.mxu0 0.0
  %2108 = vmatpush1.msra.mxu0 0.0
  %2109 = vmatprep.subr.mxu0 0.0
  %2110 = vmatpush1.msra.mxu0 0.0
  %2111 = vmatprep.subr.mxu0 0.0
  %2112 = vmatpush1.msra.mxu0 0.0
  %2113 = vmatprep.subr.mxu0 0.0
  %2114 = vmatpush1.msra.mxu0 0.0
  %2115 = vmatprep.subr.mxu0 0.0
  %2116 = vmatpush1.msra.mxu0 0.0
  %2117 = vmatprep.subr.mxu0 0.0
  %2118 = vmatpush1.msra.mxu0 0.0
  %2119 = vmatprep.subr.mxu0 0.0
  %2120 = vmatpush1.msra.mxu0 0.0
  %2121 = vmatprep.subr.mxu0 0.0
  %2122 = vmatpush1.msra.mxu0 0.0
  %2123 = vmatprep.subr.mxu0 0.0
  %2124 = vmatpush1.msra.mxu0 0.0
  %2125 = vmatprep.subr.mxu0 0.0
  %2126 = vmatpush1.msra.mxu0 0.0
  %2127 = vmatprep.subr.mxu0 0.0
  %2128 = vmatpush1.msra.mxu0 0.0
  %2129 = vmatprep.subr.mxu0 0.0
  %2130 = vmatpush1.msra.mxu0 0.0
  %2131 = vmatprep.subr.mxu0 0.0
  %2132 = vmatpush1.msra.mxu0 0.0
  %2133 = vmatprep.mubr.f32.mxu0 0.0
  %2134 = vmatmul.mubr.f32.gmra.mrb[0].mxu0 %v2050
  %v2135 = vpop.f32.mrb[0].mxu0
  %v2136 = vadd.f32 0.0, %v2135
  %v2137 = vpop.f32.mrb[0].mxu0
  %2138 = vdwg.mxu0
  %v2139 = vadd.f32 %v2052, %v2136
  %v2140 = vxor.u32 %v2139, 2147483648
  %v2141 = vmul.f32 %v2140, 1.442695
  %v2142 = vpow.pop %v2141
  %v2143 = vadd.f32 %v2142, 1.0
  %v2144 = vrcp.pop %v2143
  %v2145 = vmul.f32 1.0, %v2144
  %v2146 = vtanh.pop %v2139
  %v2147 = vmul.f32 %v2145, %v1806
  %2149 = vrot.lane.b32.xlu0 %v2146, 64
  %v2150 = vpop.permute.xlu0 %2149
  %v2152 = vmul.f32 %v2145, %v2150
  %2154 = vrot.lane.b32.xlu0 %v2152, 32
  %v2155 = vpop.permute.xlu0 %2154
  %v2157 = vadd.f32 %v2147, %v2155
  %v2158 = vtanh.pop %v2157
  %2160 = vrot.lane.b32.xlu0 %v2158, 64
  %v2161 = vpop.permute.xlu0 %2160
  %v2163 = vmul.f32 %v2145, %v2161
  %s2164 = scalar_lea.vmem %s2, 20
  %v2165 = vld [vmem:[%s2164] sm:$0xf]
  %v2166 = vsub.f32 1.0, %v2165
  %2168 = vrot.lane.b32.xlu0 %v2165, 96
  %v2169 = vpop.permute.xlu0 %2168
  %v2171 = vmul.f32 %v2163, %v2169
  %2173 = vrot.lane.b32.xlu0 %v2166, 96
  %v2174 = vpop.permute.xlu0 %2173
  %v2176 = vmul.f32 %v1797, %v2174
  %v2177 = vadd.f32 %v2171, %v2176
  %2178 = vrot.lane.b32.xlu0 %v2165, 32
  %v2179 = vpop.permute.xlu0 %2178
  %v2181 = vmul.f32 %v2157, %v2179
  %2182 = vrot.lane.b32.xlu0 %v2166, 32
  %v2183 = vpop.permute.xlu0 %2182
  %v2185 = vmul.f32 %v1806, %v2183
  %v2186 = vadd.f32 %v2181, %v2185
  %2188 = vrot.lane.b32.xlu0 %v2177, 32
  %v2189 = vpop.permute.xlu0 %2188
  %v2190 = vsel %vm35, %v2189, 0
  %2192 = vmatprep.subr.mxu0 0.0
  %2193 = vmatpush1.msra.mxu0 %v47
  %2194 = vmatprep.subr.mxu0 0.0
  %2195 = vmatpush1.msra.mxu0 %v48
  %2196 = vmatprep.subr.mxu0 0.0
  %2197 = vmatpush1.msra.mxu0 %v49
  %2198 = vmatprep.subr.mxu0 0.0
  %2199 = vmatpush1.msra.mxu0 %v50
  %2200 = vmatprep.subr.mxu0 0.0
  %2201 = vmatpush1.msra.mxu0 0.0
  %2202 = vmatprep.subr.mxu0 0.0
  %2203 = vmatpush1.msra.mxu0 0.0
  %2204 = vmatprep.subr.mxu0 0.0
  %2205 = vmatpush1.msra.mxu0 0.0
  %2206 = vmatprep.subr.mxu0 0.0
  %2207 = vmatpush1.msra.mxu0 0.0
  %2208 = vmatprep.subr.mxu0 0.0
  %2209 = vmatpush1.msra.mxu0 0.0
  %2210 = vmatprep.subr.mxu0 0.0
  %2211 = vmatpush1.msra.mxu0 0.0
  %2212 = vmatprep.subr.mxu0 0.0
  %2213 = vmatpush1.msra.mxu0 0.0
  %2214 = vmatprep.subr.mxu0 0.0
  %2215 = vmatpush1.msra.mxu0 0.0
  %2216 = vmatprep.subr.mxu0 0.0
  %2217 = vmatpush1.msra.mxu0 0.0
  %2218 = vmatprep.subr.mxu0 0.0
  %2219 = vmatpush1.msra.mxu0 0.0
  %2220 = vmatprep.subr.mxu0 0.0
  %2221 = vmatpush1.msra.mxu0 0.0
  %2222 = vmatprep.subr.mxu0 0.0
  %2223 = vmatpush1.msra.mxu0 0.0
  %2224 = vmatprep.subr.mxu0 0.0
  %2225 = vmatpush1.msra.mxu0 0.0
  %2226 = vmatprep.subr.mxu0 0.0
  %2227 = vmatpush1.msra.mxu0 0.0
  %2228 = vmatprep.subr.mxu0 0.0
  %2229 = vmatpush1.msra.mxu0 0.0
  %2230 = vmatprep.subr.mxu0 0.0
  %2231 = vmatpush1.msra.mxu0 0.0
  %2232 = vmatprep.subr.mxu0 0.0
  %2233 = vmatpush1.msra.mxu0 0.0
  %2234 = vmatprep.subr.mxu0 0.0
  %2235 = vmatpush1.msra.mxu0 0.0
  %2236 = vmatprep.subr.mxu0 0.0
  %2237 = vmatpush1.msra.mxu0 0.0
  %2238 = vmatprep.subr.mxu0 0.0
  %2239 = vmatpush1.msra.mxu0 0.0
  %2240 = vmatprep.subr.mxu0 0.0
  %2241 = vmatpush1.msra.mxu0 0.0
  %2242 = vmatprep.subr.mxu0 0.0
  %2243 = vmatpush1.msra.mxu0 0.0
  %2244 = vmatprep.subr.mxu0 0.0
  %2245 = vmatpush1.msra.mxu0 0.0
  %2246 = vmatprep.subr.mxu0 0.0
  %2247 = vmatpush1.msra.mxu0 0.0
  %2248 = vmatprep.subr.mxu0 0.0
  %2249 = vmatpush1.msra.mxu0 0.0
  %2250 = vmatprep.subr.mxu0 0.0
  %2251 = vmatpush1.msra.mxu0 0.0
  %2252 = vmatprep.subr.mxu0 0.0
  %2253 = vmatpush1.msra.mxu0 0.0
  %2254 = vmatprep.subr.mxu0 0.0
  %2255 = vmatpush1.msra.mxu0 0.0
  %2256 = vmatprep.mubr.f32.mxu0 0.0
  %2257 = vmatmul.mubr.f32.gmra.mrb[0].mxu0 %v2190
  %v2258 = vpop.f32.mrb[0].mxu0
  %v2259 = vadd.f32 %v51, %v2258
  %v2260 = vpop.f32.mrb[0].mxu0
  %2261 = vdwg.mxu0
  %v2262 = vmul.f32 %v2259, 1.442695
  %v2263 = vpow.pop %v2262
  %v2264 = vsel %vm360, %v2263, 0.0
  %2265 = vadd.xlane.f32.xlu0 %v2264
  %v2266 = vpop.xlane.xlu0 %2265
  %v2267 = vrcp.pop %v2266
  %v2268 = vmul.f32 %v2263, %v2267
  %v2270 = vsel %vm366, %v2268, 0
  %2272 = vmatprep.subr.mxu0 0.0
  %2273 = vmatpush1.msra.mxu0 %v52
  %2274 = vmatprep.subr.mxu0 0.0
  %2275 = vmatpush1.msra.mxu0 %v53
  %2276 = vmatprep.subr.mxu0 0.0
  %2277 = vmatpush1.msra.mxu0 0.0
  %2278 = vmatprep.subr.mxu0 0.0
  %2279 = vmatpush1.msra.mxu0 0.0
  %2280 = vmatprep.subr.mxu0 0.0
  %2281 = vmatpush1.msra.mxu0 0.0
  %2282 = vmatprep.subr.mxu0 0.0
  %2283 = vmatpush1.msra.mxu0 0.0
  %2284 = vmatprep.subr.mxu0 0.0
  %2285 = vmatpush1.msra.mxu0 0.0
  %2286 = vmatprep.subr.mxu0 0.0
  %2287 = vmatpush1.msra.mxu0 0.0
  %2288 = vmatprep.subr.mxu0 0.0
  %2289 = vmatpush1.msra.mxu0 0.0
  %2290 = vmatprep.subr.mxu0 0.0
  %2291 = vmatpush1.msra.mxu0 0.0
  %2292 = vmatprep.subr.mxu0 0.0
  %2293 = vmatpush1.msra.mxu0 0.0
  %2294 = vmatprep.subr.mxu0 0.0
  %2295 = vmatpush1.msra.mxu0 0.0
  %2296 = vmatprep.subr.mxu0 0.0
  %2297 = vmatpush1.msra.mxu0 0.0
  %2298 = vmatprep.subr.mxu0 0.0
  %2299 = vmatpush1.msra.mxu0 0.0
  %2300 = vmatprep.subr.mxu0 0.0
  %2301 = vmatpush1.msra.mxu0 0.0
  %2302 = vmatprep.subr.mxu0 0.0
  %2303 = vmatpush1.msra.mxu0 0.0
  %2304 = vmatprep.subr.mxu0 0.0
  %2305 = vmatpush1.msra.mxu0 0.0
  %2306 = vmatprep.subr.mxu0 0.0
  %2307 = vmatpush1.msra.mxu0 0.0
  %2308 = vmatprep.subr.mxu0 0.0
  %2309 = vmatpush1.msra.mxu0 0.0
  %2310 = vmatprep.subr.mxu0 0.0
  %2311 = vmatpush1.msra.mxu0 0.0
  %2312 = vmatprep.subr.mxu0 0.0
  %2313 = vmatpush1.msra.mxu0 0.0
  %2314 = vmatprep.subr.mxu0 0.0
  %2315 = vmatpush1.msra.mxu0 0.0
  %2316 = vmatprep.subr.mxu0 0.0
  %2317 = vmatpush1.msra.mxu0 0.0
  %2318 = vmatprep.subr.mxu0 0.0
  %2319 = vmatpush1.msra.mxu0 0.0
  %2320 = vmatprep.subr.mxu0 0.0
  %2321 = vmatpush1.msra.mxu0 0.0
  %2322 = vmatprep.subr.mxu0 0.0
  %2323 = vmatpush1.msra.mxu0 0.0
  %2324 = vmatprep.subr.mxu0 0.0
  %2325 = vmatpush1.msra.mxu0 0.0
  %2326 = vmatprep.subr.mxu0 0.0
  %2327 = vmatpush1.msra.mxu0 0.0
  %2328 = vmatprep.subr.mxu0 0.0
  %2329 = vmatpush1.msra.mxu0 0.0
  %2330 = vmatprep.subr.mxu0 0.0
  %2331 = vmatpush1.msra.mxu0 0.0
  %2332 = vmatprep.subr.mxu0 0.0
  %2333 = vmatpush1.msra.mxu0 0.0
  %2334 = vmatprep.subr.mxu0 0.0
  %2335 = vmatpush1.msra.mxu0 0.0
  %2336 = vmatprep.mubr.f32.mxu0 0.0
  %2337 = vmatmul.mubr.f32.gmra.mrb[0].mxu0 %v2270
  %v2338 = vpop.f32.mrb[0].mxu0
  %v2339 = vadd.f32 0.0, %v2338
  %v2340 = vpop.f32.mrb[0].mxu0
  %2341 = vdwg.mxu0
  %2343 = vst.msk [vmem:[#allocation2 + $0x18] sm:$0xf] %vm441, %v2189
  %2344 = vst.msk [vmem:[#allocation3 + $0x18] sm:$0xf] %vm443, %v2339
  %s2345 = scalar_lea.vmem %s1, 24
  %v2346 = vld [vmem:[%s2345] sm:$0xf]
  %v2347 = vld [vmem:[#allocation2] sm:$0xff]
  %v2348 = vld [vmem:[#allocation2 + $0x8] sm:$0xff]
  %v2349 = vld [vmem:[#allocation2 + $0x10] sm:$0xff]
  %v2350 = vld [vmem:[#allocation2 + $0x18] sm:$0xff]
  %v2351 = vld [vmem:[#allocation2 + $0x20] sm:$0xff]
  %v2353 = vsel %vm63, %v2346, 0
  %2355 = vmatprep.subr.mxu0 0.0
  %2356 = vmatpush1.msra.mxu0 %v2347
  %2357 = vmatprep.subr.mxu0 0.0
  %2358 = vmatpush1.msra.mxu0 %v2348
  %2359 = vmatprep.subr.mxu0 0.0
  %2360 = vmatpush1.msra.mxu0 %v2349
  %2361 = vmatprep.subr.mxu0 0.0
  %2362 = vmatpush1.msra.mxu0 %v2350
  %2363 = vmatprep.subr.mxu0 0.0
  %2364 = vmatpush1.msra.mxu0 %v2351
  %2365 = vmatprep.subr.mxu0 0.0
  %2366 = vmatpush1.msra.mxu0 0.0
  %2367 = vmatprep.subr.mxu0 0.0
  %2368 = vmatpush1.msra.mxu0 0.0
  %2369 = vmatprep.subr.mxu0 0.0
  %2370 = vmatpush1.msra.mxu0 0.0
  %2371 = vmatprep.subr.mxu0 0.0
  %2372 = vmatpush1.msra.mxu0 0.0
  %2373 = vmatprep.subr.mxu0 0.0
  %2374 = vmatpush1.msra.mxu0 0.0
  %2375 = vmatprep.subr.mxu0 0.0
  %2376 = vmatpush1.msra.mxu0 0.0
  %2377 = vmatprep.subr.mxu0 0.0
  %2378 = vmatpush1.msra.mxu0 0.0
  %2379 = vmatprep.subr.mxu0 0.0
  %2380 = vmatpush1.msra.mxu0 0.0
  %2381 = vmatprep.subr.mxu0 0.0
  %2382 = vmatpush1.msra.mxu0 0.0
  %2383 = vmatprep.subr.mxu0 0.0
  %2384 = vmatpush1.msra.mxu0 0.0
  %2385 = vmatprep.subr.mxu0 0.0
  %2386 = vmatpush1.msra.mxu0 0.0
  %2387 = vmatprep.subr.mxu0 0.0
  %2388 = vmatpush1.msra.mxu0 0.0
  %2389 = vmatprep.subr.mxu0 0.0
  %2390 = vmatpush1.msra.mxu0 0.0
  %2391 = vmatprep.subr.mxu0 0.0
  %2392 = vmatpush1.msra.mxu0 0.0
  %2393 = vmatprep.subr.mxu0 0.0
  %2394 = vmatpush1.msra.mxu0 0.0
  %2395 = vmatprep.subr.mxu0 0.0
  %2396 = vmatpush1.msra.mxu0 0.0
  %2397 = vmatprep.subr.mxu0 0.0
  %2398 = vmatpush1.msra.mxu0 0.0
  %2399 = vmatprep.subr.mxu0 0.0
  %2400 = vmatpush1.msra.mxu0 0.0
  %2401 = vmatprep.subr.mxu0 0.0
  %2402 = vmatpush1.msra.mxu0 0.0
  %2403 = vmatprep.subr.mxu0 0.0
  %2404 = vmatpush1.msra.mxu0 0.0
  %2405 = vmatprep.subr.mxu0 0.0
  %2406 = vmatpush1.msra.mxu0 0.0
  %2407 = vmatprep.subr.mxu0 0.0
  %2408 = vmatpush1.msra.mxu0 0.0
  %2409 = vmatprep.subr.mxu0 0.0
  %2410 = vmatpush1.msra.mxu0 0.0
  %2411 = vmatprep.subr.mxu0 0.0
  %2412 = vmatpush1.msra.mxu0 0.0
  %2413 = vmatprep.subr.mxu0 0.0
  %2414 = vmatpush1.msra.mxu0 0.0
  %2415 = vmatprep.subr.mxu0 0.0
  %2416 = vmatpush1.msra.mxu0 0.0
  %2417 = vmatprep.subr.mxu0 0.0
  %2418 = vmatpush1.msra.mxu0 0.0
  %2419 = vmatprep.mubr.f32.mxu0 0.0
  %2420 = vmatmul.mubr.f32.gmra.mrb[0].mxu0 %v2353
  %v2421 = vpop.f32.mrb[0].mxu0
  %v2422 = vadd.f32 0.0, %v2421
  %v2423 = vpop.f32.mrb[0].mxu0
  %2424 = vdwg.mxu0
  %2426 = vrot.lane.b32.xlu0 %v2339, 32
  %v2427 = vpop.permute.xlu0 %2426
  %v2429 = vsel %vm35, %v2422, %v2427
  %v2430 = vsel %vm142, %v2429, %v2177
  %s2431 = scalar_lea.vmem %s0, 24
  %v2432 = vld [vmem:[%s2431] sm:$0xf]
  %v2433 = vld [vmem:[%s7] sm:$0xff]
  %v2434 = vld [vmem:[%s7 + $0x8] sm:$0xff]
  %v2435 = vld [vmem:[%s7 + $0x10] sm:$0xff]
  %v2436 = vld [vmem:[%s7 + $0x18] sm:$0xff]
  %v2437 = vld [vmem:[%s7 + $0x20] sm:$0xff]
  %v2438 = vld [vmem:[%s7 + $0x28] sm:$0xff]
  %v2439 = vld [vmem:[%s7 + $0x30] sm:$0xff]
  %v2440 = vld [vmem:[%s7 + $0x38] sm:$0xff]
  %v2441 = vld [vmem:[%s7 + $0x40] sm:$0xff]
  %v2442 = vld [vmem:[%s7 + $0x48] sm:$0xff]
  %v2443 = vld [vmem:[%s7 + $0x50] sm:$0xff]
  %v2444 = vld [vmem:[%s7 + $0x58] sm:$0xff]
  %v2445 = vld [vmem:[%s7 + $0x60] sm:$0xff]
  %v2446 = vld [vmem:[%s7 + $0x68] sm:$0xff]
  %v2447 = vld [vmem:[%s7 + $0x70] sm:$0xff]
  %v2448 = vld [vmem:[%s7 + $0x78] sm:$0xff]
  %2449 = vmatprep.subr.mxu0 0.0
  %2450 = vmatpush1.msra.mxu0 %v2433
  %2451 = vmatprep.subr.mxu0 0.0
  %2452 = vmatpush1.msra.mxu0 %v2434
  %2453 = vmatprep.subr.mxu0 0.0
  %2454 = vmatpush1.msra.mxu0 %v2435
  %2455 = vmatprep.subr.mxu0 0.0
  %2456 = vmatpush1.msra.mxu0 %v2436
  %2457 = vmatprep.subr.mxu0 0.0
  %2458 = vmatpush1.msra.mxu0 %v2437
  %2459 = vmatprep.subr.mxu0 0.0
  %2460 = vmatpush1.msra.mxu0 %v2438
  %2461 = vmatprep.subr.mxu0 0.0
  %2462 = vmatpush1.msra.mxu0 %v2439
  %2463 = vmatprep.subr.mxu0 0.0
  %2464 = vmatpush1.msra.mxu0 %v2440
  %2465 = vmatprep.subr.mxu0 0.0
  %2466 = vmatpush1.msra.mxu0 %v2441
  %2467 = vmatprep.subr.mxu0 0.0
  %2468 = vmatpush1.msra.mxu0 %v2442
  %2469 = vmatprep.subr.mxu0 0.0
  %2470 = vmatpush1.msra.mxu0 %v2443
  %2471 = vmatprep.subr.mxu0 0.0
  %2472 = vmatpush1.msra.mxu0 %v2444
  %2473 = vmatprep.subr.mxu0 0.0
  %2474 = vmatpush1.msra.mxu0 %v2445
  %2475 = vmatprep.subr.mxu0 0.0
  %2476 = vmatpush1.msra.mxu0 %v2446
  %2477 = vmatprep.subr.mxu0 0.0
  %2478 = vmatpush1.msra.mxu0 %v2447
  %2479 = vmatprep.subr.mxu0 0.0
  %2480 = vmatpush1.msra.mxu0 %v2448
  %2481 = vmatprep.subr.mxu0 0.0
  %2482 = vmatpush1.msra.mxu0 0.0
  %2483 = vmatprep.subr.mxu0 0.0
  %2484 = vmatpush1.msra.mxu0 0.0
  %2485 = vmatprep.subr.mxu0 0.0
  %2486 = vmatpush1.msra.mxu0 0.0
  %2487 = vmatprep.subr.mxu0 0.0
  %2488 = vmatpush1.msra.mxu0 0.0
  %2489 = vmatprep.subr.mxu0 0.0
  %2490 = vmatpush1.msra.mxu0 0.0
  %2491 = vmatprep.subr.mxu0 0.0
  %2492 = vmatpush1.msra.mxu0 0.0
  %2493 = vmatprep.subr.mxu0 0.0
  %2494 = vmatpush1.msra.mxu0 0.0
  %2495 = vmatprep.subr.mxu0 0.0
  %2496 = vmatpush1.msra.mxu0 0.0
  %2497 = vmatprep.subr.mxu0 0.0
  %2498 = vmatpush1.msra.mxu0 0.0
  %2499 = vmatprep.subr.mxu0 0.0
  %2500 = vmatpush1.msra.mxu0 0.0
  %2501 = vmatprep.subr.mxu0 0.0
  %2502 = vmatpush1.msra.mxu0 0.0
  %2503 = vmatprep.subr.mxu0 0.0
  %2504 = vmatpush1.msra.mxu0 0.0
  %2505 = vmatprep.subr.mxu0 0.0
  %2506 = vmatpush1.msra.mxu0 0.0
  %2507 = vmatprep.subr.mxu0 0.0
  %2508 = vmatpush1.msra.mxu0 0.0
  %2509 = vmatprep.subr.mxu0 0.0
  %2510 = vmatpush1.msra.mxu0 0.0
  %2511 = vmatprep.subr.mxu0 0.0
  %2512 = vmatpush1.msra.mxu0 0.0
  %2513 = vmatprep.mubr.f32.mxu0 0.0
  %2514 = vmatmul.mubr.f32.gmra.mrb[0].mxu0 %v2430
  %v2515 = vpop.f32.mrb[0].mxu0
  %v2516 = vadd.f32 0.0, %v2515
  %v2517 = vpop.f32.mrb[0].mxu0
  %2518 = vdwg.mxu0
  %v2519 = vadd.f32 %v2432, %v2516
  %v2520 = vxor.u32 %v2519, 2147483648
  %v2521 = vmul.f32 %v2520, 1.442695
  %v2522 = vpow.pop %v2521
  %v2523 = vadd.f32 %v2522, 1.0
  %v2524 = vrcp.pop %v2523
  %v2525 = vmul.f32 1.0, %v2524
  %v2526 = vtanh.pop %v2519
  %v2527 = vmul.f32 %v2525, %v2186
  %2529 = vrot.lane.b32.xlu0 %v2526, 64
  %v2530 = vpop.permute.xlu0 %2529
  %v2532 = vmul.f32 %v2525, %v2530
  %2534 = vrot.lane.b32.xlu0 %v2532, 32
  %v2535 = vpop.permute.xlu0 %2534
  %v2537 = vadd.f32 %v2527, %v2535
  %v2538 = vtanh.pop %v2537
  %2540 = vrot.lane.b32.xlu0 %v2538, 64
  %v2541 = vpop.permute.xlu0 %2540
  %v2543 = vmul.f32 %v2525, %v2541
  %s2544 = scalar_lea.vmem %s2, 24
  %v2545 = vld [vmem:[%s2544] sm:$0xf]
  %v2546 = vsub.f32 1.0, %v2545
  %2548 = vrot.lane.b32.xlu0 %v2545, 96
  %v2549 = vpop.permute.xlu0 %2548
  %v2551 = vmul.f32 %v2543, %v2549
  %2553 = vrot.lane.b32.xlu0 %v2546, 96
  %v2554 = vpop.permute.xlu0 %2553
  %v2556 = vmul.f32 %v2177, %v2554
  %v2557 = vadd.f32 %v2551, %v2556
  %2558 = vrot.lane.b32.xlu0 %v2545, 32
  %v2559 = vpop.permute.xlu0 %2558
  %v2561 = vmul.f32 %v2537, %v2559
  %2562 = vrot.lane.b32.xlu0 %v2546, 32
  %v2563 = vpop.permute.xlu0 %2562
  %v2565 = vmul.f32 %v2186, %v2563
  %v2566 = vadd.f32 %v2561, %v2565
  %2568 = vrot.lane.b32.xlu0 %v2557, 32
  %v2569 = vpop.permute.xlu0 %2568
  %v2570 = vsel %vm35, %v2569, 0
  %2572 = vmatprep.subr.mxu0 0.0
  %2573 = vmatpush1.msra.mxu0 %v47
  %2574 = vmatprep.subr.mxu0 0.0
  %2575 = vmatpush1.msra.mxu0 %v48
  %2576 = vmatprep.subr.mxu0 0.0
  %2577 = vmatpush1.msra.mxu0 %v49
  %2578 = vmatprep.subr.mxu0 0.0
  %2579 = vmatpush1.msra.mxu0 %v50
  %2580 = vmatprep.subr.mxu0 0.0
  %2581 = vmatpush1.msra.mxu0 0.0
  %2582 = vmatprep.subr.mxu0 0.0
  %2583 = vmatpush1.msra.mxu0 0.0
  %2584 = vmatprep.subr.mxu0 0.0
  %2585 = vmatpush1.msra.mxu0 0.0
  %2586 = vmatprep.subr.mxu0 0.0
  %2587 = vmatpush1.msra.mxu0 0.0
  %2588 = vmatprep.subr.mxu0 0.0
  %2589 = vmatpush1.msra.mxu0 0.0
  %2590 = vmatprep.subr.mxu0 0.0
  %2591 = vmatpush1.msra.mxu0 0.0
  %2592 = vmatprep.subr.mxu0 0.0
  %2593 = vmatpush1.msra.mxu0 0.0
  %2594 = vmatprep.subr.mxu0 0.0
  %2595 = vmatpush1.msra.mxu0 0.0
  %2596 = vmatprep.subr.mxu0 0.0
  %2597 = vmatpush1.msra.mxu0 0.0
  %2598 = vmatprep.subr.mxu0 0.0
  %2599 = vmatpush1.msra.mxu0 0.0
  %2600 = vmatprep.subr.mxu0 0.0
  %2601 = vmatpush1.msra.mxu0 0.0
  %2602 = vmatprep.subr.mxu0 0.0
  %2603 = vmatpush1.msra.mxu0 0.0
  %2604 = vmatprep.subr.mxu0 0.0
  %2605 = vmatpush1.msra.mxu0 0.0
  %2606 = vmatprep.subr.mxu0 0.0
  %2607 = vmatpush1.msra.mxu0 0.0
  %2608 = vmatprep.subr.mxu0 0.0
  %2609 = vmatpush1.msra.mxu0 0.0
  %2610 = vmatprep.subr.mxu0 0.0
  %2611 = vmatpush1.msra.mxu0 0.0
  %2612 = vmatprep.subr.mxu0 0.0
  %2613 = vmatpush1.msra.mxu0 0.0
  %2614 = vmatprep.subr.mxu0 0.0
  %2615 = vmatpush1.msra.mxu0 0.0
  %2616 = vmatprep.subr.mxu0 0.0
  %2617 = vmatpush1.msra.mxu0 0.0
  %2618 = vmatprep.subr.mxu0 0.0
  %2619 = vmatpush1.msra.mxu0 0.0
  %2620 = vmatprep.subr.mxu0 0.0
  %2621 = vmatpush1.msra.mxu0 0.0
  %2622 = vmatprep.subr.mxu0 0.0
  %2623 = vmatpush1.msra.mxu0 0.0
  %2624 = vmatprep.subr.mxu0 0.0
  %2625 = vmatpush1.msra.mxu0 0.0
  %2626 = vmatprep.subr.mxu0 0.0
  %2627 = vmatpush1.msra.mxu0 0.0
  %2628 = vmatprep.subr.mxu0 0.0
  %2629 = vmatpush1.msra.mxu0 0.0
  %2630 = vmatprep.subr.mxu0 0.0
  %2631 = vmatpush1.msra.mxu0 0.0
  %2632 = vmatprep.subr.mxu0 0.0
  %2633 = vmatpush1.msra.mxu0 0.0
  %2634 = vmatprep.subr.mxu0 0.0
  %2635 = vmatpush1.msra.mxu0 0.0
  %2636 = vmatprep.mubr.f32.mxu0 0.0
  %2637 = vmatmul.mubr.f32.gmra.mrb[0].mxu0 %v2570
  %v2638 = vpop.f32.mrb[0].mxu0
  %v2639 = vadd.f32 %v51, %v2638
  %v2640 = vpop.f32.mrb[0].mxu0
  %2641 = vdwg.mxu0
  %v2642 = vmul.f32 %v2639, 1.442695
  %v2643 = vpow.pop %v2642
  %v2644 = vsel %vm360, %v2643, 0.0
  %2645 = vadd.xlane.f32.xlu0 %v2644
  %v2646 = vpop.xlane.xlu0 %2645
  %v2647 = vrcp.pop %v2646
  %v2648 = vmul.f32 %v2643, %v2647
  %v2650 = vsel %vm366, %v2648, 0
  %2652 = vmatprep.subr.mxu0 0.0
  %2653 = vmatpush1.msra.mxu0 %v52
  %2654 = vmatprep.subr.mxu0 0.0
  %2655 = vmatpush1.msra.mxu0 %v53
  %2656 = vmatprep.subr.mxu0 0.0
  %2657 = vmatpush1.msra.mxu0 0.0
  %2658 = vmatprep.subr.mxu0 0.0
  %2659 = vmatpush1.msra.mxu0 0.0
  %2660 = vmatprep.subr.mxu0 0.0
  %2661 = vmatpush1.msra.mxu0 0.0
  %2662 = vmatprep.subr.mxu0 0.0
  %2663 = vmatpush1.msra.mxu0 0.0
  %2664 = vmatprep.subr.mxu0 0.0
  %2665 = vmatpush1.msra.mxu0 0.0
  %2666 = vmatprep.subr.mxu0 0.0
  %2667 = vmatpush1.msra.mxu0 0.0
  %2668 = vmatprep.subr.mxu0 0.0
  %2669 = vmatpush1.msra.mxu0 0.0
  %2670 = vmatprep.subr.mxu0 0.0
  %2671 = vmatpush1.msra.mxu0 0.0
  %2672 = vmatprep.subr.mxu0 0.0
  %2673 = vmatpush1.msra.mxu0 0.0
  %2674 = vmatprep.subr.mxu0 0.0
  %2675 = vmatpush1.msra.mxu0 0.0
  %2676 = vmatprep.subr.mxu0 0.0
  %2677 = vmatpush1.msra.mxu0 0.0
  %2678 = vmatprep.subr.mxu0 0.0
  %2679 = vmatpush1.msra.mxu0 0.0
  %2680 = vmatprep.subr.mxu0 0.0
  %2681 = vmatpush1.msra.mxu0 0.0
  %2682 = vmatprep.subr.mxu0 0.0
  %2683 = vmatpush1.msra.mxu0 0.0
  %2684 = vmatprep.subr.mxu0 0.0
  %2685 = vmatpush1.msra.mxu0 0.0
  %2686 = vmatprep.subr.mxu0 0.0
  %2687 = vmatpush1.msra.mxu0 0.0
  %2688 = vmatprep.subr.mxu0 0.0
  %2689 = vmatpush1.msra.mxu0 0.0
  %2690 = vmatprep.subr.mxu0 0.0
  %2691 = vmatpush1.msra.mxu0 0.0
  %2692 = vmatprep.subr.mxu0 0.0
  %2693 = vmatpush1.msra.mxu0 0.0
  %2694 = vmatprep.subr.mxu0 0.0
  %2695 = vmatpush1.msra.mxu0 0.0
  %2696 = vmatprep.subr.mxu0 0.0
  %2697 = vmatpush1.msra.mxu0 0.0
  %2698 = vmatprep.subr.mxu0 0.0
  %2699 = vmatpush1.msra.mxu0 0.0
  %2700 = vmatprep.subr.mxu0 0.0
  %2701 = vmatpush1.msra.mxu0 0.0
  %2702 = vmatprep.subr.mxu0 0.0
  %2703 = vmatpush1.msra.mxu0 0.0
  %2704 = vmatprep.subr.mxu0 0.0
  %2705 = vmatpush1.msra.mxu0 0.0
  %2706 = vmatprep.subr.mxu0 0.0
  %2707 = vmatpush1.msra.mxu0 0.0
  %2708 = vmatprep.subr.mxu0 0.0
  %2709 = vmatpush1.msra.mxu0 0.0
  %2710 = vmatprep.subr.mxu0 0.0
  %2711 = vmatpush1.msra.mxu0 0.0
  %2712 = vmatprep.subr.mxu0 0.0
  %2713 = vmatpush1.msra.mxu0 0.0
  %2714 = vmatprep.subr.mxu0 0.0
  %2715 = vmatpush1.msra.mxu0 0.0
  %2716 = vmatprep.mubr.f32.mxu0 0.0
  %2717 = vmatmul.mubr.f32.gmra.mrb[0].mxu0 %v2650
  %v2718 = vpop.f32.mrb[0].mxu0
  %v2719 = vadd.f32 0.0, %v2718
  %v2720 = vpop.f32.mrb[0].mxu0
  %2721 = vdwg.mxu0
  %2723 = vst.msk [vmem:[#allocation2 + $0x1c] sm:$0xf] %vm441, %v2569
  %2724 = vst.msk [vmem:[#allocation3 + $0x1c] sm:$0xf] %vm443, %v2719
  %s2725 = scalar_lea.vmem %s1, 28
  %v2726 = vld [vmem:[%s2725] sm:$0xf]
  %v2727 = vld [vmem:[#allocation2] sm:$0xff]
  %v2728 = vld [vmem:[#allocation2 + $0x8] sm:$0xff]
  %v2729 = vld [vmem:[#allocation2 + $0x10] sm:$0xff]
  %v2730 = vld [vmem:[#allocation2 + $0x18] sm:$0xff]
  %v2731 = vld [vmem:[#allocation2 + $0x20] sm:$0xff]
  %v2733 = vsel %vm63, %v2726, 0
  %2735 = vmatprep.subr.mxu0 0.0
  %2736 = vmatpush1.msra.mxu0 %v2727
  %2737 = vmatprep.subr.mxu0 0.0
  %2738 = vmatpush1.msra.mxu0 %v2728
  %2739 = vmatprep.subr.mxu0 0.0
  %2740 = vmatpush1.msra.mxu0 %v2729
  %2741 = vmatprep.subr.mxu0 0.0
  %2742 = vmatpush1.msra.mxu0 %v2730
  %2743 = vmatprep.subr.mxu0 0.0
  %2744 = vmatpush1.msra.mxu0 %v2731
  %2745 = vmatprep.subr.mxu0 0.0
  %2746 = vmatpush1.msra.mxu0 0.0
  %2747 = vmatprep.subr.mxu0 0.0
  %2748 = vmatpush1.msra.mxu0 0.0
  %2749 = vmatprep.subr.mxu0 0.0
  %2750 = vmatpush1.msra.mxu0 0.0
  %2751 = vmatprep.subr.mxu0 0.0
  %2752 = vmatpush1.msra.mxu0 0.0
  %2753 = vmatprep.subr.mxu0 0.0
  %2754 = vmatpush1.msra.mxu0 0.0
  %2755 = vmatprep.subr.mxu0 0.0
  %2756 = vmatpush1.msra.mxu0 0.0
  %2757 = vmatprep.subr.mxu0 0.0
  %2758 = vmatpush1.msra.mxu0 0.0
  %2759 = vmatprep.subr.mxu0 0.0
  %2760 = vmatpush1.msra.mxu0 0.0
  %2761 = vmatprep.subr.mxu0 0.0
  %2762 = vmatpush1.msra.mxu0 0.0
  %2763 = vmatprep.subr.mxu0 0.0
  %2764 = vmatpush1.msra.mxu0 0.0
  %2765 = vmatprep.subr.mxu0 0.0
  %2766 = vmatpush1.msra.mxu0 0.0
  %2767 = vmatprep.subr.mxu0 0.0
  %2768 = vmatpush1.msra.mxu0 0.0
  %2769 = vmatprep.subr.mxu0 0.0
  %2770 = vmatpush1.msra.mxu0 0.0
  %2771 = vmatprep.subr.mxu0 0.0
  %2772 = vmatpush1.msra.mxu0 0.0
  %2773 = vmatprep.subr.mxu0 0.0
  %2774 = vmatpush1.msra.mxu0 0.0
  %2775 = vmatprep.subr.mxu0 0.0
  %2776 = vmatpush1.msra.mxu0 0.0
  %2777 = vmatprep.subr.mxu0 0.0
  %2778 = vmatpush1.msra.mxu0 0.0
  %2779 = vmatprep.subr.mxu0 0.0
  %2780 = vmatpush1.msra.mxu0 0.0
  %2781 = vmatprep.subr.mxu0 0.0
  %2782 = vmatpush1.msra.mxu0 0.0
  %2783 = vmatprep.subr.mxu0 0.0
  %2784 = vmatpush1.msra.mxu0 0.0
  %2785 = vmatprep.subr.mxu0 0.0
  %2786 = vmatpush1.msra.mxu0 0.0
  %2787 = vmatprep.subr.mxu0 0.0
  %2788 = vmatpush1.msra.mxu0 0.0
  %2789 = vmatprep.subr.mxu0 0.0
  %2790 = vmatpush1.msra.mxu0 0.0
  %2791 = vmatprep.subr.mxu0 0.0
  %2792 = vmatpush1.msra.mxu0 0.0
  %2793 = vmatprep.subr.mxu0 0.0
  %2794 = vmatpush1.msra.mxu0 0.0
  %2795 = vmatprep.subr.mxu0 0.0
  %2796 = vmatpush1.msra.mxu0 0.0
  %2797 = vmatprep.subr.mxu0 0.0
  %2798 = vmatpush1.msra.mxu0 0.0
  %2799 = vmatprep.mubr.f32.mxu0 0.0
  %2800 = vmatmul.mubr.f32.gmra.mrb[0].mxu0 %v2733
  %v2801 = vpop.f32.mrb[0].mxu0
  %v2802 = vadd.f32 0.0, %v2801
  %v2803 = vpop.f32.mrb[0].mxu0
  %2804 = vdwg.mxu0
  %2806 = vrot.lane.b32.xlu0 %v2719, 32
  %v2807 = vpop.permute.xlu0 %2806
  %v2809 = vsel %vm35, %v2802, %v2807
  %v2810 = vsel %vm142, %v2809, %v2557
  %s2811 = scalar_lea.vmem %s0, 28
  %v2812 = vld [vmem:[%s2811] sm:$0xf]
  %v2813 = vld [vmem:[%s7] sm:$0xff]
  %v2814 = vld [vmem:[%s7 + $0x8] sm:$0xff]
  %v2815 = vld [vmem:[%s7 + $0x10] sm:$0xff]
  %v2816 = vld [vmem:[%s7 + $0x18] sm:$0xff]
  %v2817 = vld [vmem:[%s7 + $0x20] sm:$0xff]
  %v2818 = vld [vmem:[%s7 + $0x28] sm:$0xff]
  %v2819 = vld [vmem:[%s7 + $0x30] sm:$0xff]
  %v2820 = vld [vmem:[%s7 + $0x38] sm:$0xff]
  %v2821 = vld [vmem:[%s7 + $0x40] sm:$0xff]
  %v2822 = vld [vmem:[%s7 + $0x48] sm:$0xff]
  %v2823 = vld [vmem:[%s7 + $0x50] sm:$0xff]
  %v2824 = vld [vmem:[%s7 + $0x58] sm:$0xff]
  %v2825 = vld [vmem:[%s7 + $0x60] sm:$0xff]
  %v2826 = vld [vmem:[%s7 + $0x68] sm:$0xff]
  %v2827 = vld [vmem:[%s7 + $0x70] sm:$0xff]
  %v2828 = vld [vmem:[%s7 + $0x78] sm:$0xff]
  %2829 = vmatprep.subr.mxu0 0.0
  %2830 = vmatpush1.msra.mxu0 %v2813
  %2831 = vmatprep.subr.mxu0 0.0
  %2832 = vmatpush1.msra.mxu0 %v2814
  %2833 = vmatprep.subr.mxu0 0.0
  %2834 = vmatpush1.msra.mxu0 %v2815
  %2835 = vmatprep.subr.mxu0 0.0
  %2836 = vmatpush1.msra.mxu0 %v2816
  %2837 = vmatprep.subr.mxu0 0.0
  %2838 = vmatpush1.msra.mxu0 %v2817
  %2839 = vmatprep.subr.mxu0 0.0
  %2840 = vmatpush1.msra.mxu0 %v2818
  %2841 = vmatprep.subr.mxu0 0.0
  %2842 = vmatpush1.msra.mxu0 %v2819
  %2843 = vmatprep.subr.mxu0 0.0
  %2844 = vmatpush1.msra.mxu0 %v2820
  %2845 = vmatprep.subr.mxu0 0.0
  %2846 = vmatpush1.msra.mxu0 %v2821
  %2847 = vmatprep.subr.mxu0 0.0
  %2848 = vmatpush1.msra.mxu0 %v2822
  %2849 = vmatprep.subr.mxu0 0.0
  %2850 = vmatpush1.msra.mxu0 %v2823
  %2851 = vmatprep.subr.mxu0 0.0
  %2852 = vmatpush1.msra.mxu0 %v2824
  %2853 = vmatprep.subr.mxu0 0.0
  %2854 = vmatpush1.msra.mxu0 %v2825
  %2855 = vmatprep.subr.mxu0 0.0
  %2856 = vmatpush1.msra.mxu0 %v2826
  %2857 = vmatprep.subr.mxu0 0.0
  %2858 = vmatpush1.msra.mxu0 %v2827
  %2859 = vmatprep.subr.mxu0 0.0
  %2860 = vmatpush1.msra.mxu0 %v2828
  %2861 = vmatprep.subr.mxu0 0.0
  %2862 = vmatpush1.msra.mxu0 0.0
  %2863 = vmatprep.subr.mxu0 0.0
  %2864 = vmatpush1.msra.mxu0 0.0
  %2865 = vmatprep.subr.mxu0 0.0
  %2866 = vmatpush1.msra.mxu0 0.0
  %2867 = vmatprep.subr.mxu0 0.0
  %2868 = vmatpush1.msra.mxu0 0.0
  %2869 = vmatprep.subr.mxu0 0.0
  %2870 = vmatpush1.msra.mxu0 0.0
  %2871 = vmatprep.subr.mxu0 0.0
  %2872 = vmatpush1.msra.mxu0 0.0
  %2873 = vmatprep.subr.mxu0 0.0
  %2874 = vmatpush1.msra.mxu0 0.0
  %2875 = vmatprep.subr.mxu0 0.0
  %2876 = vmatpush1.msra.mxu0 0.0
  %2877 = vmatprep.subr.mxu0 0.0
  %2878 = vmatpush1.msra.mxu0 0.0
  %2879 = vmatprep.subr.mxu0 0.0
  %2880 = vmatpush1.msra.mxu0 0.0
  %2881 = vmatprep.subr.mxu0 0.0
  %2882 = vmatpush1.msra.mxu0 0.0
  %2883 = vmatprep.subr.mxu0 0.0
  %2884 = vmatpush1.msra.mxu0 0.0
  %2885 = vmatprep.subr.mxu0 0.0
  %2886 = vmatpush1.msra.mxu0 0.0
  %2887 = vmatprep.subr.mxu0 0.0
  %2888 = vmatpush1.msra.mxu0 0.0
  %2889 = vmatprep.subr.mxu0 0.0
  %2890 = vmatpush1.msra.mxu0 0.0
  %2891 = vmatprep.subr.mxu0 0.0
  %2892 = vmatpush1.msra.mxu0 0.0
  %2893 = vmatprep.mubr.f32.mxu0 0.0
  %2894 = vmatmul.mubr.f32.gmra.mrb[0].mxu0 %v2810
  %v2895 = vpop.f32.mrb[0].mxu0
  %v2896 = vadd.f32 0.0, %v2895
  %v2897 = vpop.f32.mrb[0].mxu0
  %2898 = vdwg.mxu0
  %v2899 = vadd.f32 %v2812, %v2896
  %v2900 = vxor.u32 %v2899, 2147483648
  %v2901 = vmul.f32 %v2900, 1.442695
  %v2902 = vpow.pop %v2901
  %v2903 = vadd.f32 %v2902, 1.0
  %v2904 = vrcp.pop %v2903
  %v2905 = vmul.f32 1.0, %v2904
  %v2906 = vtanh.pop %v2899
  %v2907 = vmul.f32 %v2905, %v2566
  %2909 = vrot.lane.b32.xlu0 %v2906, 64
  %v2910 = vpop.permute.xlu0 %2909
  %v2912 = vmul.f32 %v2905, %v2910
  %2914 = vrot.lane.b32.xlu0 %v2912, 32
  %v2915 = vpop.permute.xlu0 %2914
  %v2917 = vadd.f32 %v2907, %v2915
  %v2918 = vtanh.pop %v2917
  %2920 = vrot.lane.b32.xlu0 %v2918, 64
  %v2921 = vpop.permute.xlu0 %2920
  %v2923 = vmul.f32 %v2905, %v2921
  %s2924 = scalar_lea.vmem %s2, 28
  %v2925 = vld [vmem:[%s2924] sm:$0xf]
  %v2926 = vsub.f32 1.0, %v2925
  %2928 = vrot.lane.b32.xlu0 %v2925, 96
  %v2929 = vpop.permute.xlu0 %2928
  %v2931 = vmul.f32 %v2923, %v2929
  %2933 = vrot.lane.b32.xlu0 %v2926, 96
  %v2934 = vpop.permute.xlu0 %2933
  %v2936 = vmul.f32 %v2557, %v2934
  %v2937 = vadd.f32 %v2931, %v2936
  %2939 = vrot.lane.b32.xlu0 %v2937, 32
  %v2940 = vpop.permute.xlu0 %2939
  %v2941 = vsel %vm35, %v2940, 0
  %2943 = vmatprep.subr.mxu0 0.0
  %2944 = vmatpush1.msra.mxu0 %v47
  %2945 = vmatprep.subr.mxu0 0.0
  %2946 = vmatpush1.msra.mxu0 %v48
  %2947 = vmatprep.subr.mxu0 0.0
  %2948 = vmatpush1.msra.mxu0 %v49
  %2949 = vmatprep.subr.mxu0 0.0
  %2950 = vmatpush1.msra.mxu0 %v50
  %2951 = vmatprep.subr.mxu0 0.0
  %2952 = vmatpush1.msra.mxu0 0.0
  %2953 = vmatprep.subr.mxu0 0.0
  %2954 = vmatpush1.msra.mxu0 0.0
  %2955 = vmatprep.subr.mxu0 0.0
  %2956 = vmatpush1.msra.mxu0 0.0
  %2957 = vmatprep.subr.mxu0 0.0
  %2958 = vmatpush1.msra.mxu0 0.0
  %2959 = vmatprep.subr.mxu0 0.0
  %2960 = vmatpush1.msra.mxu0 0.0
  %2961 = vmatprep.subr.mxu0 0.0
  %2962 = vmatpush1.msra.mxu0 0.0
  %2963 = vmatprep.subr.mxu0 0.0
  %2964 = vmatpush1.msra.mxu0 0.0
  %2965 = vmatprep.subr.mxu0 0.0
  %2966 = vmatpush1.msra.mxu0 0.0
  %2967 = vmatprep.subr.mxu0 0.0
  %2968 = vmatpush1.msra.mxu0 0.0
  %2969 = vmatprep.subr.mxu0 0.0
  %2970 = vmatpush1.msra.mxu0 0.0
  %2971 = vmatprep.subr.mxu0 0.0
  %2972 = vmatpush1.msra.mxu0 0.0
  %2973 = vmatprep.subr.mxu0 0.0
  %2974 = vmatpush1.msra.mxu0 0.0
  %2975 = vmatprep.subr.mxu0 0.0
  %2976 = vmatpush1.msra.mxu0 0.0
  %2977 = vmatprep.subr.mxu0 0.0
  %2978 = vmatpush1.msra.mxu0 0.0
  %2979 = vmatprep.subr.mxu0 0.0
  %2980 = vmatpush1.msra.mxu0 0.0
  %2981 = vmatprep.subr.mxu0 0.0
  %2982 = vmatpush1.msra.mxu0 0.0
  %2983 = vmatprep.subr.mxu0 0.0
  %2984 = vmatpush1.msra.mxu0 0.0
  %2985 = vmatprep.subr.mxu0 0.0
  %2986 = vmatpush1.msra.mxu0 0.0
  %2987 = vmatprep.subr.mxu0 0.0
  %2988 = vmatpush1.msra.mxu0 0.0
  %2989 = vmatprep.subr.mxu0 0.0
  %2990 = vmatpush1.msra.mxu0 0.0
  %2991 = vmatprep.subr.mxu0 0.0
  %2992 = vmatpush1.msra.mxu0 0.0
  %2993 = vmatprep.subr.mxu0 0.0
  %2994 = vmatpush1.msra.mxu0 0.0
  %2995 = vmatprep.subr.mxu0 0.0
  %2996 = vmatpush1.msra.mxu0 0.0
  %2997 = vmatprep.subr.mxu0 0.0
  %2998 = vmatpush1.msra.mxu0 0.0
  %2999 = vmatprep.subr.mxu0 0.0
  %3000 = vmatpush1.msra.mxu0 0.0
  %3001 = vmatprep.subr.mxu0 0.0
  %3002 = vmatpush1.msra.mxu0 0.0
  %3003 = vmatprep.subr.mxu0 0.0
  %3004 = vmatpush1.msra.mxu0 0.0
  %3005 = vmatprep.subr.mxu0 0.0
  %3006 = vmatpush1.msra.mxu0 0.0
  %3007 = vmatprep.mubr.f32.mxu0 0.0
  %3008 = vmatmul.mubr.f32.gmra.mrb[0].mxu0 %v2941
  %v3009 = vpop.f32.mrb[0].mxu0
  %v3010 = vadd.f32 %v51, %v3009
  %v3011 = vpop.f32.mrb[0].mxu0
  %3012 = vdwg.mxu0
  %v3013 = vmul.f32 %v3010, 1.442695
  %v3014 = vpow.pop %v3013
  %v3015 = vsel %vm360, %v3014, 0.0
  %3016 = vadd.xlane.f32.xlu0 %v3015
  %v3017 = vpop.xlane.xlu0 %3016
  %v3018 = vrcp.pop %v3017
  %v3019 = vmul.f32 %v3014, %v3018
  %v3021 = vsel %vm366, %v3019, 0
  %3023 = vmatprep.subr.mxu0 0.0
  %3024 = vmatpush1.msra.mxu0 %v52
  %3025 = vmatprep.subr.mxu0 0.0
  %3026 = vmatpush1.msra.mxu0 %v53
  %3027 = vmatprep.subr.mxu0 0.0
  %3028 = vmatpush1.msra.mxu0 0.0
  %3029 = vmatprep.subr.mxu0 0.0
  %3030 = vmatpush1.msra.mxu0 0.0
  %3031 = vmatprep.subr.mxu0 0.0
  %3032 = vmatpush1.msra.mxu0 0.0
  %3033 = vmatprep.subr.mxu0 0.0
  %3034 = vmatpush1.msra.mxu0 0.0
  %3035 = vmatprep.subr.mxu0 0.0
  %3036 = vmatpush1.msra.mxu0 0.0
  %3037 = vmatprep.subr.mxu0 0.0
  %3038 = vmatpush1.msra.mxu0 0.0
  %3039 = vmatprep.subr.mxu0 0.0
  %3040 = vmatpush1.msra.mxu0 0.0
  %3041 = vmatprep.subr.mxu0 0.0
  %3042 = vmatpush1.msra.mxu0 0.0
  %3043 = vmatprep.subr.mxu0 0.0
  %3044 = vmatpush1.msra.mxu0 0.0
  %3045 = vmatprep.subr.mxu0 0.0
  %3046 = vmatpush1.msra.mxu0 0.0
  %3047 = vmatprep.subr.mxu0 0.0
  %3048 = vmatpush1.msra.mxu0 0.0
  %3049 = vmatprep.subr.mxu0 0.0
  %3050 = vmatpush1.msra.mxu0 0.0
  %3051 = vmatprep.subr.mxu0 0.0
  %3052 = vmatpush1.msra.mxu0 0.0
  %3053 = vmatprep.subr.mxu0 0.0
  %3054 = vmatpush1.msra.mxu0 0.0
  %3055 = vmatprep.subr.mxu0 0.0
  %3056 = vmatpush1.msra.mxu0 0.0
  %3057 = vmatprep.subr.mxu0 0.0
  %3058 = vmatpush1.msra.mxu0 0.0
  %3059 = vmatprep.subr.mxu0 0.0
  %3060 = vmatpush1.msra.mxu0 0.0
  %3061 = vmatprep.subr.mxu0 0.0
  %3062 = vmatpush1.msra.mxu0 0.0
  %3063 = vmatprep.subr.mxu0 0.0
  %3064 = vmatpush1.msra.mxu0 0.0
  %3065 = vmatprep.subr.mxu0 0.0
  %3066 = vmatpush1.msra.mxu0 0.0
  %3067 = vmatprep.subr.mxu0 0.0
  %3068 = vmatpush1.msra.mxu0 0.0
  %3069 = vmatprep.subr.mxu0 0.0
  %3070 = vmatpush1.msra.mxu0 0.0
  %3071 = vmatprep.subr.mxu0 0.0
  %3072 = vmatpush1.msra.mxu0 0.0
  %3073 = vmatprep.subr.mxu0 0.0
  %3074 = vmatpush1.msra.mxu0 0.0
  %3075 = vmatprep.subr.mxu0 0.0
  %3076 = vmatpush1.msra.mxu0 0.0
  %3077 = vmatprep.subr.mxu0 0.0
  %3078 = vmatpush1.msra.mxu0 0.0
  %3079 = vmatprep.subr.mxu0 0.0
  %3080 = vmatpush1.msra.mxu0 0.0
  %3081 = vmatprep.subr.mxu0 0.0
  %3082 = vmatpush1.msra.mxu0 0.0
  %3083 = vmatprep.subr.mxu0 0.0
  %3084 = vmatpush1.msra.mxu0 0.0
  %3085 = vmatprep.subr.mxu0 0.0
  %3086 = vmatpush1.msra.mxu0 0.0
  %3087 = vmatprep.mubr.f32.mxu0 0.0
  %3088 = vmatmul.mubr.f32.gmra.mrb[0].mxu0 %v3021
  %v3089 = vpop.f32.mrb[0].mxu0
  %v3090 = vadd.f32 0.0, %v3089
  %v3091 = vpop.f32.mrb[0].mxu0
  %3092 = vdwg.mxu0
  %3094 = vst.msk [vmem:[#allocation2 + $0x20] sm:$0xf] %vm441, %v2940
  %3095 = vst.msk [vmem:[#allocation3 + $0x20] sm:$0xf] %vm443, %v3090
  %v3096 = vld [vmem:[%s8] sm:$0xff]
  %v3097 = vld [vmem:[%s8 + $0x8] sm:$0xff]
  %v3098 = vld [vmem:[%s8 + $0x10] sm:$0xff]
  %v3099 = vld [vmem:[%s8 + $0x18] sm:$0xff]
  %v3100 = vld [vmem:[%s8 + $0x20] sm:$0xff]
  %v3101 = vld [vmem:[%s8 + $0x28] sm:$0xff]
  %v3102 = vld [vmem:[%s8 + $0x30] sm:$0xff]
  %v3103 = vld [vmem:[%s8 + $0x38] sm:$0xff]
  %v3104 = vld [vmem:[%s8 + $0x40] sm:$0xff]
  %v3105 = vld [vmem:[%s8 + $0x48] sm:$0xff]
  %v3106 = vld [vmem:[%s8 + $0x50] sm:$0xff]
  %v3107 = vld [vmem:[%s8 + $0x58] sm:$0xff]
  %v3108 = vld [vmem:[#allocation2] sm:$0xff]
  %v3109 = vld [vmem:[#allocation2 + $0x8] sm:$0xff]
  %v3110 = vld [vmem:[#allocation2 + $0x10] sm:$0xff]
  %v3111 = vld [vmem:[#allocation2 + $0x18] sm:$0xff]
  %v3112 = vld [vmem:[#allocation2 + $0x20] sm:$0xff]
  %v3113 = vld [vmem:[#allocation3] sm:$0xff]
  %v3114 = vld [vmem:[#allocation3 + $0x8] sm:$0xff]
  %v3115 = vld [vmem:[#allocation3 + $0x10] sm:$0xff]
  %v3116 = vld [vmem:[#allocation3 + $0x18] sm:$0xff]
  %v3117 = vld [vmem:[#allocation3 + $0x20] sm:$0xff]
  %v3119 = vsel %vm41, %v3113, 0
  %v3122 = vsel %vm41, %v3114, 0
  %v3125 = vsel %vm41, %v3115, 0
  %v3128 = vsel %vm41, %v3116, 0
  %v3131 = vsel %vm41, %v3117, 0
  %3133 = vmatprep.subr.mxu0 0.0
  %3134 = vmatpush1.msra.mxu0 %v3100
  %3135 = vmatprep.subr.mxu0 0.0
  %3136 = vmatpush1.msra.mxu0 %v3101
  %3137 = vmatprep.subr.mxu0 0.0
  %3138 = vmatpush1.msra.mxu0 %v3102
  %3139 = vmatprep.subr.mxu0 0.0
  %3140 = vmatpush1.msra.mxu0 %v3103
  %3141 = vmatprep.subr.mxu0 0.0
  %3142 = vmatpush1.msra.mxu0 %v3104
  %3143 = vmatprep.subr.mxu0 0.0
  %3144 = vmatpush1.msra.mxu0 %v3105
  %3145 = vmatprep.subr.mxu0 0.0
  %3146 = vmatpush1.msra.mxu0 %v3106
  %3147 = vmatprep.subr.mxu0 0.0
  %3148 = vmatpush1.msra.mxu0 %v3107
  %3149 = vmatprep.subr.mxu0 0.0
  %3150 = vmatpush1.msra.mxu0 0.0
  %3151 = vmatprep.subr.mxu0 0.0
  %3152 = vmatpush1.msra.mxu0 0.0
  %3153 = vmatprep.subr.mxu0 0.0
  %3154 = vmatpush1.msra.mxu0 0.0
  %3155 = vmatprep.subr.mxu0 0.0
  %3156 = vmatpush1.msra.mxu0 0.0
  %3157 = vmatprep.subr.mxu0 0.0
  %3158 = vmatpush1.msra.mxu0 0.0
  %3159 = vmatprep.subr.mxu0 0.0
  %3160 = vmatpush1.msra.mxu0 0.0
  %3161 = vmatprep.subr.mxu0 0.0
  %3162 = vmatpush1.msra.mxu0 0.0
  %3163 = vmatprep.subr.mxu0 0.0
  %3164 = vmatpush1.msra.mxu0 0.0
  %3165 = vmatprep.subr.mxu0 0.0
  %3166 = vmatpush1.msra.mxu0 0.0
  %3167 = vmatprep.subr.mxu0 0.0
  %3168 = vmatpush1.msra.mxu0 0.0
  %3169 = vmatprep.subr.mxu0 0.0
  %3170 = vmatpush1.msra.mxu0 0.0
  %3171 = vmatprep.subr.mxu0 0.0
  %3172 = vmatpush1.msra.mxu0 0.0
  %3173 = vmatprep.subr.mxu0 0.0
  %3174 = vmatpush1.msra.mxu0 0.0
  %3175 = vmatprep.subr.mxu0 0.0
  %3176 = vmatpush1.msra.mxu0 0.0
  %3177 = vmatprep.subr.mxu0 0.0
  %3178 = vmatpush1.msra.mxu0 0.0
  %3179 = vmatprep.subr.mxu0 0.0
  %3180 = vmatpush1.msra.mxu0 0.0
  %3181 = vmatprep.subr.mxu0 0.0
  %3182 = vmatpush1.msra.mxu0 0.0
  %3183 = vmatprep.subr.mxu0 0.0
  %3184 = vmatpush1.msra.mxu0 0.0
  %3185 = vmatprep.subr.mxu0 0.0
  %3186 = vmatpush1.msra.mxu0 0.0
  %3187 = vmatprep.subr.mxu0 0.0
  %3188 = vmatpush1.msra.mxu0 0.0
  %3189 = vmatprep.subr.mxu0 0.0
  %3190 = vmatpush1.msra.mxu0 0.0
  %3191 = vmatprep.subr.mxu0 0.0
  %3192 = vmatpush1.msra.mxu0 0.0
  %3193 = vmatprep.subr.mxu0 0.0
  %3194 = vmatpush1.msra.mxu0 0.0
  %3195 = vmatprep.subr.mxu0 0.0
  %3196 = vmatpush1.msra.mxu0 0.0
  %3197 = vmatprep.mubr.f32.mxu0 0.0
  %3198 = vmatmul.mubr.f32.gmra.mrb[0].mxu0 %v3119
  %v3199 = vpop.f32.mrb[0].mxu0
  %v3200 = vadd.f32 0.0, %v3199
  %v3201 = vpop.f32.mrb[0].mxu0
  %3202 = vmatprep.mubr.f32.mxu0 0.0
  %3203 = vmatmul.mubr.f32.gmra.mrb[0].mxu0 %v3122
  %v3204 = vpop.f32.mrb[0].mxu0
  %v3205 = vadd.f32 0.0, %v3204
  %v3206 = vpop.f32.mrb[0].mxu0
  %3207 = vmatprep.mubr.f32.mxu0 0.0
  %3208 = vmatmul.mubr.f32.gmra.mrb[0].mxu0 %v3125
  %v3209 = vpop.f32.mrb[0].mxu0
  %v3210 = vadd.f32 0.0, %v3209
  %v3211 = vpop.f32.mrb[0].mxu0
  %3212 = vmatprep.mubr.f32.mxu0 0.0
  %3213 = vmatmul.mubr.f32.gmra.mrb[0].mxu0 %v3128
  %v3214 = vpop.f32.mrb[0].mxu0
  %v3215 = vadd.f32 0.0, %v3214
  %v3216 = vpop.f32.mrb[0].mxu0
  %3217 = vmatprep.mubr.f32.mxu0 0.0
  %3218 = vmatmul.mubr.f32.gmra.mrb[0].mxu0 %v3131
  %v3219 = vpop.f32.mrb[0].mxu0
  %v3220 = vadd.f32 0.0, %v3219
  %v3221 = vpop.f32.mrb[0].mxu0
  %3222 = vdwg.mxu0
  %v3224 = vsel %vm35, %v3108, 0
  %v3227 = vsel %vm35, %v3109, 0
  %v3230 = vsel %vm35, %v3110, 0
  %v3233 = vsel %vm35, %v3111, 0
  %v3236 = vsel %vm35, %v3112, 0
  %3238 = vmatprep.subr.mxu0 0.0
  %3239 = vmatpush1.msra.mxu0 %v3096
  %3240 = vmatprep.subr.mxu0 0.0
  %3241 = vmatpush1.msra.mxu0 %v3097
  %3242 = vmatprep.subr.mxu0 0.0
  %3243 = vmatpush1.msra.mxu0 %v3098
  %3244 = vmatprep.subr.mxu0 0.0
  %3245 = vmatpush1.msra.mxu0 %v3099
  %3246 = vmatprep.subr.mxu0 0.0
  %3247 = vmatpush1.msra.mxu0 0.0
  %3248 = vmatprep.subr.mxu0 0.0
  %3249 = vmatpush1.msra.mxu0 0.0
  %3250 = vmatprep.subr.mxu0 0.0
  %3251 = vmatpush1.msra.mxu0 0.0
  %3252 = vmatprep.subr.mxu0 0.0
  %3253 = vmatpush1.msra.mxu0 0.0
  %3254 = vmatprep.subr.mxu0 0.0
  %3255 = vmatpush1.msra.mxu0 0.0
  %3256 = vmatprep.subr.mxu0 0.0
  %3257 = vmatpush1.msra.mxu0 0.0
  %3258 = vmatprep.subr.mxu0 0.0
  %3259 = vmatpush1.msra.mxu0 0.0
  %3260 = vmatprep.subr.mxu0 0.0
  %3261 = vmatpush1.msra.mxu0 0.0
  %3262 = vmatprep.subr.mxu0 0.0
  %3263 = vmatpush1.msra.mxu0 0.0
  %3264 = vmatprep.subr.mxu0 0.0
  %3265 = vmatpush1.msra.mxu0 0.0
  %3266 = vmatprep.subr.mxu0 0.0
  %3267 = vmatpush1.msra.mxu0 0.0
  %3268 = vmatprep.subr.mxu0 0.0
  %3269 = vmatpush1.msra.mxu0 0.0
  %3270 = vmatprep.subr.mxu0 0.0
  %3271 = vmatpush1.msra.mxu0 0.0
  %3272 = vmatprep.subr.mxu0 0.0
  %3273 = vmatpush1.msra.mxu0 0.0
  %3274 = vmatprep.subr.mxu0 0.0
  %3275 = vmatpush1.msra.mxu0 0.0
  %3276 = vmatprep.subr.mxu0 0.0
  %3277 = vmatpush1.msra.mxu0 0.0
  %3278 = vmatprep.subr.mxu0 0.0
  %3279 = vmatpush1.msra.mxu0 0.0
  %3280 = vmatprep.subr.mxu0 0.0
  %3281 = vmatpush1.msra.mxu0 0.0
  %3282 = vmatprep.subr.mxu0 0.0
  %3283 = vmatpush1.msra.mxu0 0.0
  %3284 = vmatprep.subr.mxu0 0.0
  %3285 = vmatpush1.msra.mxu0 0.0
  %3286 = vmatprep.subr.mxu0 0.0
  %3287 = vmatpush1.msra.mxu0 0.0
  %3288 = vmatprep.subr.mxu0 0.0
  %3289 = vmatpush1.msra.mxu0 0.0
  %3290 = vmatprep.subr.mxu0 0.0
  %3291 = vmatpush1.msra.mxu0 0.0
  %3292 = vmatprep.subr.mxu0 0.0
  %3293 = vmatpush1.msra.mxu0 0.0
  %3294 = vmatprep.subr.mxu0 0.0
  %3295 = vmatpush1.msra.mxu0 0.0
  %3296 = vmatprep.subr.mxu0 0.0
  %3297 = vmatpush1.msra.mxu0 0.0
  %3298 = vmatprep.subr.mxu0 0.0
  %3299 = vmatpush1.msra.mxu0 0.0
  %3300 = vmatprep.subr.mxu0 0.0
  %3301 = vmatpush1.msra.mxu0 0.0
  %3302 = vmatprep.mubr.f32.mxu0 0.0
  %3303 = vmatmul.mubr.f32.gmra.mrb[0].mxu0 %v3224
  %v3304 = vpop.f32.mrb[0].mxu0
  %v3305 = vadd.f32 %v3200, %v3304
  %v3306 = vpop.f32.mrb[0].mxu0
  %3307 = vmatprep.mubr.f32.mxu0 0.0
  %3308 = vmatmul.mubr.f32.gmra.mrb[0].mxu0 %v3227
  %v3309 = vpop.f32.mrb[0].mxu0
  %v3310 = vadd.f32 %v3205, %v3309
  %v3311 = vpop.f32.mrb[0].mxu0
  %3312 = vmatprep.mubr.f32.mxu0 0.0
  %3313 = vmatmul.mubr.f32.gmra.mrb[0].mxu0 %v3230
  %v3314 = vpop.f32.mrb[0].mxu0
  %v3315 = vadd.f32 %v3210, %v3314
  %v3316 = vpop.f32.mrb[0].mxu0
  %3317 = vmatprep.mubr.f32.mxu0 0.0
  %3318 = vmatmul.mubr.f32.gmra.mrb[0].mxu0 %v3233
  %v3319 = vpop.f32.mrb[0].mxu0
  %v3320 = vadd.f32 %v3215, %v3319
  %v3321 = vpop.f32.mrb[0].mxu0
  %3322 = vmatprep.mubr.f32.mxu0 0.0
  %3323 = vmatmul.mubr.f32.gmra.mrb[0].mxu0 %v3236
  %v3324 = vpop.f32.mrb[0].mxu0
  %v3325 = vadd.f32 %v3220, %v3324
  %v3326 = vpop.f32.mrb[0].mxu0
  %3327 = vdwg.mxu0
  %v3328 = vtanh.pop %v3305
  %v3329 = vtanh.pop %v3310
  %v3330 = vtanh.pop %v3315
  %v3331 = vtanh.pop %v3320
  %v3332 = vtanh.pop %v3325
  %v3333 = vld [vmem:[%s9] sm:$0xff]
  %v3334 = vld [vmem:[%s9 + $0x8] sm:$0xff]
  %v3335 = vld [vmem:[%s9 + $0x10] sm:$0xff]
  %v3336 = vld [vmem:[%s9 + $0x18] sm:$0xff]
  %v3338 = vsel %vm35, %v3328, 0
  %v3341 = vsel %vm35, %v3329, 0
  %v3344 = vsel %vm35, %v3330, 0
  %v3347 = vsel %vm35, %v3331, 0
  %v3350 = vsel %vm35, %v3332, 0
  %3352 = vmatprep.subr.mxu0 0.0
  %3353 = vmatpush1.msra.mxu0 %v3333
  %3354 = vmatprep.subr.mxu0 0.0
  %3355 = vmatpush1.msra.mxu0 %v3334
  %3356 = vmatprep.subr.mxu0 0.0
  %3357 = vmatpush1.msra.mxu0 %v3335
  %3358 = vmatprep.subr.mxu0 0.0
  %3359 = vmatpush1.msra.mxu0 %v3336
  %3360 = vmatprep.subr.mxu0 0.0
  %3361 = vmatpush1.msra.mxu0 0.0
  %3362 = vmatprep.subr.mxu0 0.0
  %3363 = vmatpush1.msra.mxu0 0.0
  %3364 = vmatprep.subr.mxu0 0.0
  %3365 = vmatpush1.msra.mxu0 0.0
  %3366 = vmatprep.subr.mxu0 0.0
  %3367 = vmatpush1.msra.mxu0 0.0
  %3368 = vmatprep.subr.mxu0 0.0
  %3369 = vmatpush1.msra.mxu0 0.0
  %3370 = vmatprep.subr.mxu0 0.0
  %3371 = vmatpush1.msra.mxu0 0.0
  %3372 = vmatprep.subr.mxu0 0.0
  %3373 = vmatpush1.msra.mxu0 0.0
  %3374 = vmatprep.subr.mxu0 0.0
  %3375 = vmatpush1.msra.mxu0 0.0
  %3376 = vmatprep.subr.mxu0 0.0
  %3377 = vmatpush1.msra.mxu0 0.0
  %3378 = vmatprep.subr.mxu0 0.0
  %3379 = vmatpush1.msra.mxu0 0.0
  %3380 = vmatprep.subr.mxu0 0.0
  %3381 = vmatpush1.msra.mxu0 0.0
  %3382 = vmatprep.subr.mxu0 0.0
  %3383 = vmatpush1.msra.mxu0 0.0
  %3384 = vmatprep.subr.mxu0 0.0
  %3385 = vmatpush1.msra.mxu0 0.0
  %3386 = vmatprep.subr.mxu0 0.0
  %3387 = vmatpush1.msra.mxu0 0.0
  %3388 = vmatprep.subr.mxu0 0.0
  %3389 = vmatpush1.msra.mxu0 0.0
  %3390 = vmatprep.subr.mxu0 0.0
  %3391 = vmatpush1.msra.mxu0 0.0
  %3392 = vmatprep.subr.mxu0 0.0
  %3393 = vmatpush1.msra.mxu0 0.0
  %3394 = vmatprep.subr.mxu0 0.0
  %3395 = vmatpush1.msra.mxu0 0.0
  %3396 = vmatprep.subr.mxu0 0.0
  %3397 = vmatpush1.msra.mxu0 0.0
  %3398 = vmatprep.subr.mxu0 0.0
  %3399 = vmatpush1.msra.mxu0 0.0
  %3400 = vmatprep.subr.mxu0 0.0
  %3401 = vmatpush1.msra.mxu0 0.0
  %3402 = vmatprep.subr.mxu0 0.0
  %3403 = vmatpush1.msra.mxu0 0.0
  %3404 = vmatprep.subr.mxu0 0.0
  %3405 = vmatpush1.msra.mxu0 0.0
  %3406 = vmatprep.subr.mxu0 0.0
  %3407 = vmatpush1.msra.mxu0 0.0
  %3408 = vmatprep.subr.mxu0 0.0
  %3409 = vmatpush1.msra.mxu0 0.0
  %3410 = vmatprep.subr.mxu0 0.0
  %3411 = vmatpush1.msra.mxu0 0.0
  %3412 = vmatprep.subr.mxu0 0.0
  %3413 = vmatpush1.msra.mxu0 0.0
  %3414 = vmatprep.subr.mxu0 0.0
  %3415 = vmatpush1.msra.mxu0 0.0
  %3416 = vmatprep.mubr.f32.mxu0 0.0
  %3417 = vmatmul.mubr.f32.gmra.mrb[0].mxu0 %v3338
  %v3418 = vpop.f32.mrb[0].mxu0
  %v3419 = vadd.f32 0.0, %v3418
  %v3420 = vpop.f32.mrb[0].mxu0
  %3421 = vmatprep.mubr.f32.mxu0 0.0
  %3422 = vmatmul.mubr.f32.gmra.mrb[0].mxu0 %v3341
  %v3423 = vpop.f32.mrb[0].mxu0
  %v3424 = vadd.f32 0.0, %v3423
  %v3425 = vpop.f32.mrb[0].mxu0
  %3426 = vmatprep.mubr.f32.mxu0 0.0
  %3427 = vmatmul.mubr.f32.gmra.mrb[0].mxu0 %v3344
  %v3428 = vpop.f32.mrb[0].mxu0
  %v3429 = vadd.f32 0.0, %v3428
  %v3430 = vpop.f32.mrb[0].mxu0
  %3431 = vmatprep.mubr.f32.mxu0 0.0
  %3432 = vmatmul.mubr.f32.gmra.mrb[0].mxu0 %v3347
  %v3433 = vpop.f32.mrb[0].mxu0
  %v3434 = vadd.f32 0.0, %v3433
  %v3435 = vpop.f32.mrb[0].mxu0
  %3436 = vmatprep.mubr.f32.mxu0 0.0
  %3437 = vmatmul.mubr.f32.gmra.mrb[0].mxu0 %v3350
  %v3438 = vpop.f32.mrb[0].mxu0
  %v3439 = vadd.f32 0.0, %v3438
  %v3440 = vpop.f32.mrb[0].mxu0
  %3441 = vdwg.mxu0
  %3442 = vst [vmem:[%s10] sm:$0xff] %v3419
  %3443 = vst [vmem:[%s10 + $0x8] sm:$0xff] %v3424
  %3444 = vst [vmem:[%s10 + $0x10] sm:$0xff] %v3429
  %3445 = vst [vmem:[%s10 + $0x18] sm:$0xff] %v3434
  %3446 = vst [vmem:[%s10 + $0x20] sm:$0xff] %v3439
  // Predicated region
  $region42: #{tree_decoder_forward.1} parent=0 // pred_check
    _
  $region43: #{tree_decoder_forward.1} parent=0 // pred_check_branch
    %3448 = sbr.rel (0) target = $region45
  $region44: #{tree_decoder_forward.1} parent=0 // pred_region
    _
  $region45: #{tree_decoder_forward.1} parent=0 // pred_fallthru
    _
  // Predicated region
  $region46: #{tree_decoder_forward.1} parent=0 // pred_check
    _
  $region47: #{tree_decoder_forward.1} parent=0 // pred_check_branch
    %3450 = sbr.rel (0) target = $region49
  $region48: #{tree_decoder_forward.1} parent=0 // pred_region
    _
  $region49: #{tree_decoder_forward.1} parent=0 // pred_fallthru
    _

</llo_original>
